<compile_context>
chip_gen: v7x
topology: tpu7x:2x2x1
jax: 0.10.0
libtpu: 0.0.40
codegen_flags: <defaults>
</compile_context>

<pallas_src>
import math
import jax
import jax.numpy as jnp
from jax.experimental import pallas as pl
from jax.experimental.pallas import tpu as pltpu

INPUT_DIM = 48                       # must be divisible by head_num = 3
HEAD_NUM = 3
HEAD_DIM = INPUT_DIM // HEAD_NUM
FF_DIM = INPUT_DIM
FEATURE_WEIGHT_NUM = 8
SEQ = 4                              # four fused feature vectors
LN_EPS = 1e-5
OUT_PAD = 128                        # lane-dense output width (sliced outside)


def _layernorm(x, gamma, beta):
    mu = jnp.mean(x, axis=-1, keepdims=True)
    var = jnp.mean((x - mu) ** 2, axis=-1, keepdims=True)
    return (x - mu) * jax.lax.rsqrt(var + LN_EPS) * gamma + beta


# --------------------------------------------------------------------------
# Pallas kernel: one batch tile of TM rows; feats block is (4*TM, 48).
# --------------------------------------------------------------------------
def late_filter_kernel(feats_ref, wqkv_ref, bqkv_ref, wmats_ref, vecs_ref,
                       w2_ref, b2_ref, out_ref):
    D = INPUT_DIM
    rows = feats_ref.shape[0]            # 4 * TM  (static)
    T = rows // SEQ

    x0 = feats_ref[...]                  # (4T, D)

    vecs = vecs_ref[...]                 # (8, D) packed small vectors
    bo, ln1g, ln1b = vecs[0:1], vecs[1:2], vecs[2:3]
    ln2g, ln2b = vecs[3:4], vecs[4:5]
    bff1, bff2, b1 = vecs[5:6], vecs[6:7], vecs[7:8]

    # ---- fused Q|K|V projection: one (4T,D) @ (D,3D) MXU pass ----
    qkv = jnp.dot(x0, wqkv_ref[...],
                  preferred_element_type=jnp.float32) + bqkv_ref[...]
    qkv3 = qkv.reshape(T, SEQ, 3 * D)    # (T, 4, 3D) only for the 4x4 attention

    # ---- multi-head self-attention over the 4 fused vectors (H = 3) ----
    scale = 1.0 / math.sqrt(HEAD_DIM)
    ctx_heads = []
    for h in range(HEAD_NUM):            # static unrolled loop
        q_h = qkv3[:, :, h * HEAD_DIM:(h + 1) * HEAD_DIM]
        k_h = qkv3[:, :, D + h * HEAD_DIM:D + (h + 1) * HEAD_DIM]
        v_h = qkv3[:, :, 2 * D + h * HEAD_DIM:2 * D + (h + 1) * HEAD_DIM]
        s = jnp.einsum('bqd,bkd->bqk', q_h, k_h,
                       preferred_element_type=jnp.float32) * scale
        s = s - jnp.max(s, axis=-1, keepdims=True)
        e = jnp.exp(s)
        inv = pl.reciprocal(jnp.sum(e, axis=-1, keepdims=True), approx=True)
        ctx_heads.append(jnp.einsum('bqk,bkd->bqd', e * inv, v_h,
                                    preferred_element_type=jnp.float32))
    ctx = jnp.concatenate(ctx_heads, axis=-1).reshape(rows, D)   # (4T, D)

    # ---- output projection + residual LayerNorm ----
    attn_out = jnp.dot(ctx, wmats_ref[0],
                       preferred_element_type=jnp.float32) + bo
    x = _layernorm(x0 + attn_out, ln1g, ln1b)

    # ---- FFN + residual LayerNorm ----
    ff = jnp.maximum(jnp.dot(x, wmats_ref[1],
                             preferred_element_type=jnp.float32) + bff1, 0.0)
    ff = jnp.dot(ff, wmats_ref[2], preferred_element_type=jnp.float32) + bff2
    x = _layernorm(x + ff, ln2g, ln2b)                           # (4T, D)

    # ---- linear1: feats.view(B, 4D) @ w1 == sum_s x[:, s, :] @ w1_block[s] ----
    x3 = x.reshape(T, SEQ, D)
    acc = jnp.dot(x3[:, 0, :], wmats_ref[3],
                  preferred_element_type=jnp.float32)
    for s in range(1, SEQ):
        acc = acc + jnp.dot(x3[:, s, :], wmats_ref[3 + s],
                            preferred_element_type=jnp.float32)
    h1 = jnp.maximum(acc + b1, 0.0)                              # (T, D)

    # ---- linear2 (lane-dense, padded to 128) + sigmoid ----
    logits = jnp.dot(h1, w2_ref[...],
                     preferred_element_type=jnp.float32) + b2_ref[...]
    out_ref[...] = jax.nn.sigmoid(logits)                        # (T, 128)


# --------------------------------------------------------------------------
# Wrapper: layout plumbing (input stacking, parameter packing) + pallas_call.
# --------------------------------------------------------------------------
def late_filter(t1, t2, c1, c2, params, *, tm=256):
    B, D = t1.shape
    assert D == INPUT_DIM
    TM = min(tm, B)
    if TM < B:                       # keep blocks (8,128)-friendly when tiled
        TM = max(8, (TM // 8) * 8)
    grid = (pl.cdiv(B, TM),)

    # one stacked (4B, D) input slab; row 4*b + s = feature-vector s of batch b
    feats = jnp.stack([t1, t2, c1, c2], axis=1).reshape(SEQ * B, D)

    # packed parameters (6 buffers instead of 20 tiny ones)
    wqkv = jnp.concatenate([params['wq'], params['wk'], params['wv']], axis=1)
    bqkv = jnp.concatenate([params['bq'], params['bk'], params['bv']], axis=1)
    w1_blocks = params['w1'].reshape(SEQ, D, D)          # row-split of (4D, D)
    wmats = jnp.concatenate(
        [params['wo'][None], params['wff1'][None], params['wff2'][None],
         w1_blocks], axis=0)                             # (3 + SEQ, D, D)
    vecs = jnp.concatenate(
        [params['bo'], params['ln1g'], params['ln1b'], params['ln2g'],
         params['ln2b'], params['bff1'], params['bff2'], params['b1']],
        axis=0)                                          # (8, D)
    pad = OUT_PAD - FEATURE_WEIGHT_NUM
    w2p = jnp.pad(params['w2'], ((0, 0), (0, pad)))      # (D, 128)
    b2p = jnp.pad(params['b2'], ((0, 0), (0, pad)))      # (1, 128)

    const2 = lambda i: (0, 0)
    out = pl.pallas_call(
        late_filter_kernel,
        out_shape=jax.ShapeDtypeStruct((B, OUT_PAD), jnp.float32),
        grid=grid,
        in_specs=[
            pl.BlockSpec((SEQ * TM, D), lambda i: (i, 0)),        # feats tile
            pl.BlockSpec((D, 3 * D), const2),                     # wqkv (resident)
            pl.BlockSpec((1, 3 * D), const2),                     # bqkv
            pl.BlockSpec((3 + SEQ, D, D), lambda i: (0, 0, 0)),   # wo|wff1|wff2|w1
            pl.BlockSpec((8, D), const2),                         # packed bias/LN vecs
            pl.BlockSpec((D, OUT_PAD), const2),                   # w2 (padded)
            pl.BlockSpec((1, OUT_PAD), const2),                   # b2 (padded)
        ],
        out_specs=pl.BlockSpec((TM, OUT_PAD), lambda i: (i, 0)),
        compiler_params=pltpu.CompilerParams(
            dimension_semantics=("parallel",)),
    )(feats, wqkv, bqkv, wmats, vecs, w2p, b2p)
    return out[:, :FEATURE_WEIGHT_NUM]


# --------------------------------------------------------------------------
# Pure-JAX reference (mirrors the original module semantics, unpacked params)
# --------------------------------------------------------------------------
def _reference(t1, t2, c1, c2, p):
    B = t1.shape[0]
    feats = jnp.stack([t1, t2, c1, c2], axis=1)                  # (B, 4, D)

    q = jnp.einsum('bsd,de->bse', feats, p['wq']) + p['bq']
    k = jnp.einsum('bsd,de->bse', feats, p['wk']) + p['bk']
    v = jnp.einsum('bsd,de->bse', feats, p['wv']) + p['bv']

    scale = 1.0 / math.sqrt(HEAD_DIM)
    ctx_heads = []
    for h in range(HEAD_NUM):
        sl = slice(h * HEAD_DIM, (h + 1) * HEAD_DIM)
        qh, kh, vh = q[:, :, sl], k[:, :, sl], v[:, :, sl]
        s = jnp.einsum('bqd,bkd->bqk', qh, kh) * scale
        s = s - jnp.max(s, axis=-1, keepdims=True)
        e = jnp.exp(s)
        a = e / jnp.sum(e, axis=-1, keepdims=True)
        ctx_heads.append(jnp.einsum('bqk,bkd->bqd', a, vh))
    ctx = jnp.concatenate(ctx_heads, axis=-1)
    attn_out = jnp.einsum('bsd,de->bse', ctx, p['wo']) + p['bo']

    x = _layernorm(feats + attn_out, p['ln1g'], p['ln1b'])
    ff = jnp.maximum(jnp.einsum('bsd,df->bsf', x, p['wff1']) + p['bff1'], 0.0)
    ff = jnp.einsum('bsf,fd->bsd', ff, p['wff2']) + p['bff2']
    x = _layernorm(x + ff, p['ln2g'], p['ln2b'])

    flat = x.reshape(B, SEQ * INPUT_DIM)
    h1 = jnp.maximum(jnp.dot(flat, p['w1']) + p['b1'], 0.0)
    logits = jnp.dot(h1, p['w2']) + p['b2']
    return jax.nn.sigmoid(logits)


def init_params(key):
    """Deterministic synthetic parameters. Linear weights are (in, out)."""
    ks = jax.random.split(key, 16)
    D, F, FW = INPUT_DIM, FF_DIM, FEATURE_WEIGHT_NUM

    def w(k, shape, scale=0.05):
        return (scale * jax.random.normal(k, shape)).astype(jnp.float32)

    return {
        'wq': w(ks[0], (D, D)),  'bq': w(ks[1], (1, D)),
        'wk': w(ks[2], (D, D)),  'bk': w(ks[3], (1, D)),
        'wv': w(ks[4], (D, D)),  'bv': w(ks[5], (1, D)),
        'wo': w(ks[6], (D, D)),  'bo': w(ks[7], (1, D)),
        'ln1g': jnp.ones((1, D), jnp.float32),
        'ln1b': jnp.zeros((1, D), jnp.float32),
        'ln2g': jnp.ones((1, D), jnp.float32),
        'ln2b': jnp.zeros((1, D), jnp.float32),
        'wff1': w(ks[8], (D, F)),   'bff1': w(ks[9], (1, F)),
        'wff2': w(ks[10], (F, D)),  'bff2': w(ks[11], (1, D)),
        'w1': w(ks[12], (4 * D, D)), 'b1': w(ks[13], (1, D)),
        'w2': w(ks[14], (D, FW)),    'b2': w(ks[15], (1, FW)),
    }


if __name__ == "__main__":
    key = jax.random.PRNGKey(0)
    k_in, k_p = jax.random.split(key)
    k1, k2, k3, k4 = jax.random.split(k_in, 4)

    B = 8
    text_vec1 = jax.random.normal(k1, (B, INPUT_DIM), jnp.float32)
    text_vec2 = jax.random.normal(k2, (B, INPUT_DIM), jnp.float32)
    cross_vec1 = jax.random.normal(k3, (B, INPUT_DIM), jnp.float32)
    cross_vec2 = jax.random.normal(k4, (B, INPUT_DIM), jnp.float32)
    params = init_params(k_p)

    out = jax.block_until_ready(
        late_filter(text_vec1, text_vec2, cross_vec1, cross_vec2, params))

    ref = jax.block_until_ready(
        _reference(text_vec1, text_vec2, cross_vec1, cross_vec2, params))
    assert out.shape == (B, FEATURE_WEIGHT_NUM)
    max_err = float(jnp.max(jnp.abs(out - ref)))
    assert max_err < 5e-3, max_err          # approx-reciprocal softmax tolerance

    print("KERNEL_OK")
</pallas_src>

<mosaic_0001>
module attributes {stable_mosaic.version = 11 : i64} {
  func.func @late_filter_kernel(%arg0: i32, %arg1: memref<32x48xf32, #tpu.memory_space<vmem>>, %arg2: memref<48x144xf32, #tpu.memory_space<vmem>>, %arg3: memref<1x144xf32, #tpu.memory_space<vmem>>, %arg4: memref<7x48x48xf32, #tpu.memory_space<vmem>>, %arg5: memref<8x48xf32, #tpu.memory_space<vmem>>, %arg6: memref<48x128xf32, #tpu.memory_space<vmem>>, %arg7: memref<1x128xf32, #tpu.memory_space<vmem>>, %arg8: memref<8x128xf32, #tpu.memory_space<vmem>>) attributes {dimension_semantics = [#tpu.dimension_semantics<parallel>], iteration_bounds = array<i64: 1>, scalar_prefetch = 0 : i64, scratch_operands = 0 : i64, tpu.core_type = #tpu.core_type<tc>, window_params = [{transform_indices = @transform_0, window_bounds = array<i64: 32, 48>}, {pipeline_mode = #tpu.pipeline_mode<synchronous>, transform_indices = @transform_1, window_bounds = array<i64: 48, 144>}, {pipeline_mode = #tpu.pipeline_mode<synchronous>, transform_indices = @transform_2, window_bounds = array<i64: 1, 144>}, {pipeline_mode = #tpu.pipeline_mode<synchronous>, transform_indices = @transform_3, window_bounds = array<i64: 7, 48, 48>}, {pipeline_mode = #tpu.pipeline_mode<synchronous>, transform_indices = @transform_4, window_bounds = array<i64: 8, 48>}, {pipeline_mode = #tpu.pipeline_mode<synchronous>, transform_indices = @transform_5, window_bounds = array<i64: 48, 128>}, {pipeline_mode = #tpu.pipeline_mode<synchronous>, transform_indices = @transform_6, window_bounds = array<i64: 1, 128>}, {transform_indices = @transform_7, window_bounds = array<i64: 8, 128>}]} {
    %c0 = arith.constant 0 : index
    %c0_0 = arith.constant 0 : index
    %0 = vector.load %arg1[%c0, %c0_0] : memref<32x48xf32, #tpu.memory_space<vmem>>, vector<32x48xf32>
    %c0_1 = arith.constant 0 : index
    %c0_2 = arith.constant 0 : index
    %1 = vector.load %arg5[%c0_1, %c0_2] : memref<8x48xf32, #tpu.memory_space<vmem>>, vector<8x48xf32>
    %2 = vector.extract_strided_slice %1 {offsets = [0, 0], sizes = [1, 48], strides = [1, 1]} : vector<8x48xf32> to vector<1x48xf32>
    %3 = vector.extract_strided_slice %1 {offsets = [1, 0], sizes = [1, 48], strides = [1, 1]} : vector<8x48xf32> to vector<1x48xf32>
    %4 = vector.extract_strided_slice %1 {offsets = [2, 0], sizes = [1, 48], strides = [1, 1]} : vector<8x48xf32> to vector<1x48xf32>
    %5 = vector.extract_strided_slice %1 {offsets = [3, 0], sizes = [1, 48], strides = [1, 1]} : vector<8x48xf32> to vector<1x48xf32>
    %6 = vector.extract_strided_slice %1 {offsets = [4, 0], sizes = [1, 48], strides = [1, 1]} : vector<8x48xf32> to vector<1x48xf32>
    %7 = vector.extract_strided_slice %1 {offsets = [5, 0], sizes = [1, 48], strides = [1, 1]} : vector<8x48xf32> to vector<1x48xf32>
    %8 = vector.extract_strided_slice %1 {offsets = [6, 0], sizes = [1, 48], strides = [1, 1]} : vector<8x48xf32> to vector<1x48xf32>
    %9 = vector.extract_strided_slice %1 {offsets = [7, 0], sizes = [1, 48], strides = [1, 1]} : vector<8x48xf32> to vector<1x48xf32>
    %c0_3 = arith.constant 0 : index
    %c0_4 = arith.constant 0 : index
    %10 = vector.load %arg2[%c0_3, %c0_4] : memref<48x144xf32, #tpu.memory_space<vmem>>, vector<48x144xf32>
    %cst = arith.constant dense<0.000000e+00> : vector<32x144xf32>
    %11 = tpu.matmul %0, %10, %cst {dimension_numbers = #tpu.dot_dimension_numbers<[1], [0], [0], [1], [0, 0, 1, 1], [], []>} : vector<32x48xf32>, vector<48x144xf32>, vector<32x144xf32> -> vector<32x144xf32>
    %c0_5 = arith.constant 0 : index
    %c0_6 = arith.constant 0 : index
    %12 = vector.load %arg3[%c0_5, %c0_6] : memref<1x144xf32, #tpu.memory_space<vmem>>, vector<1x144xf32>
    %13 = vector.broadcast %12 : vector<1x144xf32> to vector<32x144xf32>
    %14 = arith.addf %11, %13 : vector<32x144xf32>
    %15 = vector.shape_cast %14 : vector<32x144xf32> to vector<8x4x144xf32>
    %16 = vector.extract_strided_slice %15 {offsets = [0, 0, 0], sizes = [8, 4, 16], strides = [1, 1, 1]} : vector<8x4x144xf32> to vector<8x4x16xf32>
    %17 = vector.extract_strided_slice %15 {offsets = [0, 0, 48], sizes = [8, 4, 16], strides = [1, 1, 1]} : vector<8x4x144xf32> to vector<8x4x16xf32>
    %18 = vector.extract_strided_slice %15 {offsets = [0, 0, 96], sizes = [8, 4, 16], strides = [1, 1, 1]} : vector<8x4x144xf32> to vector<8x4x16xf32>
    "tpu.trace_start"() <{level = 10 : i32, message = "bqd,bkd->bqk"}> : () -> ()
    %cst_7 = arith.constant dense<0.000000e+00> : vector<8x4x4xf32>
    %19 = tpu.matmul %16, %17, %cst_7 {dimension_numbers = #tpu.dot_dimension_numbers<[2], [2], [1], [1], [0, 0, 0, 1, 1, 1], [0], [0]>} : vector<8x4x16xf32>, vector<8x4x16xf32>, vector<8x4x4xf32> -> vector<8x4x4xf32>
    "tpu.trace_stop"() : () -> ()
    %cst_8 = arith.constant 2.500000e-01 : f32
    %20 = vector.broadcast %cst_8 : f32 to vector<8x4x4xf32>
    %21 = arith.mulf %19, %20 : vector<8x4x4xf32>
    %cst_9 = arith.constant dense<0xFF800000> : vector<8x4xf32>
    %22 = vector.multi_reduction <maximumf>, %21, %cst_9 [2] : vector<8x4x4xf32> to vector<8x4xf32>
    %23 = vector.shape_cast %22 : vector<8x4xf32> to vector<8x4x1xf32>
    %24 = vector.broadcast %23 : vector<8x4x1xf32> to vector<8x4x4xf32>
    %25 = arith.subf %21, %24 : vector<8x4x4xf32>
    %26 = math.exp %25 : vector<8x4x4xf32>
    %cst_10 = arith.constant dense<0.000000e+00> : vector<8x4xf32>
    %27 = vector.multi_reduction <add>, %26, %cst_10 [2] : vector<8x4x4xf32> to vector<8x4xf32>
    %28 = vector.shape_cast %27 : vector<8x4xf32> to vector<8x4x1xf32>
    %29 = tpu.reciprocal %28 {approx = true} : vector<8x4x1xf32> -> vector<8x4x1xf32>
    %30 = vector.broadcast %29 : vector<8x4x1xf32> to vector<8x4x4xf32>
    %31 = arith.mulf %26, %30 : vector<8x4x4xf32>
    "tpu.trace_start"() <{level = 10 : i32, message = "bqk,bkd->bqd"}> : () -> ()
    %cst_11 = arith.constant dense<0.000000e+00> : vector<8x4x16xf32>
    %32 = tpu.matmul %31, %18, %cst_11 {dimension_numbers = #tpu.dot_dimension_numbers<[2], [1], [1], [2], [0, 0, 0, 1, 1, 2], [0], [0]>} : vector<8x4x4xf32>, vector<8x4x16xf32>, vector<8x4x16xf32> -> vector<8x4x16xf32>
    "tpu.trace_stop"() : () -> ()
    %33 = vector.extract_strided_slice %15 {offsets = [0, 0, 16], sizes = [8, 4, 16], strides = [1, 1, 1]} : vector<8x4x144xf32> to vector<8x4x16xf32>
    %34 = vector.extract_strided_slice %15 {offsets = [0, 0, 64], sizes = [8, 4, 16], strides = [1, 1, 1]} : vector<8x4x144xf32> to vector<8x4x16xf32>
    %35 = vector.extract_strided_slice %15 {offsets = [0, 0, 112], sizes = [8, 4, 16], strides = [1, 1, 1]} : vector<8x4x144xf32> to vector<8x4x16xf32>
    "tpu.trace_start"() <{level = 10 : i32, message = "bqd,bkd->bqk"}> : () -> ()
    %cst_12 = arith.constant dense<0.000000e+00> : vector<8x4x4xf32>
    %36 = tpu.matmul %33, %34, %cst_12 {dimension_numbers = #tpu.dot_dimension_numbers<[2], [2], [1], [1], [0, 0, 0, 1, 1, 1], [0], [0]>} : vector<8x4x16xf32>, vector<8x4x16xf32>, vector<8x4x4xf32> -> vector<8x4x4xf32>
    "tpu.trace_stop"() : () -> ()
    %cst_13 = arith.constant 2.500000e-01 : f32
    %37 = vector.broadcast %cst_13 : f32 to vector<8x4x4xf32>
    %38 = arith.mulf %36, %37 : vector<8x4x4xf32>
    %cst_14 = arith.constant dense<0xFF800000> : vector<8x4xf32>
    %39 = vector.multi_reduction <maximumf>, %38, %cst_14 [2] : vector<8x4x4xf32> to vector<8x4xf32>
    %40 = vector.shape_cast %39 : vector<8x4xf32> to vector<8x4x1xf32>
    %41 = vector.broadcast %40 : vector<8x4x1xf32> to vector<8x4x4xf32>
    %42 = arith.subf %38, %41 : vector<8x4x4xf32>
    %43 = math.exp %42 : vector<8x4x4xf32>
    %cst_15 = arith.constant dense<0.000000e+00> : vector<8x4xf32>
    %44 = vector.multi_reduction <add>, %43, %cst_15 [2] : vector<8x4x4xf32> to vector<8x4xf32>
    %45 = vector.shape_cast %44 : vector<8x4xf32> to vector<8x4x1xf32>
    %46 = tpu.reciprocal %45 {approx = true} : vector<8x4x1xf32> -> vector<8x4x1xf32>
    %47 = vector.broadcast %46 : vector<8x4x1xf32> to vector<8x4x4xf32>
    %48 = arith.mulf %43, %47 : vector<8x4x4xf32>
    "tpu.trace_start"() <{level = 10 : i32, message = "bqk,bkd->bqd"}> : () -> ()
    %cst_16 = arith.constant dense<0.000000e+00> : vector<8x4x16xf32>
    %49 = tpu.matmul %48, %35, %cst_16 {dimension_numbers = #tpu.dot_dimension_numbers<[2], [1], [1], [2], [0, 0, 0, 1, 1, 2], [0], [0]>} : vector<8x4x4xf32>, vector<8x4x16xf32>, vector<8x4x16xf32> -> vector<8x4x16xf32>
    "tpu.trace_stop"() : () -> ()
    %50 = vector.extract_strided_slice %15 {offsets = [0, 0, 32], sizes = [8, 4, 16], strides = [1, 1, 1]} : vector<8x4x144xf32> to vector<8x4x16xf32>
    %51 = vector.extract_strided_slice %15 {offsets = [0, 0, 80], sizes = [8, 4, 16], strides = [1, 1, 1]} : vector<8x4x144xf32> to vector<8x4x16xf32>
    %52 = vector.extract_strided_slice %15 {offsets = [0, 0, 128], sizes = [8, 4, 16], strides = [1, 1, 1]} : vector<8x4x144xf32> to vector<8x4x16xf32>
    "tpu.trace_start"() <{level = 10 : i32, message = "bqd,bkd->bqk"}> : () -> ()
    %cst_17 = arith.constant dense<0.000000e+00> : vector<8x4x4xf32>
    %53 = tpu.matmul %50, %51, %cst_17 {dimension_numbers = #tpu.dot_dimension_numbers<[2], [2], [1], [1], [0, 0, 0, 1, 1, 1], [0], [0]>} : vector<8x4x16xf32>, vector<8x4x16xf32>, vector<8x4x4xf32> -> vector<8x4x4xf32>
    "tpu.trace_stop"() : () -> ()
    %cst_18 = arith.constant 2.500000e-01 : f32
    %54 = vector.broadcast %cst_18 : f32 to vector<8x4x4xf32>
    %55 = arith.mulf %53, %54 : vector<8x4x4xf32>
    %cst_19 = arith.constant dense<0xFF800000> : vector<8x4xf32>
    %56 = vector.multi_reduction <maximumf>, %55, %cst_19 [2] : vector<8x4x4xf32> to vector<8x4xf32>
    %57 = vector.shape_cast %56 : vector<8x4xf32> to vector<8x4x1xf32>
    %58 = vector.broadcast %57 : vector<8x4x1xf32> to vector<8x4x4xf32>
    %59 = arith.subf %55, %58 : vector<8x4x4xf32>
    %60 = math.exp %59 : vector<8x4x4xf32>
    %cst_20 = arith.constant dense<0.000000e+00> : vector<8x4xf32>
    %61 = vector.multi_reduction <add>, %60, %cst_20 [2] : vector<8x4x4xf32> to vector<8x4xf32>
    %62 = vector.shape_cast %61 : vector<8x4xf32> to vector<8x4x1xf32>
    %63 = tpu.reciprocal %62 {approx = true} : vector<8x4x1xf32> -> vector<8x4x1xf32>
    %64 = vector.broadcast %63 : vector<8x4x1xf32> to vector<8x4x4xf32>
    %65 = arith.mulf %60, %64 : vector<8x4x4xf32>
    "tpu.trace_start"() <{level = 10 : i32, message = "bqk,bkd->bqd"}> : () -> ()
    %cst_21 = arith.constant dense<0.000000e+00> : vector<8x4x16xf32>
    %66 = tpu.matmul %65, %52, %cst_21 {dimension_numbers = #tpu.dot_dimension_numbers<[2], [1], [1], [2], [0, 0, 0, 1, 1, 2], [0], [0]>} : vector<8x4x4xf32>, vector<8x4x16xf32>, vector<8x4x16xf32> -> vector<8x4x16xf32>
    "tpu.trace_stop"() : () -> ()
    %67 = tpu.concatenate %32, %49, %66 in 2 : vector<8x4x16xf32>, vector<8x4x16xf32>, vector<8x4x16xf32> -> vector<8x4x48xf32>
    %68 = vector.shape_cast %67 : vector<8x4x48xf32> to vector<32x48xf32>
    %c0_22 = arith.constant 0 : index
    %c0_23 = arith.constant 0 : index
    %c0_24 = arith.constant 0 : index
    %69 = vector.load %arg4[%c0_22, %c0_23, %c0_24] : memref<7x48x48xf32, #tpu.memory_space<vmem>>, vector<1x48x48xf32>
    %70 = vector.shape_cast %69 : vector<1x48x48xf32> to vector<48x48xf32>
    %cst_25 = arith.constant dense<0.000000e+00> : vector<32x48xf32>
    %71 = tpu.matmul %68, %70, %cst_25 {dimension_numbers = #tpu.dot_dimension_numbers<[1], [0], [0], [1], [0, 0, 1, 1], [], []>} : vector<32x48xf32>, vector<48x48xf32>, vector<32x48xf32> -> vector<32x48xf32>
    %72 = vector.broadcast %2 : vector<1x48xf32> to vector<32x48xf32>
    %73 = arith.addf %71, %72 : vector<32x48xf32>
    %74 = arith.addf %0, %73 : vector<32x48xf32>
    %cst_26 = arith.constant dense<0.000000e+00> : vector<32xf32>
    %75 = vector.multi_reduction <add>, %74, %cst_26 [1] : vector<32x48xf32> to vector<32xf32>
    %76 = vector.shape_cast %75 : vector<32xf32> to vector<32x1xf32>
    %cst_27 = arith.constant 4.800000e+01 : f32
    %77 = vector.broadcast %cst_27 : f32 to vector<32x1xf32>
    %78 = arith.divf %76, %77 : vector<32x1xf32>
    %79 = vector.broadcast %78 : vector<32x1xf32> to vector<32x48xf32>
    %80 = arith.subf %74, %79 : vector<32x48xf32>
    %81 = arith.mulf %80, %80 : vector<32x48xf32>
    %cst_28 = arith.constant dense<0.000000e+00> : vector<32xf32>
    %82 = vector.multi_reduction <add>, %81, %cst_28 [1] : vector<32x48xf32> to vector<32xf32>
    %83 = vector.shape_cast %82 : vector<32xf32> to vector<32x1xf32>
    %cst_29 = arith.constant 4.800000e+01 : f32
    %84 = vector.broadcast %cst_29 : f32 to vector<32x1xf32>
    %85 = arith.divf %83, %84 : vector<32x1xf32>
    %86 = vector.broadcast %78 : vector<32x1xf32> to vector<32x48xf32>
    %87 = arith.subf %74, %86 : vector<32x48xf32>
    %cst_30 = arith.constant 9.99999974E-6 : f32
    %88 = vector.broadcast %cst_30 : f32 to vector<32x1xf32>
    %89 = arith.addf %85, %88 : vector<32x1xf32>
    %90 = math.rsqrt %89 : vector<32x1xf32>
    %91 = vector.broadcast %90 : vector<32x1xf32> to vector<32x48xf32>
    %92 = arith.mulf %87, %91 : vector<32x48xf32>
    %93 = vector.broadcast %3 : vector<1x48xf32> to vector<32x48xf32>
    %94 = arith.mulf %92, %93 : vector<32x48xf32>
    %95 = vector.broadcast %4 : vector<1x48xf32> to vector<32x48xf32>
    %96 = arith.addf %94, %95 : vector<32x48xf32>
    %c1 = arith.constant 1 : index
    %c0_31 = arith.constant 0 : index
    %c0_32 = arith.constant 0 : index
    %97 = vector.load %arg4[%c1, %c0_31, %c0_32] : memref<7x48x48xf32, #tpu.memory_space<vmem>>, vector<1x48x48xf32>
    %98 = vector.shape_cast %97 : vector<1x48x48xf32> to vector<48x48xf32>
    %cst_33 = arith.constant dense<0.000000e+00> : vector<32x48xf32>
    %99 = tpu.matmul %96, %98, %cst_33 {dimension_numbers = #tpu.dot_dimension_numbers<[1], [0], [0], [1], [0, 0, 1, 1], [], []>} : vector<32x48xf32>, vector<48x48xf32>, vector<32x48xf32> -> vector<32x48xf32>
    %100 = vector.broadcast %7 : vector<1x48xf32> to vector<32x48xf32>
    %101 = arith.addf %99, %100 : vector<32x48xf32>
    %cst_34 = arith.constant 0.000000e+00 : f32
    %102 = vector.broadcast %cst_34 : f32 to vector<32x48xf32>
    %103 = arith.maximumf %101, %102 : vector<32x48xf32>
    %c2 = arith.constant 2 : index
    %c0_35 = arith.constant 0 : index
    %c0_36 = arith.constant 0 : index
    %104 = vector.load %arg4[%c2, %c0_35, %c0_36] : memref<7x48x48xf32, #tpu.memory_space<vmem>>, vector<1x48x48xf32>
    %105 = vector.shape_cast %104 : vector<1x48x48xf32> to vector<48x48xf32>
    %cst_37 = arith.constant dense<0.000000e+00> : vector<32x48xf32>
    %106 = tpu.matmul %103, %105, %cst_37 {dimension_numbers = #tpu.dot_dimension_numbers<[1], [0], [0], [1], [0, 0, 1, 1], [], []>} : vector<32x48xf32>, vector<48x48xf32>, vector<32x48xf32> -> vector<32x48xf32>
    %107 = vector.broadcast %8 : vector<1x48xf32> to vector<32x48xf32>
    %108 = arith.addf %106, %107 : vector<32x48xf32>
    %109 = arith.addf %96, %108 : vector<32x48xf32>
    %cst_38 = arith.constant dense<0.000000e+00> : vector<32xf32>
    %110 = vector.multi_reduction <add>, %109, %cst_38 [1] : vector<32x48xf32> to vector<32xf32>
    %111 = vector.shape_cast %110 : vector<32xf32> to vector<32x1xf32>
    %cst_39 = arith.constant 4.800000e+01 : f32
    %112 = vector.broadcast %cst_39 : f32 to vector<32x1xf32>
    %113 = arith.divf %111, %112 : vector<32x1xf32>
    %114 = vector.broadcast %113 : vector<32x1xf32> to vector<32x48xf32>
    %115 = arith.subf %109, %114 : vector<32x48xf32>
    %116 = arith.mulf %115, %115 : vector<32x48xf32>
    %cst_40 = arith.constant dense<0.000000e+00> : vector<32xf32>
    %117 = vector.multi_reduction <add>, %116, %cst_40 [1] : vector<32x48xf32> to vector<32xf32>
    %118 = vector.shape_cast %117 : vector<32xf32> to vector<32x1xf32>
    %cst_41 = arith.constant 4.800000e+01 : f32
    %119 = vector.broadcast %cst_41 : f32 to vector<32x1xf32>
    %120 = arith.divf %118, %119 : vector<32x1xf32>
    %121 = vector.broadcast %113 : vector<32x1xf32> to vector<32x48xf32>
    %122 = arith.subf %109, %121 : vector<32x48xf32>
    %cst_42 = arith.constant 9.99999974E-6 : f32
    %123 = vector.broadcast %cst_42 : f32 to vector<32x1xf32>
    %124 = arith.addf %120, %123 : vector<32x1xf32>
    %125 = math.rsqrt %124 : vector<32x1xf32>
    %126 = vector.broadcast %125 : vector<32x1xf32> to vector<32x48xf32>
    %127 = arith.mulf %122, %126 : vector<32x48xf32>
    %128 = vector.broadcast %5 : vector<1x48xf32> to vector<32x48xf32>
    %129 = arith.mulf %127, %128 : vector<32x48xf32>
    %130 = vector.broadcast %6 : vector<1x48xf32> to vector<32x48xf32>
    %131 = arith.addf %129, %130 : vector<32x48xf32>
    %132 = vector.shape_cast %131 : vector<32x48xf32> to vector<8x4x48xf32>
    %133 = vector.extract_strided_slice %132 {offsets = [0, 0, 0], sizes = [8, 1, 48], strides = [1, 1, 1]} : vector<8x4x48xf32> to vector<8x1x48xf32>
    %134 = vector.shape_cast %133 : vector<8x1x48xf32> to vector<8x48xf32>
    %c3 = arith.constant 3 : index
    %c0_43 = arith.constant 0 : index
    %c0_44 = arith.constant 0 : index
    %135 = vector.load %arg4[%c3, %c0_43, %c0_44] : memref<7x48x48xf32, #tpu.memory_space<vmem>>, vector<1x48x48xf32>
    %136 = vector.shape_cast %135 : vector<1x48x48xf32> to vector<48x48xf32>
    %cst_45 = arith.constant dense<0.000000e+00> : vector<8x48xf32>
    %137 = tpu.matmul %134, %136, %cst_45 {dimension_numbers = #tpu.dot_dimension_numbers<[1], [0], [0], [1], [0, 0, 1, 1], [], []>} : vector<8x48xf32>, vector<48x48xf32>, vector<8x48xf32> -> vector<8x48xf32>
    %138 = vector.extract_strided_slice %132 {offsets = [0, 1, 0], sizes = [8, 1, 48], strides = [1, 1, 1]} : vector<8x4x48xf32> to vector<8x1x48xf32>
    %139 = vector.shape_cast %138 : vector<8x1x48xf32> to vector<8x48xf32>
    %c4 = arith.constant 4 : index
    %c0_46 = arith.constant 0 : index
    %c0_47 = arith.constant 0 : index
    %140 = vector.load %arg4[%c4, %c0_46, %c0_47] : memref<7x48x48xf32, #tpu.memory_space<vmem>>, vector<1x48x48xf32>
    %141 = vector.shape_cast %140 : vector<1x48x48xf32> to vector<48x48xf32>
    %cst_48 = arith.constant dense<0.000000e+00> : vector<8x48xf32>
    %142 = tpu.matmul %139, %141, %cst_48 {dimension_numbers = #tpu.dot_dimension_numbers<[1], [0], [0], [1], [0, 0, 1, 1], [], []>} : vector<8x48xf32>, vector<48x48xf32>, vector<8x48xf32> -> vector<8x48xf32>
    %143 = arith.addf %137, %142 : vector<8x48xf32>
    %144 = vector.extract_strided_slice %132 {offsets = [0, 2, 0], sizes = [8, 1, 48], strides = [1, 1, 1]} : vector<8x4x48xf32> to vector<8x1x48xf32>
    %145 = vector.shape_cast %144 : vector<8x1x48xf32> to vector<8x48xf32>
    %c5 = arith.constant 5 : index
    %c0_49 = arith.constant 0 : index
    %c0_50 = arith.constant 0 : index
    %146 = vector.load %arg4[%c5, %c0_49, %c0_50] : memref<7x48x48xf32, #tpu.memory_space<vmem>>, vector<1x48x48xf32>
    %147 = vector.shape_cast %146 : vector<1x48x48xf32> to vector<48x48xf32>
    %cst_51 = arith.constant dense<0.000000e+00> : vector<8x48xf32>
    %148 = tpu.matmul %145, %147, %cst_51 {dimension_numbers = #tpu.dot_dimension_numbers<[1], [0], [0], [1], [0, 0, 1, 1], [], []>} : vector<8x48xf32>, vector<48x48xf32>, vector<8x48xf32> -> vector<8x48xf32>
    %149 = arith.addf %143, %148 : vector<8x48xf32>
    %150 = vector.extract_strided_slice %132 {offsets = [0, 3, 0], sizes = [8, 1, 48], strides = [1, 1, 1]} : vector<8x4x48xf32> to vector<8x1x48xf32>
    %151 = vector.shape_cast %150 : vector<8x1x48xf32> to vector<8x48xf32>
    %c6 = arith.constant 6 : index
    %c0_52 = arith.constant 0 : index
    %c0_53 = arith.constant 0 : index
    %152 = vector.load %arg4[%c6, %c0_52, %c0_53] : memref<7x48x48xf32, #tpu.memory_space<vmem>>, vector<1x48x48xf32>
    %153 = vector.shape_cast %152 : vector<1x48x48xf32> to vector<48x48xf32>
    %cst_54 = arith.constant dense<0.000000e+00> : vector<8x48xf32>
    %154 = tpu.matmul %151, %153, %cst_54 {dimension_numbers = #tpu.dot_dimension_numbers<[1], [0], [0], [1], [0, 0, 1, 1], [], []>} : vector<8x48xf32>, vector<48x48xf32>, vector<8x48xf32> -> vector<8x48xf32>
    %155 = arith.addf %149, %154 : vector<8x48xf32>
    %156 = vector.broadcast %9 : vector<1x48xf32> to vector<8x48xf32>
    %157 = arith.addf %155, %156 : vector<8x48xf32>
    %cst_55 = arith.constant 0.000000e+00 : f32
    %158 = vector.broadcast %cst_55 : f32 to vector<8x48xf32>
    %159 = arith.maximumf %157, %158 : vector<8x48xf32>
    %c0_56 = arith.constant 0 : index
    %c0_57 = arith.constant 0 : index
    %160 = vector.load %arg6[%c0_56, %c0_57] : memref<48x128xf32, #tpu.memory_space<vmem>>, vector<48x128xf32>
    %cst_58 = arith.constant dense<0.000000e+00> : vector<8x128xf32>
    %161 = tpu.matmul %159, %160, %cst_58 {dimension_numbers = #tpu.dot_dimension_numbers<[1], [0], [0], [1], [0, 0, 1, 1], [], []>} : vector<8x48xf32>, vector<48x128xf32>, vector<8x128xf32> -> vector<8x128xf32>
    %c0_59 = arith.constant 0 : index
    %c0_60 = arith.constant 0 : index
    %162 = vector.load %arg7[%c0_59, %c0_60] : memref<1x128xf32, #tpu.memory_space<vmem>>, vector<1x128xf32>
    %163 = vector.broadcast %162 : vector<1x128xf32> to vector<8x128xf32>
    %164 = arith.addf %161, %163 : vector<8x128xf32>
    %165 = arith.negf %164 : vector<8x128xf32>
    %166 = math.exp %165 : vector<8x128xf32>
    %cst_61 = arith.constant 1.000000e+00 : f32
    %167 = vector.broadcast %cst_61 : f32 to vector<8x128xf32>
    %168 = arith.addf %167, %166 : vector<8x128xf32>
    %169 = arith.divf %167, %168 : vector<8x128xf32>
    %c0_62 = arith.constant 0 : index
    %c0_63 = arith.constant 0 : index
    %170 = vector.load %arg8[%c0_62, %c0_63] : memref<8x128xf32, #tpu.memory_space<vmem>>, vector<8x128xf32>
    tpu.vector_store %arg8[%c0_62, %c0_63], %169 {strides = array<i32>} : memref<8x128xf32, #tpu.memory_space<vmem>>, vector<8x128xf32>,
    return
  }
  func.func @transform_0(%arg0: i32) -> (i32, i32) {
    %c0_i32 = arith.constant 0 : i32
    %c0_i32_0 = arith.constant 0 : i32
    return %arg0, %c0_i32 : i32, i32
  }
  func.func @transform_1(%arg0: i32) -> (i32, i32) {
    %c0_i32 = arith.constant 0 : i32
    %c0_i32_0 = arith.constant 0 : i32
    %c0_i32_1 = arith.constant 0 : i32
    return %c0_i32, %c0_i32_0 : i32, i32
  }
  func.func @transform_2(%arg0: i32) -> (i32, i32) {
    %c0_i32 = arith.constant 0 : i32
    %c0_i32_0 = arith.constant 0 : i32
    %c0_i32_1 = arith.constant 0 : i32
    return %c0_i32, %c0_i32_0 : i32, i32
  }
  func.func @transform_3(%arg0: i32) -> (i32, i32, i32) {
    %c0_i32 = arith.constant 0 : i32
    %c0_i32_0 = arith.constant 0 : i32
    %c0_i32_1 = arith.constant 0 : i32
    %c0_i32_2 = arith.constant 0 : i32
    return %c0_i32, %c0_i32_0, %c0_i32_1 : i32, i32, i32
  }
  func.func @transform_4(%arg0: i32) -> (i32, i32) {
    %c0_i32 = arith.constant 0 : i32
    %c0_i32_0 = arith.constant 0 : i32
    %c0_i32_1 = arith.constant 0 : i32
    return %c0_i32, %c0_i32_0 : i32, i32
  }
  func.func @transform_5(%arg0: i32) -> (i32, i32) {
    %c0_i32 = arith.constant 0 : i32
    %c0_i32_0 = arith.constant 0 : i32
    %c0_i32_1 = arith.constant 0 : i32
    return %c0_i32, %c0_i32_0 : i32, i32
  }
  func.func @transform_6(%arg0: i32) -> (i32, i32) {
    %c0_i32 = arith.constant 0 : i32
    %c0_i32_0 = arith.constant 0 : i32
    %c0_i32_1 = arith.constant 0 : i32
    return %c0_i32, %c0_i32_0 : i32, i32
  }
  func.func @transform_7(%arg0: i32) -> (i32, i32) {
    %c0_i32 = arith.constant 0 : i32
    %c0_i32_0 = arith.constant 0 : i32
    return %arg0, %c0_i32 : i32, i32
  }
}

</mosaic_0001>

<llo_original>
// kernel: tpu_custom_call.1
$region0: #{tpu_custom_call.1}
  #allocation0 [shape = 'u32[]', space=smem, size = 0x4, offset = 0x4, fixed_abs, tag = 'smem constant byte address 0x4 - core index']
  #allocation1 [shape = 'u32[144,128]{1,0:T(1,128)}', space=vmem, size = 0x12000, scoped, tag = 'internal scratch']
  %s0 = inlined_call_operand.hbm [shape: f32[32,48], index: 0, kind: input, shape index: {}]
  %s1 = inlined_call_operand.hbm [shape: f32[48,144], index: 1, kind: input, shape index: {}]
  %s2 = inlined_call_operand.vmem [shape: f32[1,144], index: 2, kind: input, shape index: {}]
  %s3 = inlined_call_operand.hbm [shape: f32[7,48,48], index: 3, kind: input, shape index: {}]
  %s4 = inlined_call_operand.vmem [shape: f32[8,48], index: 4, kind: input, shape index: {}]
  %s5 = inlined_call_operand.hbm [shape: f32[48,128], index: 5, kind: input, shape index: {}]
  %s6 = inlined_call_operand.vmem [shape: f32[1,128], index: 6, kind: input, shape index: {}]
  %s7 = inlined_call_operand.hbm [shape: f32[8,128], index: 7, kind: output, shape index: {}]
  %s8 = sld [smem:[#allocation0]]
  $region54: #{tpu_custom_call.1} parent=0
    _
  %s10 = ssub.s32 1, %s8
  %s11 = scalar_select 0, %s10, %s8
  $region1: #{tpu_custom_call.1} parent=0
    #allocation2 [shape = 'u8[16384]{0}', space=vmem, size = 0x4000, scoped, tag = 'input window, operand 0, single buffered']
    #allocation3 [shape = 's32[1]{0}', space=sflag, size = 0x4, scoped, tag = 'scoped memory for tpu_custom_call.1']
    #allocation4 [shape = 's32[1]{0}', space=sflag, size = 0x4, scoped, tag = 'scoped memory for tpu_custom_call.1']
    #allocation5 [shape = 'u8[49152]{0}', space=vmem, size = 0xc000, scoped, tag = 'input window, operand 1, single buffered']
    #allocation6 [shape = 's32[1]{0}', space=sflag, size = 0x4, scoped, tag = 'scoped memory for tpu_custom_call.1']
    #allocation7 [shape = 'u8[172032]{0}', space=vmem, size = 0x2a000, scoped, tag = 'input window, operand 3, single buffered']
    #allocation8 [shape = 'u8[24576]{0}', space=vmem, size = 0x6000, scoped, tag = 'input window, operand 5, single buffered']
    #allocation9 [shape = 's32[1]{0}', space=sflag, size = 0x4, scoped, tag = 'scoped memory for tpu_custom_call.1']
    #allocation10 [shape = 'u8[4096]{0}', space=vmem, size = 0x1000, scoped, tag = 'output window, operand 0, single buffered']
    %12 = vsyncpa [#allocation3], 0
    %13 = vsyncpa [#allocation6], 0
    %14 = vsyncpa [#allocation9], 0
    %15 = vsyncpa [#allocation4], 0
    // Predicated region
    $region2: #{tpu_custom_call.1} parent=1 // pred_check
      _
    $region3: #{tpu_custom_call.1} parent=1 // pred_check_branch
      %17 = sbr.rel (0) target = $region5
    $region4: #{tpu_custom_call.1} parent=1 // pred_region
      %s19 = ssub.s32 512, 512
      %20 = vsyncadd [#allocation3], %s19
      %s21 = sshll.u32 [#allocation2], 4
      %s22 = int_to_ptr.vmem [resolvable:$true] %s21
      %27 = dma.hbm_to_vmem [thread:$0]  %s0, 512, %s22, [#allocation3], 128, 128, 8
    $region5: #{tpu_custom_call.1} parent=1 // pred_fallthru
      _
    // Predicated region
    $region6: #{tpu_custom_call.1} parent=1 // pred_check
      _
    $region7: #{tpu_custom_call.1} parent=1 // pred_check_branch
      %29 = sbr.rel (0) target = $region9
    $region8: #{tpu_custom_call.1} parent=1 // pred_region
      %s31 = ssub.s32 1536, 1536
      %32 = vsyncadd [#allocation6], %s31
      %s33 = sshll.u32 [#allocation5], 4
      %s34 = int_to_ptr.vmem [resolvable:$true] %s33
      %39 = dma.hbm_to_vmem [thread:$0]  %s1, 1536, %s34, [#allocation6], 256, 256, 16
    $region9: #{tpu_custom_call.1} parent=1 // pred_fallthru
      _
    // Predicated region
    $region10: #{tpu_custom_call.1} parent=1 // pred_check
      _
    $region11: #{tpu_custom_call.1} parent=1 // pred_check_branch
      %41 = sbr.rel (0) target = $region13
    $region12: #{tpu_custom_call.1} parent=1 // pred_region
      _
    $region13: #{tpu_custom_call.1} parent=1 // pred_fallthru
      _
    // Predicated region
    $region14: #{tpu_custom_call.1} parent=1 // pred_check
      _
    $region15: #{tpu_custom_call.1} parent=1 // pred_check_branch
      %43 = sbr.rel (0) target = $region17
    $region16: #{tpu_custom_call.1} parent=1 // pred_region
      %s45 = ssub.s32 5376, 5376
      %46 = vsyncadd [#allocation6], %s45
      %s47 = sshll.u32 [#allocation7], 4
      %s48 = int_to_ptr.vmem [resolvable:$true] %s47
      %53 = dma.hbm_to_vmem [thread:$0]  %s3, 5376, %s48, [#allocation6], 128, 128, 8
    $region17: #{tpu_custom_call.1} parent=1 // pred_fallthru
      _
    // Predicated region
    $region18: #{tpu_custom_call.1} parent=1 // pred_check
      _
    $region19: #{tpu_custom_call.1} parent=1 // pred_check_branch
      %55 = sbr.rel (0) target = $region21
    $region20: #{tpu_custom_call.1} parent=1 // pred_region
      _
    $region21: #{tpu_custom_call.1} parent=1 // pred_fallthru
      _
    // Predicated region
    $region22: #{tpu_custom_call.1} parent=1 // pred_check
      _
    $region23: #{tpu_custom_call.1} parent=1 // pred_check_branch
      %57 = sbr.rel (0) target = $region25
    $region24: #{tpu_custom_call.1} parent=1 // pred_region
      %s59 = ssub.s32 768, 768
      %60 = vsyncadd [#allocation9], %s59
      %s61 = sshll.u32 [#allocation8], 4
      %s62 = int_to_ptr.vmem [resolvable:$true] %s61
      %67 = dma.hbm_to_vmem [thread:$0]  %s5, 768, %s62, [#allocation9], 128, 128, 8
    $region25: #{tpu_custom_call.1} parent=1 // pred_fallthru
      _
    // Predicated region
    $region26: #{tpu_custom_call.1} parent=1 // pred_check
      _
    $region27: #{tpu_custom_call.1} parent=1 // pred_check_branch
      %69 = sbr.rel (0) target = $region29
    $region28: #{tpu_custom_call.1} parent=1 // pred_region
      _
    $region29: #{tpu_custom_call.1} parent=1 // pred_fallthru
      _
    // Predicated region
    $region30: #{tpu_custom_call.1} parent=1 // pred_check
      _
    $region31: #{tpu_custom_call.1} parent=1 // pred_check_branch
      %71 = sbr.rel (0) target = $region33
    $region32: #{tpu_custom_call.1} parent=1 // pred_region
      %72 = dma.done [#allocation3], 512
    $region33: #{tpu_custom_call.1} parent=1 // pred_fallthru
      _
    // Predicated region
    $region34: #{tpu_custom_call.1} parent=1 // pred_check
      _
    $region35: #{tpu_custom_call.1} parent=1 // pred_check_branch
      %74 = sbr.rel (0) target = $region37
    $region36: #{tpu_custom_call.1} parent=1 // pred_region
      %75 = dma.done [#allocation6], 1536
    $region37: #{tpu_custom_call.1} parent=1 // pred_fallthru
      _
    // Predicated region
    $region38: #{tpu_custom_call.1} parent=1 // pred_check
      _
    $region39: #{tpu_custom_call.1} parent=1 // pred_check_branch
      %77 = sbr.rel (0) target = $region41
    $region40: #{tpu_custom_call.1} parent=1 // pred_region
      %78 = dma.done [#allocation6], 5376
    $region41: #{tpu_custom_call.1} parent=1 // pred_fallthru
      _
    // Predicated region
    $region42: #{tpu_custom_call.1} parent=1 // pred_check
      _
    $region43: #{tpu_custom_call.1} parent=1 // pred_check_branch
      %80 = sbr.rel (0) target = $region45
    $region44: #{tpu_custom_call.1} parent=1 // pred_region
      %81 = dma.done [#allocation9], 768
    $region45: #{tpu_custom_call.1} parent=1 // pred_fallthru
      _
    %v82 = vld [vmem:[#allocation2] sm:$0xff]
    %v83 = vld [vmem:[#allocation2 + $0x8] sm:$0xff]
    %v84 = vld [vmem:[#allocation2 + $0x10] sm:$0xff]
    %v85 = vld [vmem:[#allocation2 + $0x18] sm:$0xff]
    %v86 = vld [vmem:[%s4] sm:$0xff]
    %v87 = vld [vmem:[#allocation5] sm:$0xff]
    %v88 = vld [vmem:[#allocation5 + $0x8] sm:$0xff]
    %v89 = vld [vmem:[#allocation5 + $0x10] sm:$0xff]
    %v90 = vld [vmem:[#allocation5 + $0x18] sm:$0xff]
    %v91 = vld [vmem:[#allocation5 + $0x20] sm:$0xff]
    %v92 = vld [vmem:[#allocation5 + $0x28] sm:$0xff]
    %v93 = vld [vmem:[#allocation5 + $0x30] sm:$0xff]
    %v94 = vld [vmem:[#allocation5 + $0x38] sm:$0xff]
    %v95 = vld [vmem:[#allocation5 + $0x40] sm:$0xff]
    %v96 = vld [vmem:[#allocation5 + $0x48] sm:$0xff]
    %v97 = vld [vmem:[#allocation5 + $0x50] sm:$0xff]
    %v98 = vld [vmem:[#allocation5 + $0x58] sm:$0xff]
    %v99 = vld [vmem:[%s2] sm:$0x3]
    %v101 = vlaneseq
    %v102 = vshrl.u32 %v101, 7
    %v103 = vsub.s32 0, %v102
    %v104 = vrot.slane %v99, %v103
    %v105 = vlaneseq
    %v106 = vshrl.u32 %v105, 7
    %v107 = vsub.s32 1, %v106
    %v108 = vrot.slane %v99, %v107
    %vm111 = vcmask 392192
    %v113 = vsel %vm111, %v82, 0
    %v116 = vsel %vm111, %v83, 0
    %v119 = vsel %vm111, %v84, 0
    %v122 = vsel %vm111, %v85, 0
    %124 = vmatprep.subr.mxu0 %v88
    %125 = vmatpush1.msra.mxu0 %v87
    %126 = vmatprep.subr.mxu0 %v90
    %127 = vmatpush1.msra.mxu0 %v89
    %128 = vmatprep.subr.mxu0 %v92
    %129 = vmatpush1.msra.mxu0 %v91
    %130 = vmatprep.subr.mxu0 %v94
    %131 = vmatpush1.msra.mxu0 %v93
    %132 = vmatprep.subr.mxu0 %v96
    %133 = vmatpush1.msra.mxu0 %v95
    %134 = vmatprep.subr.mxu0 %v98
    %135 = vmatpush1.msra.mxu0 %v97
    %136 = vmatprep.subr.mxu0 0.0
    %137 = vmatpush1.msra.mxu0 0.0
    %138 = vmatprep.subr.mxu0 0.0
    %139 = vmatpush1.msra.mxu0 0.0
    %140 = vmatprep.subr.mxu0 0.0
    %141 = vmatpush1.msra.mxu0 0.0
    %142 = vmatprep.subr.mxu0 0.0
    %143 = vmatpush1.msra.mxu0 0.0
    %144 = vmatprep.subr.mxu0 0.0
    %145 = vmatpush1.msra.mxu0 0.0
    %146 = vmatprep.subr.mxu0 0.0
    %147 = vmatpush1.msra.mxu0 0.0
    %148 = vmatprep.subr.mxu0 0.0
    %149 = vmatpush1.msra.mxu0 0.0
    %150 = vmatprep.subr.mxu0 0.0
    %151 = vmatpush1.msra.mxu0 0.0
    %152 = vmatprep.subr.mxu0 0.0
    %153 = vmatpush1.msra.mxu0 0.0
    %154 = vmatprep.subr.mxu0 0.0
    %155 = vmatpush1.msra.mxu0 0.0
    %156 = vmatprep.subr.mxu0 0.0
    %157 = vmatpush1.msra.mxu0 0.0
    %158 = vmatprep.subr.mxu0 0.0
    %159 = vmatpush1.msra.mxu0 0.0
    %160 = vmatprep.subr.mxu0 0.0
    %161 = vmatpush1.msra.mxu0 0.0
    %162 = vmatprep.subr.mxu0 0.0
    %163 = vmatpush1.msra.mxu0 0.0
    %164 = vmatprep.subr.mxu0 0.0
    %165 = vmatpush1.msra.mxu0 0.0
    %166 = vmatprep.subr.mxu0 0.0
    %167 = vmatpush1.msra.mxu0 0.0
    %168 = vmatprep.subr.mxu0 0.0
    %169 = vmatpush1.msra.mxu0 0.0
    %170 = vmatprep.subr.mxu0 0.0
    %171 = vmatpush1.msra.mxu0 0.0
    %172 = vmatprep.subr.mxu0 0.0
    %173 = vmatpush1.msra.mxu0 0.0
    %174 = vmatprep.subr.mxu0 0.0
    %175 = vmatpush1.msra.mxu0 0.0
    %176 = vmatprep.subr.mxu0 0.0
    %177 = vmatpush1.msra.mxu0 0.0
    %178 = vmatprep.subr.mxu0 0.0
    %179 = vmatpush1.msra.mxu0 0.0
    %180 = vmatprep.subr.mxu0 0.0
    %181 = vmatpush1.msra.mxu0 0.0
    %182 = vmatprep.subr.mxu0 0.0
    %183 = vmatpush1.msra.mxu0 0.0
    %184 = vmatprep.subr.mxu0 0.0
    %185 = vmatpush1.msra.mxu0 0.0
    %186 = vmatprep.subr.mxu0 0.0
    %187 = vmatpush1.msra.mxu0 0.0
    %188 = vmatprep.mubr.f32.mxu0 0.0
    %189 = vmatmul.mubr.f32.gmra.mrb[0].mxu0 %v113
    %v190 = vpop.f32.mrb[0].mxu0
    %v191 = vadd.f32 %v104, %v190
    %v192 = vpop.f32.mrb[0].mxu0
    %v193 = vadd.f32 %v108, %v192
    %194 = vmatprep.mubr.f32.mxu0 0.0
    %195 = vmatmul.mubr.f32.gmra.mrb[0].mxu0 %v116
    %v196 = vpop.f32.mrb[0].mxu0
    %v197 = vadd.f32 %v104, %v196
    %v198 = vpop.f32.mrb[0].mxu0
    %v199 = vadd.f32 %v108, %v198
    %200 = vmatprep.mubr.f32.mxu0 0.0
    %201 = vmatmul.mubr.f32.gmra.mrb[0].mxu0 %v119
    %v202 = vpop.f32.mrb[0].mxu0
    %v203 = vadd.f32 %v104, %v202
    %v204 = vpop.f32.mrb[0].mxu0
    %v205 = vadd.f32 %v108, %v204
    %206 = vmatprep.mubr.f32.mxu0 0.0
    %207 = vmatmul.mubr.f32.gmra.mrb[0].mxu0 %v122
    %v208 = vpop.f32.mrb[0].mxu0
    %v209 = vadd.f32 %v104, %v208
    %v210 = vpop.f32.mrb[0].mxu0
    %v211 = vadd.f32 %v108, %v210
    %212 = vdwg.mxu0
    %v221 = vcombine.low %v191, %v193
    %v222 = vcombine.high %v191, %v193
    %v223 = vcombine.low %v197, %v199
    %v224 = vcombine.high %v197, %v199
    %v225 = vcombine.low %v203, %v205
    %v226 = vcombine.high %v203, %v205
    %v227 = vcombine.low %v209, %v211
    %v228 = vcombine.high %v209, %v211
    %229 = vrot.lane.b32.xlu0 %v221, 80
    %v230 = vpop.permute.xlu0 %229
    %vm231 = vcmask 130048
    %v232 = vsel %vm231, %v221, 0
    %v234 = vsel %vm231, %v230, 0
    %236 = vmatprep.subr.mxu0 0.0
    %237 = vmatpush1.xpose.msra.mxu0 %v234
    %238 = vmatprep.subr.mxu0 0.0
    %239 = vmatpush1.xpose.msra.mxu0 0.0
    %240 = vmatprep.subr.mxu0 0.0
    %241 = vmatpush1.xpose.msra.mxu0 0.0
    %242 = vmatprep.subr.mxu0 0.0
    %243 = vmatpush1.xpose.msra.mxu0 0.0
    %244 = vmatprep.subr.mxu0 0.0
    %245 = vmatpush1.xpose.msra.mxu0 0.0
    %246 = vmatprep.subr.mxu0 0.0
    %247 = vmatpush1.xpose.msra.mxu0 0.0
    %248 = vmatprep.subr.mxu0 0.0
    %249 = vmatpush1.xpose.msra.mxu0 0.0
    %250 = vmatprep.subr.mxu0 0.0
    %251 = vmatpush1.xpose.msra.mxu0 0.0
    %252 = vmatprep.subr.mxu0 0.0
    %253 = vmatpush1.xpose.msra.mxu0 0.0
    %254 = vmatprep.subr.mxu0 0.0
    %255 = vmatpush1.xpose.msra.mxu0 0.0
    %256 = vmatprep.subr.mxu0 0.0
    %257 = vmatpush1.xpose.msra.mxu0 0.0
    %258 = vmatprep.subr.mxu0 0.0
    %259 = vmatpush1.xpose.msra.mxu0 0.0
    %260 = vmatprep.subr.mxu0 0.0
    %261 = vmatpush1.xpose.msra.mxu0 0.0
    %262 = vmatprep.subr.mxu0 0.0
    %263 = vmatpush1.xpose.msra.mxu0 0.0
    %264 = vmatprep.subr.mxu0 0.0
    %265 = vmatpush1.xpose.msra.mxu0 0.0
    %266 = vmatprep.subr.mxu0 0.0
    %267 = vmatpush1.xpose.msra.mxu0 0.0
    %268 = vmatprep.subr.mxu0 0.0
    %269 = vmatpush1.xpose.msra.mxu0 0.0
    %270 = vmatprep.subr.mxu0 0.0
    %271 = vmatpush1.xpose.msra.mxu0 0.0
    %272 = vmatprep.subr.mxu0 0.0
    %273 = vmatpush1.xpose.msra.mxu0 0.0
    %274 = vmatprep.subr.mxu0 0.0
    %275 = vmatpush1.xpose.msra.mxu0 0.0
    %276 = vmatprep.subr.mxu0 0.0
    %277 = vmatpush1.xpose.msra.mxu0 0.0
    %278 = vmatprep.subr.mxu0 0.0
    %279 = vmatpush1.xpose.msra.mxu0 0.0
    %280 = vmatprep.subr.mxu0 0.0
    %281 = vmatpush1.xpose.msra.mxu0 0.0
    %282 = vmatprep.subr.mxu0 0.0
    %283 = vmatpush1.xpose.msra.mxu0 0.0
    %284 = vmatprep.subr.mxu0 0.0
    %285 = vmatpush1.xpose.msra.mxu0 0.0
    %286 = vmatprep.subr.mxu0 0.0
    %287 = vmatpush1.xpose.msra.mxu0 0.0
    %288 = vmatprep.subr.mxu0 0.0
    %289 = vmatpush1.xpose.msra.mxu0 0.0
    %290 = vmatprep.subr.mxu0 0.0
    %291 = vmatpush1.xpose.msra.mxu0 0.0
    %292 = vmatprep.subr.mxu0 0.0
    %293 = vmatpush1.xpose.msra.mxu0 0.0
    %294 = vmatprep.subr.mxu0 0.0
    %295 = vmatpush1.xpose.msra.mxu0 0.0
    %296 = vmatprep.subr.mxu0 0.0
    %297 = vmatpush1.xpose.msra.mxu0 0.0
    %298 = vmatprep.subr.mxu0 0.0
    %299 = vmatpush1.xpose.msra.mxu0 0.0
    %300 = vmatprep.mubr.f32.mxu0 0.0
    %301 = vmatmul.mubr.f32.gmra.mrb[0].mxu0 %v232
    %v302 = vpop.f32.mrb[0].mxu0
    %v303 = vadd.f32 0.0, %v302
    %v304 = vpop.f32.mrb[0].mxu0
    %305 = vdwg.mxu0
    %306 = vrot.lane.b32.xlu0 %v222, 80
    %v307 = vpop.permute.xlu0 %306
    %v308 = vsel %vm231, %v222, 0
    %v310 = vsel %vm231, %v307, 0
    %312 = vmatprep.subr.mxu0 0.0
    %313 = vmatpush1.xpose.msra.mxu0 %v310
    %314 = vmatprep.subr.mxu0 0.0
    %315 = vmatpush1.xpose.msra.mxu0 0.0
    %316 = vmatprep.subr.mxu0 0.0
    %317 = vmatpush1.xpose.msra.mxu0 0.0
    %318 = vmatprep.subr.mxu0 0.0
    %319 = vmatpush1.xpose.msra.mxu0 0.0
    %320 = vmatprep.subr.mxu0 0.0
    %321 = vmatpush1.xpose.msra.mxu0 0.0
    %322 = vmatprep.subr.mxu0 0.0
    %323 = vmatpush1.xpose.msra.mxu0 0.0
    %324 = vmatprep.subr.mxu0 0.0
    %325 = vmatpush1.xpose.msra.mxu0 0.0
    %326 = vmatprep.subr.mxu0 0.0
    %327 = vmatpush1.xpose.msra.mxu0 0.0
    %328 = vmatprep.subr.mxu0 0.0
    %329 = vmatpush1.xpose.msra.mxu0 0.0
    %330 = vmatprep.subr.mxu0 0.0
    %331 = vmatpush1.xpose.msra.mxu0 0.0
    %332 = vmatprep.subr.mxu0 0.0
    %333 = vmatpush1.xpose.msra.mxu0 0.0
    %334 = vmatprep.subr.mxu0 0.0
    %335 = vmatpush1.xpose.msra.mxu0 0.0
    %336 = vmatprep.subr.mxu0 0.0
    %337 = vmatpush1.xpose.msra.mxu0 0.0
    %338 = vmatprep.subr.mxu0 0.0
    %339 = vmatpush1.xpose.msra.mxu0 0.0
    %340 = vmatprep.subr.mxu0 0.0
    %341 = vmatpush1.xpose.msra.mxu0 0.0
    %342 = vmatprep.subr.mxu0 0.0
    %343 = vmatpush1.xpose.msra.mxu0 0.0
    %344 = vmatprep.subr.mxu0 0.0
    %345 = vmatpush1.xpose.msra.mxu0 0.0
    %346 = vmatprep.subr.mxu0 0.0
    %347 = vmatpush1.xpose.msra.mxu0 0.0
    %348 = vmatprep.subr.mxu0 0.0
    %349 = vmatpush1.xpose.msra.mxu0 0.0
    %350 = vmatprep.subr.mxu0 0.0
    %351 = vmatpush1.xpose.msra.mxu0 0.0
    %352 = vmatprep.subr.mxu0 0.0
    %353 = vmatpush1.xpose.msra.mxu0 0.0
    %354 = vmatprep.subr.mxu0 0.0
    %355 = vmatpush1.xpose.msra.mxu0 0.0
    %356 = vmatprep.subr.mxu0 0.0
    %357 = vmatpush1.xpose.msra.mxu0 0.0
    %358 = vmatprep.subr.mxu0 0.0
    %359 = vmatpush1.xpose.msra.mxu0 0.0
    %360 = vmatprep.subr.mxu0 0.0
    %361 = vmatpush1.xpose.msra.mxu0 0.0
    %362 = vmatprep.subr.mxu0 0.0
    %363 = vmatpush1.xpose.msra.mxu0 0.0
    %364 = vmatprep.subr.mxu0 0.0
    %365 = vmatpush1.xpose.msra.mxu0 0.0
    %366 = vmatprep.subr.mxu0 0.0
    %367 = vmatpush1.xpose.msra.mxu0 0.0
    %368 = vmatprep.subr.mxu0 0.0
    %369 = vmatpush1.xpose.msra.mxu0 0.0
    %370 = vmatprep.subr.mxu0 0.0
    %371 = vmatpush1.xpose.msra.mxu0 0.0
    %372 = vmatprep.subr.mxu0 0.0
    %373 = vmatpush1.xpose.msra.mxu0 0.0
    %374 = vmatprep.subr.mxu0 0.0
    %375 = vmatpush1.xpose.msra.mxu0 0.0
    %376 = vmatprep.mubr.f32.mxu0 0.0
    %377 = vmatmul.mubr.f32.gmra.mrb[0].mxu0 %v308
    %v378 = vpop.f32.mrb[0].mxu0
    %v379 = vadd.f32 0.0, %v378
    %v380 = vpop.f32.mrb[0].mxu0
    %381 = vdwg.mxu0
    %382 = vrot.lane.b32.xlu0 %v223, 80
    %v383 = vpop.permute.xlu0 %382
    %v384 = vsel %vm231, %v223, 0
    %v386 = vsel %vm231, %v383, 0
    %388 = vmatprep.subr.mxu0 0.0
    %389 = vmatpush1.xpose.msra.mxu0 %v386
    %390 = vmatprep.subr.mxu0 0.0
    %391 = vmatpush1.xpose.msra.mxu0 0.0
    %392 = vmatprep.subr.mxu0 0.0
    %393 = vmatpush1.xpose.msra.mxu0 0.0
    %394 = vmatprep.subr.mxu0 0.0
    %395 = vmatpush1.xpose.msra.mxu0 0.0
    %396 = vmatprep.subr.mxu0 0.0
    %397 = vmatpush1.xpose.msra.mxu0 0.0
    %398 = vmatprep.subr.mxu0 0.0
    %399 = vmatpush1.xpose.msra.mxu0 0.0
    %400 = vmatprep.subr.mxu0 0.0
    %401 = vmatpush1.xpose.msra.mxu0 0.0
    %402 = vmatprep.subr.mxu0 0.0
    %403 = vmatpush1.xpose.msra.mxu0 0.0
    %404 = vmatprep.subr.mxu0 0.0
    %405 = vmatpush1.xpose.msra.mxu0 0.0
    %406 = vmatprep.subr.mxu0 0.0
    %407 = vmatpush1.xpose.msra.mxu0 0.0
    %408 = vmatprep.subr.mxu0 0.0
    %409 = vmatpush1.xpose.msra.mxu0 0.0
    %410 = vmatprep.subr.mxu0 0.0
    %411 = vmatpush1.xpose.msra.mxu0 0.0
    %412 = vmatprep.subr.mxu0 0.0
    %413 = vmatpush1.xpose.msra.mxu0 0.0
    %414 = vmatprep.subr.mxu0 0.0
    %415 = vmatpush1.xpose.msra.mxu0 0.0
    %416 = vmatprep.subr.mxu0 0.0
    %417 = vmatpush1.xpose.msra.mxu0 0.0
    %418 = vmatprep.subr.mxu0 0.0
    %419 = vmatpush1.xpose.msra.mxu0 0.0
    %420 = vmatprep.subr.mxu0 0.0
    %421 = vmatpush1.xpose.msra.mxu0 0.0
    %422 = vmatprep.subr.mxu0 0.0
    %423 = vmatpush1.xpose.msra.mxu0 0.0
    %424 = vmatprep.subr.mxu0 0.0
    %425 = vmatpush1.xpose.msra.mxu0 0.0
    %426 = vmatprep.subr.mxu0 0.0
    %427 = vmatpush1.xpose.msra.mxu0 0.0
    %428 = vmatprep.subr.mxu0 0.0
    %429 = vmatpush1.xpose.msra.mxu0 0.0
    %430 = vmatprep.subr.mxu0 0.0
    %431 = vmatpush1.xpose.msra.mxu0 0.0
    %432 = vmatprep.subr.mxu0 0.0
    %433 = vmatpush1.xpose.msra.mxu0 0.0
    %434 = vmatprep.subr.mxu0 0.0
    %435 = vmatpush1.xpose.msra.mxu0 0.0
    %436 = vmatprep.subr.mxu0 0.0
    %437 = vmatpush1.xpose.msra.mxu0 0.0
    %438 = vmatprep.subr.mxu0 0.0
    %439 = vmatpush1.xpose.msra.mxu0 0.0
    %440 = vmatprep.subr.mxu0 0.0
    %441 = vmatpush1.xpose.msra.mxu0 0.0
    %442 = vmatprep.subr.mxu0 0.0
    %443 = vmatpush1.xpose.msra.mxu0 0.0
    %444 = vmatprep.subr.mxu0 0.0
    %445 = vmatpush1.xpose.msra.mxu0 0.0
    %446 = vmatprep.subr.mxu0 0.0
    %447 = vmatpush1.xpose.msra.mxu0 0.0
    %448 = vmatprep.subr.mxu0 0.0
    %449 = vmatpush1.xpose.msra.mxu0 0.0
    %450 = vmatprep.subr.mxu0 0.0
    %451 = vmatpush1.xpose.msra.mxu0 0.0
    %452 = vmatprep.mubr.f32.mxu0 0.0
    %453 = vmatmul.mubr.f32.gmra.mrb[0].mxu0 %v384
    %v454 = vpop.f32.mrb[0].mxu0
    %v455 = vadd.f32 0.0, %v454
    %v456 = vpop.f32.mrb[0].mxu0
    %457 = vdwg.mxu0
    %458 = vrot.lane.b32.xlu0 %v224, 80
    %v459 = vpop.permute.xlu0 %458
    %v460 = vsel %vm231, %v224, 0
    %v462 = vsel %vm231, %v459, 0
    %464 = vmatprep.subr.mxu0 0.0
    %465 = vmatpush1.xpose.msra.mxu0 %v462
    %466 = vmatprep.subr.mxu0 0.0
    %467 = vmatpush1.xpose.msra.mxu0 0.0
    %468 = vmatprep.subr.mxu0 0.0
    %469 = vmatpush1.xpose.msra.mxu0 0.0
    %470 = vmatprep.subr.mxu0 0.0
    %471 = vmatpush1.xpose.msra.mxu0 0.0
    %472 = vmatprep.subr.mxu0 0.0
    %473 = vmatpush1.xpose.msra.mxu0 0.0
    %474 = vmatprep.subr.mxu0 0.0
    %475 = vmatpush1.xpose.msra.mxu0 0.0
    %476 = vmatprep.subr.mxu0 0.0
    %477 = vmatpush1.xpose.msra.mxu0 0.0
    %478 = vmatprep.subr.mxu0 0.0
    %479 = vmatpush1.xpose.msra.mxu0 0.0
    %480 = vmatprep.subr.mxu0 0.0
    %481 = vmatpush1.xpose.msra.mxu0 0.0
    %482 = vmatprep.subr.mxu0 0.0
    %483 = vmatpush1.xpose.msra.mxu0 0.0
    %484 = vmatprep.subr.mxu0 0.0
    %485 = vmatpush1.xpose.msra.mxu0 0.0
    %486 = vmatprep.subr.mxu0 0.0
    %487 = vmatpush1.xpose.msra.mxu0 0.0
    %488 = vmatprep.subr.mxu0 0.0
    %489 = vmatpush1.xpose.msra.mxu0 0.0
    %490 = vmatprep.subr.mxu0 0.0
    %491 = vmatpush1.xpose.msra.mxu0 0.0
    %492 = vmatprep.subr.mxu0 0.0
    %493 = vmatpush1.xpose.msra.mxu0 0.0
    %494 = vmatprep.subr.mxu0 0.0
    %495 = vmatpush1.xpose.msra.mxu0 0.0
    %496 = vmatprep.subr.mxu0 0.0
    %497 = vmatpush1.xpose.msra.mxu0 0.0
    %498 = vmatprep.subr.mxu0 0.0
    %499 = vmatpush1.xpose.msra.mxu0 0.0
    %500 = vmatprep.subr.mxu0 0.0
    %501 = vmatpush1.xpose.msra.mxu0 0.0
    %502 = vmatprep.subr.mxu0 0.0
    %503 = vmatpush1.xpose.msra.mxu0 0.0
    %504 = vmatprep.subr.mxu0 0.0
    %505 = vmatpush1.xpose.msra.mxu0 0.0
    %506 = vmatprep.subr.mxu0 0.0
    %507 = vmatpush1.xpose.msra.mxu0 0.0
    %508 = vmatprep.subr.mxu0 0.0
    %509 = vmatpush1.xpose.msra.mxu0 0.0
    %510 = vmatprep.subr.mxu0 0.0
    %511 = vmatpush1.xpose.msra.mxu0 0.0
    %512 = vmatprep.subr.mxu0 0.0
    %513 = vmatpush1.xpose.msra.mxu0 0.0
    %514 = vmatprep.subr.mxu0 0.0
    %515 = vmatpush1.xpose.msra.mxu0 0.0
    %516 = vmatprep.subr.mxu0 0.0
    %517 = vmatpush1.xpose.msra.mxu0 0.0
    %518 = vmatprep.subr.mxu0 0.0
    %519 = vmatpush1.xpose.msra.mxu0 0.0
    %520 = vmatprep.subr.mxu0 0.0
    %521 = vmatpush1.xpose.msra.mxu0 0.0
    %522 = vmatprep.subr.mxu0 0.0
    %523 = vmatpush1.xpose.msra.mxu0 0.0
    %524 = vmatprep.subr.mxu0 0.0
    %525 = vmatpush1.xpose.msra.mxu0 0.0
    %526 = vmatprep.subr.mxu0 0.0
    %527 = vmatpush1.xpose.msra.mxu0 0.0
    %528 = vmatprep.mubr.f32.mxu0 0.0
    %529 = vmatmul.mubr.f32.gmra.mrb[0].mxu0 %v460
    %v530 = vpop.f32.mrb[0].mxu0
    %v531 = vadd.f32 0.0, %v530
    %v532 = vpop.f32.mrb[0].mxu0
    %533 = vdwg.mxu0
    %534 = vrot.lane.b32.xlu0 %v225, 80
    %v535 = vpop.permute.xlu0 %534
    %v536 = vsel %vm231, %v225, 0
    %v538 = vsel %vm231, %v535, 0
    %540 = vmatprep.subr.mxu0 0.0
    %541 = vmatpush1.xpose.msra.mxu0 %v538
    %542 = vmatprep.subr.mxu0 0.0
    %543 = vmatpush1.xpose.msra.mxu0 0.0
    %544 = vmatprep.subr.mxu0 0.0
    %545 = vmatpush1.xpose.msra.mxu0 0.0
    %546 = vmatprep.subr.mxu0 0.0
    %547 = vmatpush1.xpose.msra.mxu0 0.0
    %548 = vmatprep.subr.mxu0 0.0
    %549 = vmatpush1.xpose.msra.mxu0 0.0
    %550 = vmatprep.subr.mxu0 0.0
    %551 = vmatpush1.xpose.msra.mxu0 0.0
    %552 = vmatprep.subr.mxu0 0.0
    %553 = vmatpush1.xpose.msra.mxu0 0.0
    %554 = vmatprep.subr.mxu0 0.0
    %555 = vmatpush1.xpose.msra.mxu0 0.0
    %556 = vmatprep.subr.mxu0 0.0
    %557 = vmatpush1.xpose.msra.mxu0 0.0
    %558 = vmatprep.subr.mxu0 0.0
    %559 = vmatpush1.xpose.msra.mxu0 0.0
    %560 = vmatprep.subr.mxu0 0.0
    %561 = vmatpush1.xpose.msra.mxu0 0.0
    %562 = vmatprep.subr.mxu0 0.0
    %563 = vmatpush1.xpose.msra.mxu0 0.0
    %564 = vmatprep.subr.mxu0 0.0
    %565 = vmatpush1.xpose.msra.mxu0 0.0
    %566 = vmatprep.subr.mxu0 0.0
    %567 = vmatpush1.xpose.msra.mxu0 0.0
    %568 = vmatprep.subr.mxu0 0.0
    %569 = vmatpush1.xpose.msra.mxu0 0.0
    %570 = vmatprep.subr.mxu0 0.0
    %571 = vmatpush1.xpose.msra.mxu0 0.0
    %572 = vmatprep.subr.mxu0 0.0
    %573 = vmatpush1.xpose.msra.mxu0 0.0
    %574 = vmatprep.subr.mxu0 0.0
    %575 = vmatpush1.xpose.msra.mxu0 0.0
    %576 = vmatprep.subr.mxu0 0.0
    %577 = vmatpush1.xpose.msra.mxu0 0.0
    %578 = vmatprep.subr.mxu0 0.0
    %579 = vmatpush1.xpose.msra.mxu0 0.0
    %580 = vmatprep.subr.mxu0 0.0
    %581 = vmatpush1.xpose.msra.mxu0 0.0
    %582 = vmatprep.subr.mxu0 0.0
    %583 = vmatpush1.xpose.msra.mxu0 0.0
    %584 = vmatprep.subr.mxu0 0.0
    %585 = vmatpush1.xpose.msra.mxu0 0.0
    %586 = vmatprep.subr.mxu0 0.0
    %587 = vmatpush1.xpose.msra.mxu0 0.0
    %588 = vmatprep.subr.mxu0 0.0
    %589 = vmatpush1.xpose.msra.mxu0 0.0
    %590 = vmatprep.subr.mxu0 0.0
    %591 = vmatpush1.xpose.msra.mxu0 0.0
    %592 = vmatprep.subr.mxu0 0.0
    %593 = vmatpush1.xpose.msra.mxu0 0.0
    %594 = vmatprep.subr.mxu0 0.0
    %595 = vmatpush1.xpose.msra.mxu0 0.0
    %596 = vmatprep.subr.mxu0 0.0
    %597 = vmatpush1.xpose.msra.mxu0 0.0
    %598 = vmatprep.subr.mxu0 0.0
    %599 = vmatpush1.xpose.msra.mxu0 0.0
    %600 = vmatprep.subr.mxu0 0.0
    %601 = vmatpush1.xpose.msra.mxu0 0.0
    %602 = vmatprep.subr.mxu0 0.0
    %603 = vmatpush1.xpose.msra.mxu0 0.0
    %604 = vmatprep.mubr.f32.mxu0 0.0
    %605 = vmatmul.mubr.f32.gmra.mrb[0].mxu0 %v536
    %v606 = vpop.f32.mrb[0].mxu0
    %v607 = vadd.f32 0.0, %v606
    %v608 = vpop.f32.mrb[0].mxu0
    %609 = vdwg.mxu0
    %610 = vrot.lane.b32.xlu0 %v226, 80
    %v611 = vpop.permute.xlu0 %610
    %v612 = vsel %vm231, %v226, 0
    %v614 = vsel %vm231, %v611, 0
    %616 = vmatprep.subr.mxu0 0.0
    %617 = vmatpush1.xpose.msra.mxu0 %v614
    %618 = vmatprep.subr.mxu0 0.0
    %619 = vmatpush1.xpose.msra.mxu0 0.0
    %620 = vmatprep.subr.mxu0 0.0
    %621 = vmatpush1.xpose.msra.mxu0 0.0
    %622 = vmatprep.subr.mxu0 0.0
    %623 = vmatpush1.xpose.msra.mxu0 0.0
    %624 = vmatprep.subr.mxu0 0.0
    %625 = vmatpush1.xpose.msra.mxu0 0.0
    %626 = vmatprep.subr.mxu0 0.0
    %627 = vmatpush1.xpose.msra.mxu0 0.0
    %628 = vmatprep.subr.mxu0 0.0
    %629 = vmatpush1.xpose.msra.mxu0 0.0
    %630 = vmatprep.subr.mxu0 0.0
    %631 = vmatpush1.xpose.msra.mxu0 0.0
    %632 = vmatprep.subr.mxu0 0.0
    %633 = vmatpush1.xpose.msra.mxu0 0.0
    %634 = vmatprep.subr.mxu0 0.0
    %635 = vmatpush1.xpose.msra.mxu0 0.0
    %636 = vmatprep.subr.mxu0 0.0
    %637 = vmatpush1.xpose.msra.mxu0 0.0
    %638 = vmatprep.subr.mxu0 0.0
    %639 = vmatpush1.xpose.msra.mxu0 0.0
    %640 = vmatprep.subr.mxu0 0.0
    %641 = vmatpush1.xpose.msra.mxu0 0.0
    %642 = vmatprep.subr.mxu0 0.0
    %643 = vmatpush1.xpose.msra.mxu0 0.0
    %644 = vmatprep.subr.mxu0 0.0
    %645 = vmatpush1.xpose.msra.mxu0 0.0
    %646 = vmatprep.subr.mxu0 0.0
    %647 = vmatpush1.xpose.msra.mxu0 0.0
    %648 = vmatprep.subr.mxu0 0.0
    %649 = vmatpush1.xpose.msra.mxu0 0.0
    %650 = vmatprep.subr.mxu0 0.0
    %651 = vmatpush1.xpose.msra.mxu0 0.0
    %652 = vmatprep.subr.mxu0 0.0
    %653 = vmatpush1.xpose.msra.mxu0 0.0
    %654 = vmatprep.subr.mxu0 0.0
    %655 = vmatpush1.xpose.msra.mxu0 0.0
    %656 = vmatprep.subr.mxu0 0.0
    %657 = vmatpush1.xpose.msra.mxu0 0.0
    %658 = vmatprep.subr.mxu0 0.0
    %659 = vmatpush1.xpose.msra.mxu0 0.0
    %660 = vmatprep.subr.mxu0 0.0
    %661 = vmatpush1.xpose.msra.mxu0 0.0
    %662 = vmatprep.subr.mxu0 0.0
    %663 = vmatpush1.xpose.msra.mxu0 0.0
    %664 = vmatprep.subr.mxu0 0.0
    %665 = vmatpush1.xpose.msra.mxu0 0.0
    %666 = vmatprep.subr.mxu0 0.0
    %667 = vmatpush1.xpose.msra.mxu0 0.0
    %668 = vmatprep.subr.mxu0 0.0
    %669 = vmatpush1.xpose.msra.mxu0 0.0
    %670 = vmatprep.subr.mxu0 0.0
    %671 = vmatpush1.xpose.msra.mxu0 0.0
    %672 = vmatprep.subr.mxu0 0.0
    %673 = vmatpush1.xpose.msra.mxu0 0.0
    %674 = vmatprep.subr.mxu0 0.0
    %675 = vmatpush1.xpose.msra.mxu0 0.0
    %676 = vmatprep.subr.mxu0 0.0
    %677 = vmatpush1.xpose.msra.mxu0 0.0
    %678 = vmatprep.subr.mxu0 0.0
    %679 = vmatpush1.xpose.msra.mxu0 0.0
    %680 = vmatprep.mubr.f32.mxu0 0.0
    %681 = vmatmul.mubr.f32.gmra.mrb[0].mxu0 %v612
    %v682 = vpop.f32.mrb[0].mxu0
    %v683 = vadd.f32 0.0, %v682
    %v684 = vpop.f32.mrb[0].mxu0
    %685 = vdwg.mxu0
    %686 = vrot.lane.b32.xlu0 %v227, 80
    %v687 = vpop.permute.xlu0 %686
    %v688 = vsel %vm231, %v227, 0
    %v690 = vsel %vm231, %v687, 0
    %692 = vmatprep.subr.mxu0 0.0
    %693 = vmatpush1.xpose.msra.mxu0 %v690
    %694 = vmatprep.subr.mxu0 0.0
    %695 = vmatpush1.xpose.msra.mxu0 0.0
    %696 = vmatprep.subr.mxu0 0.0
    %697 = vmatpush1.xpose.msra.mxu0 0.0
    %698 = vmatprep.subr.mxu0 0.0
    %699 = vmatpush1.xpose.msra.mxu0 0.0
    %700 = vmatprep.subr.mxu0 0.0
    %701 = vmatpush1.xpose.msra.mxu0 0.0
    %702 = vmatprep.subr.mxu0 0.0
    %703 = vmatpush1.xpose.msra.mxu0 0.0
    %704 = vmatprep.subr.mxu0 0.0
    %705 = vmatpush1.xpose.msra.mxu0 0.0
    %706 = vmatprep.subr.mxu0 0.0
    %707 = vmatpush1.xpose.msra.mxu0 0.0
    %708 = vmatprep.subr.mxu0 0.0
    %709 = vmatpush1.xpose.msra.mxu0 0.0
    %710 = vmatprep.subr.mxu0 0.0
    %711 = vmatpush1.xpose.msra.mxu0 0.0
    %712 = vmatprep.subr.mxu0 0.0
    %713 = vmatpush1.xpose.msra.mxu0 0.0
    %714 = vmatprep.subr.mxu0 0.0
    %715 = vmatpush1.xpose.msra.mxu0 0.0
    %716 = vmatprep.subr.mxu0 0.0
    %717 = vmatpush1.xpose.msra.mxu0 0.0
    %718 = vmatprep.subr.mxu0 0.0
    %719 = vmatpush1.xpose.msra.mxu0 0.0
    %720 = vmatprep.subr.mxu0 0.0
    %721 = vmatpush1.xpose.msra.mxu0 0.0
    %722 = vmatprep.subr.mxu0 0.0
    %723 = vmatpush1.xpose.msra.mxu0 0.0
    %724 = vmatprep.subr.mxu0 0.0
    %725 = vmatpush1.xpose.msra.mxu0 0.0
    %726 = vmatprep.subr.mxu0 0.0
    %727 = vmatpush1.xpose.msra.mxu0 0.0
    %728 = vmatprep.subr.mxu0 0.0
    %729 = vmatpush1.xpose.msra.mxu0 0.0
    %730 = vmatprep.subr.mxu0 0.0
    %731 = vmatpush1.xpose.msra.mxu0 0.0
    %732 = vmatprep.subr.mxu0 0.0
    %733 = vmatpush1.xpose.msra.mxu0 0.0
    %734 = vmatprep.subr.mxu0 0.0
    %735 = vmatpush1.xpose.msra.mxu0 0.0
    %736 = vmatprep.subr.mxu0 0.0
    %737 = vmatpush1.xpose.msra.mxu0 0.0
    %738 = vmatprep.subr.mxu0 0.0
    %739 = vmatpush1.xpose.msra.mxu0 0.0
    %740 = vmatprep.subr.mxu0 0.0
    %741 = vmatpush1.xpose.msra.mxu0 0.0
    %742 = vmatprep.subr.mxu0 0.0
    %743 = vmatpush1.xpose.msra.mxu0 0.0
    %744 = vmatprep.subr.mxu0 0.0
    %745 = vmatpush1.xpose.msra.mxu0 0.0
    %746 = vmatprep.subr.mxu0 0.0
    %747 = vmatpush1.xpose.msra.mxu0 0.0
    %748 = vmatprep.subr.mxu0 0.0
    %749 = vmatpush1.xpose.msra.mxu0 0.0
    %750 = vmatprep.subr.mxu0 0.0
    %751 = vmatpush1.xpose.msra.mxu0 0.0
    %752 = vmatprep.subr.mxu0 0.0
    %753 = vmatpush1.xpose.msra.mxu0 0.0
    %754 = vmatprep.subr.mxu0 0.0
    %755 = vmatpush1.xpose.msra.mxu0 0.0
    %756 = vmatprep.mubr.f32.mxu0 0.0
    %757 = vmatmul.mubr.f32.gmra.mrb[0].mxu0 %v688
    %v758 = vpop.f32.mrb[0].mxu0
    %v759 = vadd.f32 0.0, %v758
    %v760 = vpop.f32.mrb[0].mxu0
    %761 = vdwg.mxu0
    %762 = vrot.lane.b32.xlu0 %v228, 80
    %v763 = vpop.permute.xlu0 %762
    %v764 = vsel %vm231, %v228, 0
    %v766 = vsel %vm231, %v763, 0
    %768 = vmatprep.subr.mxu0 0.0
    %769 = vmatpush1.xpose.msra.mxu0 %v766
    %770 = vmatprep.subr.mxu0 0.0
    %771 = vmatpush1.xpose.msra.mxu0 0.0
    %772 = vmatprep.subr.mxu0 0.0
    %773 = vmatpush1.xpose.msra.mxu0 0.0
    %774 = vmatprep.subr.mxu0 0.0
    %775 = vmatpush1.xpose.msra.mxu0 0.0
    %776 = vmatprep.subr.mxu0 0.0
    %777 = vmatpush1.xpose.msra.mxu0 0.0
    %778 = vmatprep.subr.mxu0 0.0
    %779 = vmatpush1.xpose.msra.mxu0 0.0
    %780 = vmatprep.subr.mxu0 0.0
    %781 = vmatpush1.xpose.msra.mxu0 0.0
    %782 = vmatprep.subr.mxu0 0.0
    %783 = vmatpush1.xpose.msra.mxu0 0.0
    %784 = vmatprep.subr.mxu0 0.0
    %785 = vmatpush1.xpose.msra.mxu0 0.0
    %786 = vmatprep.subr.mxu0 0.0
    %787 = vmatpush1.xpose.msra.mxu0 0.0
    %788 = vmatprep.subr.mxu0 0.0
    %789 = vmatpush1.xpose.msra.mxu0 0.0
    %790 = vmatprep.subr.mxu0 0.0
    %791 = vmatpush1.xpose.msra.mxu0 0.0
    %792 = vmatprep.subr.mxu0 0.0
    %793 = vmatpush1.xpose.msra.mxu0 0.0
    %794 = vmatprep.subr.mxu0 0.0
    %795 = vmatpush1.xpose.msra.mxu0 0.0
    %796 = vmatprep.subr.mxu0 0.0
    %797 = vmatpush1.xpose.msra.mxu0 0.0
    %798 = vmatprep.subr.mxu0 0.0
    %799 = vmatpush1.xpose.msra.mxu0 0.0
    %800 = vmatprep.subr.mxu0 0.0
    %801 = vmatpush1.xpose.msra.mxu0 0.0
    %802 = vmatprep.subr.mxu0 0.0
    %803 = vmatpush1.xpose.msra.mxu0 0.0
    %804 = vmatprep.subr.mxu0 0.0
    %805 = vmatpush1.xpose.msra.mxu0 0.0
    %806 = vmatprep.subr.mxu0 0.0
    %807 = vmatpush1.xpose.msra.mxu0 0.0
    %808 = vmatprep.subr.mxu0 0.0
    %809 = vmatpush1.xpose.msra.mxu0 0.0
    %810 = vmatprep.subr.mxu0 0.0
    %811 = vmatpush1.xpose.msra.mxu0 0.0
    %812 = vmatprep.subr.mxu0 0.0
    %813 = vmatpush1.xpose.msra.mxu0 0.0
    %814 = vmatprep.subr.mxu0 0.0
    %815 = vmatpush1.xpose.msra.mxu0 0.0
    %816 = vmatprep.subr.mxu0 0.0
    %817 = vmatpush1.xpose.msra.mxu0 0.0
    %818 = vmatprep.subr.mxu0 0.0
    %819 = vmatpush1.xpose.msra.mxu0 0.0
    %820 = vmatprep.subr.mxu0 0.0
    %821 = vmatpush1.xpose.msra.mxu0 0.0
    %822 = vmatprep.subr.mxu0 0.0
    %823 = vmatpush1.xpose.msra.mxu0 0.0
    %824 = vmatprep.subr.mxu0 0.0
    %825 = vmatpush1.xpose.msra.mxu0 0.0
    %826 = vmatprep.subr.mxu0 0.0
    %827 = vmatpush1.xpose.msra.mxu0 0.0
    %828 = vmatprep.subr.mxu0 0.0
    %829 = vmatpush1.xpose.msra.mxu0 0.0
    %830 = vmatprep.subr.mxu0 0.0
    %831 = vmatpush1.xpose.msra.mxu0 0.0
    %832 = vmatprep.mubr.f32.mxu0 0.0
    %833 = vmatmul.mubr.f32.gmra.mrb[0].mxu0 %v764
    %v834 = vpop.f32.mrb[0].mxu0
    %v835 = vadd.f32 0.0, %v834
    %v836 = vpop.f32.mrb[0].mxu0
    %837 = vdwg.mxu0
    %v838 = vmul.f32 %v303, 0.25
    %v839 = vmul.f32 %v379, 0.25
    %v840 = vmul.f32 %v455, 0.25
    %v841 = vmul.f32 %v531, 0.25
    %v842 = vmul.f32 %v607, 0.25
    %v843 = vmul.f32 %v683, 0.25
    %v844 = vmul.f32 %v759, 0.25
    %v845 = vmul.f32 %v835, 0.25
    %vm846 = vcmask 27648
    %v847 = vsel %vm846, %v838, -inf
    %848 = vmax.xlane.f32.xlu0 %v847
    %v849 = vpop.xlane.xlu0 %848
    %v850 = vsel %vm846, %v839, -inf
    %851 = vmax.xlane.f32.xlu0 %v850
    %v852 = vpop.xlane.xlu0 %851
    %v853 = vsel %vm846, %v840, -inf
    %854 = vmax.xlane.f32.xlu0 %v853
    %v855 = vpop.xlane.xlu0 %854
    %v856 = vsel %vm846, %v841, -inf
    %857 = vmax.xlane.f32.xlu0 %v856
    %v858 = vpop.xlane.xlu0 %857
    %v859 = vsel %vm846, %v842, -inf
    %860 = vmax.xlane.f32.xlu0 %v859
    %v861 = vpop.xlane.xlu0 %860
    %v862 = vsel %vm846, %v843, -inf
    %863 = vmax.xlane.f32.xlu0 %v862
    %v864 = vpop.xlane.xlu0 %863
    %v865 = vsel %vm846, %v844, -inf
    %866 = vmax.xlane.f32.xlu0 %v865
    %v867 = vpop.xlane.xlu0 %866
    %v868 = vsel %vm846, %v845, -inf
    %869 = vmax.xlane.f32.xlu0 %v868
    %v870 = vpop.xlane.xlu0 %869
    %v871 = vsub.f32 %v838, %v849
    %v872 = vsub.f32 %v839, %v852
    %v873 = vsub.f32 %v840, %v855
    %v874 = vsub.f32 %v841, %v858
    %v875 = vsub.f32 %v842, %v861
    %v876 = vsub.f32 %v843, %v864
    %v877 = vsub.f32 %v844, %v867
    %v878 = vsub.f32 %v845, %v870
    %v879 = vmul.f32 %v871, 1.442695
    %v880 = vpow.pop %v879
    %v881 = vmul.f32 %v872, 1.442695
    %v882 = vpow.pop %v881
    %v883 = vmul.f32 %v873, 1.442695
    %v884 = vpow.pop %v883
    %v885 = vmul.f32 %v874, 1.442695
    %v886 = vpow.pop %v885
    %v887 = vmul.f32 %v875, 1.442695
    %v888 = vpow.pop %v887
    %v889 = vmul.f32 %v876, 1.442695
    %v890 = vpow.pop %v889
    %v891 = vmul.f32 %v877, 1.442695
    %v892 = vpow.pop %v891
    %v893 = vmul.f32 %v878, 1.442695
    %v894 = vpow.pop %v893
    %v895 = vsel %vm846, %v880, 0.0
    %896 = vadd.xlane.f32.xlu0 %v895
    %v897 = vpop.xlane.xlu0 %896
    %v898 = vsel %vm846, %v882, 0.0
    %899 = vadd.xlane.f32.xlu0 %v898
    %v900 = vpop.xlane.xlu0 %899
    %v901 = vsel %vm846, %v884, 0.0
    %902 = vadd.xlane.f32.xlu0 %v901
    %v903 = vpop.xlane.xlu0 %902
    %v904 = vsel %vm846, %v886, 0.0
    %905 = vadd.xlane.f32.xlu0 %v904
    %v906 = vpop.xlane.xlu0 %905
    %v907 = vsel %vm846, %v888, 0.0
    %908 = vadd.xlane.f32.xlu0 %v907
    %v909 = vpop.xlane.xlu0 %908
    %v910 = vsel %vm846, %v890, 0.0
    %911 = vadd.xlane.f32.xlu0 %v910
    %v912 = vpop.xlane.xlu0 %911
    %v913 = vsel %vm846, %v892, 0.0
    %914 = vadd.xlane.f32.xlu0 %v913
    %v915 = vpop.xlane.xlu0 %914
    %v916 = vsel %vm846, %v894, 0.0
    %917 = vadd.xlane.f32.xlu0 %v916
    %v918 = vpop.xlane.xlu0 %917
    %v919 = vrcp.pop %v897
    %v920 = vrcp.pop %v900
    %v921 = vrcp.pop %v903
    %v922 = vrcp.pop %v906
    %v923 = vrcp.pop %v909
    %v924 = vrcp.pop %v912
    %v925 = vrcp.pop %v915
    %v926 = vrcp.pop %v918
    %v927 = vmul.f32 %v880, %v919
    %v928 = vmul.f32 %v882, %v920
    %v929 = vmul.f32 %v884, %v921
    %v930 = vmul.f32 %v886, %v922
    %v931 = vmul.f32 %v888, %v923
    %v932 = vmul.f32 %v890, %v924
    %v933 = vmul.f32 %v892, %v925
    %v934 = vmul.f32 %v894, %v926
    %935 = vrot.lane.b32.xlu0 %v221, 32
    %v936 = vpop.permute.xlu0 %935
    %vm937 = vcmask 31744
    %v939 = vsel %vm937, %v927, 0
    %vm941 = vcmask 1043456
    %v942 = vsel %vm941, %v936, 0
    %944 = vmatprep.subr.mxu0 0.0
    %945 = vmatpush1.msra.mxu0 %v942
    %946 = vmatprep.subr.mxu0 0.0
    %947 = vmatpush1.msra.mxu0 0.0
    %948 = vmatprep.subr.mxu0 0.0
    %949 = vmatpush1.msra.mxu0 0.0
    %950 = vmatprep.subr.mxu0 0.0
    %951 = vmatpush1.msra.mxu0 0.0
    %952 = vmatprep.subr.mxu0 0.0
    %953 = vmatpush1.msra.mxu0 0.0
    %954 = vmatprep.subr.mxu0 0.0
    %955 = vmatpush1.msra.mxu0 0.0
    %956 = vmatprep.subr.mxu0 0.0
    %957 = vmatpush1.msra.mxu0 0.0
    %958 = vmatprep.subr.mxu0 0.0
    %959 = vmatpush1.msra.mxu0 0.0
    %960 = vmatprep.subr.mxu0 0.0
    %961 = vmatpush1.msra.mxu0 0.0
    %962 = vmatprep.subr.mxu0 0.0
    %963 = vmatpush1.msra.mxu0 0.0
    %964 = vmatprep.subr.mxu0 0.0
    %965 = vmatpush1.msra.mxu0 0.0
    %966 = vmatprep.subr.mxu0 0.0
    %967 = vmatpush1.msra.mxu0 0.0
    %968 = vmatprep.subr.mxu0 0.0
    %969 = vmatpush1.msra.mxu0 0.0
    %970 = vmatprep.subr.mxu0 0.0
    %971 = vmatpush1.msra.mxu0 0.0
    %972 = vmatprep.subr.mxu0 0.0
    %973 = vmatpush1.msra.mxu0 0.0
    %974 = vmatprep.subr.mxu0 0.0
    %975 = vmatpush1.msra.mxu0 0.0
    %976 = vmatprep.subr.mxu0 0.0
    %977 = vmatpush1.msra.mxu0 0.0
    %978 = vmatprep.subr.mxu0 0.0
    %979 = vmatpush1.msra.mxu0 0.0
    %980 = vmatprep.subr.mxu0 0.0
    %981 = vmatpush1.msra.mxu0 0.0
    %982 = vmatprep.subr.mxu0 0.0
    %983 = vmatpush1.msra.mxu0 0.0
    %984 = vmatprep.subr.mxu0 0.0
    %985 = vmatpush1.msra.mxu0 0.0
    %986 = vmatprep.subr.mxu0 0.0
    %987 = vmatpush1.msra.mxu0 0.0
    %988 = vmatprep.subr.mxu0 0.0
    %989 = vmatpush1.msra.mxu0 0.0
    %990 = vmatprep.subr.mxu0 0.0
    %991 = vmatpush1.msra.mxu0 0.0
    %992 = vmatprep.subr.mxu0 0.0
    %993 = vmatpush1.msra.mxu0 0.0
    %994 = vmatprep.subr.mxu0 0.0
    %995 = vmatpush1.msra.mxu0 0.0
    %996 = vmatprep.subr.mxu0 0.0
    %997 = vmatpush1.msra.mxu0 0.0
    %998 = vmatprep.subr.mxu0 0.0
    %999 = vmatpush1.msra.mxu0 0.0
    %1000 = vmatprep.subr.mxu0 0.0
    %1001 = vmatpush1.msra.mxu0 0.0
    %1002 = vmatprep.subr.mxu0 0.0
    %1003 = vmatpush1.msra.mxu0 0.0
    %1004 = vmatprep.subr.mxu0 0.0
    %1005 = vmatpush1.msra.mxu0 0.0
    %1006 = vmatprep.subr.mxu0 0.0
    %1007 = vmatpush1.msra.mxu0 0.0
    %1008 = vmatprep.mubr.f32.mxu0 0.0
    %1009 = vmatmul.mubr.f32.gmra.mrb[0].mxu0 %v939
    %v1010 = vpop.f32.mrb[0].mxu0
    %v1011 = vadd.f32 0.0, %v1010
    %v1012 = vpop.f32.mrb[0].mxu0
    %1013 = vdwg.mxu0
    %1014 = vrot.lane.b32.xlu0 %v222, 32
    %v1015 = vpop.permute.xlu0 %1014
    %v1017 = vsel %vm937, %v928, 0
    %v1019 = vsel %vm941, %v1015, 0
    %1021 = vmatprep.subr.mxu0 0.0
    %1022 = vmatpush1.msra.mxu0 %v1019
    %1023 = vmatprep.subr.mxu0 0.0
    %1024 = vmatpush1.msra.mxu0 0.0
    %1025 = vmatprep.subr.mxu0 0.0
    %1026 = vmatpush1.msra.mxu0 0.0
    %1027 = vmatprep.subr.mxu0 0.0
    %1028 = vmatpush1.msra.mxu0 0.0
    %1029 = vmatprep.subr.mxu0 0.0
    %1030 = vmatpush1.msra.mxu0 0.0
    %1031 = vmatprep.subr.mxu0 0.0
    %1032 = vmatpush1.msra.mxu0 0.0
    %1033 = vmatprep.subr.mxu0 0.0
    %1034 = vmatpush1.msra.mxu0 0.0
    %1035 = vmatprep.subr.mxu0 0.0
    %1036 = vmatpush1.msra.mxu0 0.0
    %1037 = vmatprep.subr.mxu0 0.0
    %1038 = vmatpush1.msra.mxu0 0.0
    %1039 = vmatprep.subr.mxu0 0.0
    %1040 = vmatpush1.msra.mxu0 0.0
    %1041 = vmatprep.subr.mxu0 0.0
    %1042 = vmatpush1.msra.mxu0 0.0
    %1043 = vmatprep.subr.mxu0 0.0
    %1044 = vmatpush1.msra.mxu0 0.0
    %1045 = vmatprep.subr.mxu0 0.0
    %1046 = vmatpush1.msra.mxu0 0.0
    %1047 = vmatprep.subr.mxu0 0.0
    %1048 = vmatpush1.msra.mxu0 0.0
    %1049 = vmatprep.subr.mxu0 0.0
    %1050 = vmatpush1.msra.mxu0 0.0
    %1051 = vmatprep.subr.mxu0 0.0
    %1052 = vmatpush1.msra.mxu0 0.0
    %1053 = vmatprep.subr.mxu0 0.0
    %1054 = vmatpush1.msra.mxu0 0.0
    %1055 = vmatprep.subr.mxu0 0.0
    %1056 = vmatpush1.msra.mxu0 0.0
    %1057 = vmatprep.subr.mxu0 0.0
    %1058 = vmatpush1.msra.mxu0 0.0
    %1059 = vmatprep.subr.mxu0 0.0
    %1060 = vmatpush1.msra.mxu0 0.0
    %1061 = vmatprep.subr.mxu0 0.0
    %1062 = vmatpush1.msra.mxu0 0.0
    %1063 = vmatprep.subr.mxu0 0.0
    %1064 = vmatpush1.msra.mxu0 0.0
    %1065 = vmatprep.subr.mxu0 0.0
    %1066 = vmatpush1.msra.mxu0 0.0
    %1067 = vmatprep.subr.mxu0 0.0
    %1068 = vmatpush1.msra.mxu0 0.0
    %1069 = vmatprep.subr.mxu0 0.0
    %1070 = vmatpush1.msra.mxu0 0.0
    %1071 = vmatprep.subr.mxu0 0.0
    %1072 = vmatpush1.msra.mxu0 0.0
    %1073 = vmatprep.subr.mxu0 0.0
    %1074 = vmatpush1.msra.mxu0 0.0
    %1075 = vmatprep.subr.mxu0 0.0
    %1076 = vmatpush1.msra.mxu0 0.0
    %1077 = vmatprep.subr.mxu0 0.0
    %1078 = vmatpush1.msra.mxu0 0.0
    %1079 = vmatprep.subr.mxu0 0.0
    %1080 = vmatpush1.msra.mxu0 0.0
    %1081 = vmatprep.subr.mxu0 0.0
    %1082 = vmatpush1.msra.mxu0 0.0
    %1083 = vmatprep.subr.mxu0 0.0
    %1084 = vmatpush1.msra.mxu0 0.0
    %1085 = vmatprep.mubr.f32.mxu0 0.0
    %1086 = vmatmul.mubr.f32.gmra.mrb[0].mxu0 %v1017
    %v1087 = vpop.f32.mrb[0].mxu0
    %v1088 = vadd.f32 0.0, %v1087
    %v1089 = vpop.f32.mrb[0].mxu0
    %1090 = vdwg.mxu0
    %1091 = vrot.lane.b32.xlu0 %v223, 32
    %v1092 = vpop.permute.xlu0 %1091
    %v1094 = vsel %vm937, %v929, 0
    %v1096 = vsel %vm941, %v1092, 0
    %1098 = vmatprep.subr.mxu0 0.0
    %1099 = vmatpush1.msra.mxu0 %v1096
    %1100 = vmatprep.subr.mxu0 0.0
    %1101 = vmatpush1.msra.mxu0 0.0
    %1102 = vmatprep.subr.mxu0 0.0
    %1103 = vmatpush1.msra.mxu0 0.0
    %1104 = vmatprep.subr.mxu0 0.0
    %1105 = vmatpush1.msra.mxu0 0.0
    %1106 = vmatprep.subr.mxu0 0.0
    %1107 = vmatpush1.msra.mxu0 0.0
    %1108 = vmatprep.subr.mxu0 0.0
    %1109 = vmatpush1.msra.mxu0 0.0
    %1110 = vmatprep.subr.mxu0 0.0
    %1111 = vmatpush1.msra.mxu0 0.0
    %1112 = vmatprep.subr.mxu0 0.0
    %1113 = vmatpush1.msra.mxu0 0.0
    %1114 = vmatprep.subr.mxu0 0.0
    %1115 = vmatpush1.msra.mxu0 0.0
    %1116 = vmatprep.subr.mxu0 0.0
    %1117 = vmatpush1.msra.mxu0 0.0
    %1118 = vmatprep.subr.mxu0 0.0
    %1119 = vmatpush1.msra.mxu0 0.0
    %1120 = vmatprep.subr.mxu0 0.0
    %1121 = vmatpush1.msra.mxu0 0.0
    %1122 = vmatprep.subr.mxu0 0.0
    %1123 = vmatpush1.msra.mxu0 0.0
    %1124 = vmatprep.subr.mxu0 0.0
    %1125 = vmatpush1.msra.mxu0 0.0
    %1126 = vmatprep.subr.mxu0 0.0
    %1127 = vmatpush1.msra.mxu0 0.0
    %1128 = vmatprep.subr.mxu0 0.0
    %1129 = vmatpush1.msra.mxu0 0.0
    %1130 = vmatprep.subr.mxu0 0.0
    %1131 = vmatpush1.msra.mxu0 0.0
    %1132 = vmatprep.subr.mxu0 0.0
    %1133 = vmatpush1.msra.mxu0 0.0
    %1134 = vmatprep.subr.mxu0 0.0
    %1135 = vmatpush1.msra.mxu0 0.0
    %1136 = vmatprep.subr.mxu0 0.0
    %1137 = vmatpush1.msra.mxu0 0.0
    %1138 = vmatprep.subr.mxu0 0.0
    %1139 = vmatpush1.msra.mxu0 0.0
    %1140 = vmatprep.subr.mxu0 0.0
    %1141 = vmatpush1.msra.mxu0 0.0
    %1142 = vmatprep.subr.mxu0 0.0
    %1143 = vmatpush1.msra.mxu0 0.0
    %1144 = vmatprep.subr.mxu0 0.0
    %1145 = vmatpush1.msra.mxu0 0.0
    %1146 = vmatprep.subr.mxu0 0.0
    %1147 = vmatpush1.msra.mxu0 0.0
    %1148 = vmatprep.subr.mxu0 0.0
    %1149 = vmatpush1.msra.mxu0 0.0
    %1150 = vmatprep.subr.mxu0 0.0
    %1151 = vmatpush1.msra.mxu0 0.0
    %1152 = vmatprep.subr.mxu0 0.0
    %1153 = vmatpush1.msra.mxu0 0.0
    %1154 = vmatprep.subr.mxu0 0.0
    %1155 = vmatpush1.msra.mxu0 0.0
    %1156 = vmatprep.subr.mxu0 0.0
    %1157 = vmatpush1.msra.mxu0 0.0
    %1158 = vmatprep.subr.mxu0 0.0
    %1159 = vmatpush1.msra.mxu0 0.0
    %1160 = vmatprep.subr.mxu0 0.0
    %1161 = vmatpush1.msra.mxu0 0.0
    %1162 = vmatprep.mubr.f32.mxu0 0.0
    %1163 = vmatmul.mubr.f32.gmra.mrb[0].mxu0 %v1094
    %v1164 = vpop.f32.mrb[0].mxu0
    %v1165 = vadd.f32 0.0, %v1164
    %v1166 = vpop.f32.mrb[0].mxu0
    %1167 = vdwg.mxu0
    %1168 = vrot.lane.b32.xlu0 %v224, 32
    %v1169 = vpop.permute.xlu0 %1168
    %v1171 = vsel %vm937, %v930, 0
    %v1173 = vsel %vm941, %v1169, 0
    %1175 = vmatprep.subr.mxu0 0.0
    %1176 = vmatpush1.msra.mxu0 %v1173
    %1177 = vmatprep.subr.mxu0 0.0
    %1178 = vmatpush1.msra.mxu0 0.0
    %1179 = vmatprep.subr.mxu0 0.0
    %1180 = vmatpush1.msra.mxu0 0.0
    %1181 = vmatprep.subr.mxu0 0.0
    %1182 = vmatpush1.msra.mxu0 0.0
    %1183 = vmatprep.subr.mxu0 0.0
    %1184 = vmatpush1.msra.mxu0 0.0
    %1185 = vmatprep.subr.mxu0 0.0
    %1186 = vmatpush1.msra.mxu0 0.0
    %1187 = vmatprep.subr.mxu0 0.0
    %1188 = vmatpush1.msra.mxu0 0.0
    %1189 = vmatprep.subr.mxu0 0.0
    %1190 = vmatpush1.msra.mxu0 0.0
    %1191 = vmatprep.subr.mxu0 0.0
    %1192 = vmatpush1.msra.mxu0 0.0
    %1193 = vmatprep.subr.mxu0 0.0
    %1194 = vmatpush1.msra.mxu0 0.0
    %1195 = vmatprep.subr.mxu0 0.0
    %1196 = vmatpush1.msra.mxu0 0.0
    %1197 = vmatprep.subr.mxu0 0.0
    %1198 = vmatpush1.msra.mxu0 0.0
    %1199 = vmatprep.subr.mxu0 0.0
    %1200 = vmatpush1.msra.mxu0 0.0
    %1201 = vmatprep.subr.mxu0 0.0
    %1202 = vmatpush1.msra.mxu0 0.0
    %1203 = vmatprep.subr.mxu0 0.0
    %1204 = vmatpush1.msra.mxu0 0.0
    %1205 = vmatprep.subr.mxu0 0.0
    %1206 = vmatpush1.msra.mxu0 0.0
    %1207 = vmatprep.subr.mxu0 0.0
    %1208 = vmatpush1.msra.mxu0 0.0
    %1209 = vmatprep.subr.mxu0 0.0
    %1210 = vmatpush1.msra.mxu0 0.0
    %1211 = vmatprep.subr.mxu0 0.0
    %1212 = vmatpush1.msra.mxu0 0.0
    %1213 = vmatprep.subr.mxu0 0.0
    %1214 = vmatpush1.msra.mxu0 0.0
    %1215 = vmatprep.subr.mxu0 0.0
    %1216 = vmatpush1.msra.mxu0 0.0
    %1217 = vmatprep.subr.mxu0 0.0
    %1218 = vmatpush1.msra.mxu0 0.0
    %1219 = vmatprep.subr.mxu0 0.0
    %1220 = vmatpush1.msra.mxu0 0.0
    %1221 = vmatprep.subr.mxu0 0.0
    %1222 = vmatpush1.msra.mxu0 0.0
    %1223 = vmatprep.subr.mxu0 0.0
    %1224 = vmatpush1.msra.mxu0 0.0
    %1225 = vmatprep.subr.mxu0 0.0
    %1226 = vmatpush1.msra.mxu0 0.0
    %1227 = vmatprep.subr.mxu0 0.0
    %1228 = vmatpush1.msra.mxu0 0.0
    %1229 = vmatprep.subr.mxu0 0.0
    %1230 = vmatpush1.msra.mxu0 0.0
    %1231 = vmatprep.subr.mxu0 0.0
    %1232 = vmatpush1.msra.mxu0 0.0
    %1233 = vmatprep.subr.mxu0 0.0
    %1234 = vmatpush1.msra.mxu0 0.0
    %1235 = vmatprep.subr.mxu0 0.0
    %1236 = vmatpush1.msra.mxu0 0.0
    %1237 = vmatprep.subr.mxu0 0.0
    %1238 = vmatpush1.msra.mxu0 0.0
    %1239 = vmatprep.mubr.f32.mxu0 0.0
    %1240 = vmatmul.mubr.f32.gmra.mrb[0].mxu0 %v1171
    %v1241 = vpop.f32.mrb[0].mxu0
    %v1242 = vadd.f32 0.0, %v1241
    %v1243 = vpop.f32.mrb[0].mxu0
    %1244 = vdwg.mxu0
    %1245 = vrot.lane.b32.xlu0 %v225, 32
    %v1246 = vpop.permute.xlu0 %1245
    %v1248 = vsel %vm937, %v931, 0
    %v1250 = vsel %vm941, %v1246, 0
    %1252 = vmatprep.subr.mxu0 0.0
    %1253 = vmatpush1.msra.mxu0 %v1250
    %1254 = vmatprep.subr.mxu0 0.0
    %1255 = vmatpush1.msra.mxu0 0.0
    %1256 = vmatprep.subr.mxu0 0.0
    %1257 = vmatpush1.msra.mxu0 0.0
    %1258 = vmatprep.subr.mxu0 0.0
    %1259 = vmatpush1.msra.mxu0 0.0
    %1260 = vmatprep.subr.mxu0 0.0
    %1261 = vmatpush1.msra.mxu0 0.0
    %1262 = vmatprep.subr.mxu0 0.0
    %1263 = vmatpush1.msra.mxu0 0.0
    %1264 = vmatprep.subr.mxu0 0.0
    %1265 = vmatpush1.msra.mxu0 0.0
    %1266 = vmatprep.subr.mxu0 0.0
    %1267 = vmatpush1.msra.mxu0 0.0
    %1268 = vmatprep.subr.mxu0 0.0
    %1269 = vmatpush1.msra.mxu0 0.0
    %1270 = vmatprep.subr.mxu0 0.0
    %1271 = vmatpush1.msra.mxu0 0.0
    %1272 = vmatprep.subr.mxu0 0.0
    %1273 = vmatpush1.msra.mxu0 0.0
    %1274 = vmatprep.subr.mxu0 0.0
    %1275 = vmatpush1.msra.mxu0 0.0
    %1276 = vmatprep.subr.mxu0 0.0
    %1277 = vmatpush1.msra.mxu0 0.0
    %1278 = vmatprep.subr.mxu0 0.0
    %1279 = vmatpush1.msra.mxu0 0.0
    %1280 = vmatprep.subr.mxu0 0.0
    %1281 = vmatpush1.msra.mxu0 0.0
    %1282 = vmatprep.subr.mxu0 0.0
    %1283 = vmatpush1.msra.mxu0 0.0
    %1284 = vmatprep.subr.mxu0 0.0
    %1285 = vmatpush1.msra.mxu0 0.0
    %1286 = vmatprep.subr.mxu0 0.0
    %1287 = vmatpush1.msra.mxu0 0.0
    %1288 = vmatprep.subr.mxu0 0.0
    %1289 = vmatpush1.msra.mxu0 0.0
    %1290 = vmatprep.subr.mxu0 0.0
    %1291 = vmatpush1.msra.mxu0 0.0
    %1292 = vmatprep.subr.mxu0 0.0
    %1293 = vmatpush1.msra.mxu0 0.0
    %1294 = vmatprep.subr.mxu0 0.0
    %1295 = vmatpush1.msra.mxu0 0.0
    %1296 = vmatprep.subr.mxu0 0.0
    %1297 = vmatpush1.msra.mxu0 0.0
    %1298 = vmatprep.subr.mxu0 0.0
    %1299 = vmatpush1.msra.mxu0 0.0
    %1300 = vmatprep.subr.mxu0 0.0
    %1301 = vmatpush1.msra.mxu0 0.0
    %1302 = vmatprep.subr.mxu0 0.0
    %1303 = vmatpush1.msra.mxu0 0.0
    %1304 = vmatprep.subr.mxu0 0.0
    %1305 = vmatpush1.msra.mxu0 0.0
    %1306 = vmatprep.subr.mxu0 0.0
    %1307 = vmatpush1.msra.mxu0 0.0
    %1308 = vmatprep.subr.mxu0 0.0
    %1309 = vmatpush1.msra.mxu0 0.0
    %1310 = vmatprep.subr.mxu0 0.0
    %1311 = vmatpush1.msra.mxu0 0.0
    %1312 = vmatprep.subr.mxu0 0.0
    %1313 = vmatpush1.msra.mxu0 0.0
    %1314 = vmatprep.subr.mxu0 0.0
    %1315 = vmatpush1.msra.mxu0 0.0
    %1316 = vmatprep.mubr.f32.mxu0 0.0
    %1317 = vmatmul.mubr.f32.gmra.mrb[0].mxu0 %v1248
    %v1318 = vpop.f32.mrb[0].mxu0
    %v1319 = vadd.f32 0.0, %v1318
    %v1320 = vpop.f32.mrb[0].mxu0
    %1321 = vdwg.mxu0
    %1322 = vrot.lane.b32.xlu0 %v226, 32
    %v1323 = vpop.permute.xlu0 %1322
    %v1325 = vsel %vm937, %v932, 0
    %v1327 = vsel %vm941, %v1323, 0
    %1329 = vmatprep.subr.mxu0 0.0
    %1330 = vmatpush1.msra.mxu0 %v1327
    %1331 = vmatprep.subr.mxu0 0.0
    %1332 = vmatpush1.msra.mxu0 0.0
    %1333 = vmatprep.subr.mxu0 0.0
    %1334 = vmatpush1.msra.mxu0 0.0
    %1335 = vmatprep.subr.mxu0 0.0
    %1336 = vmatpush1.msra.mxu0 0.0
    %1337 = vmatprep.subr.mxu0 0.0
    %1338 = vmatpush1.msra.mxu0 0.0
    %1339 = vmatprep.subr.mxu0 0.0
    %1340 = vmatpush1.msra.mxu0 0.0
    %1341 = vmatprep.subr.mxu0 0.0
    %1342 = vmatpush1.msra.mxu0 0.0
    %1343 = vmatprep.subr.mxu0 0.0
    %1344 = vmatpush1.msra.mxu0 0.0
    %1345 = vmatprep.subr.mxu0 0.0
    %1346 = vmatpush1.msra.mxu0 0.0
    %1347 = vmatprep.subr.mxu0 0.0
    %1348 = vmatpush1.msra.mxu0 0.0
    %1349 = vmatprep.subr.mxu0 0.0
    %1350 = vmatpush1.msra.mxu0 0.0
    %1351 = vmatprep.subr.mxu0 0.0
    %1352 = vmatpush1.msra.mxu0 0.0
    %1353 = vmatprep.subr.mxu0 0.0
    %1354 = vmatpush1.msra.mxu0 0.0
    %1355 = vmatprep.subr.mxu0 0.0
    %1356 = vmatpush1.msra.mxu0 0.0
    %1357 = vmatprep.subr.mxu0 0.0
    %1358 = vmatpush1.msra.mxu0 0.0
    %1359 = vmatprep.subr.mxu0 0.0
    %1360 = vmatpush1.msra.mxu0 0.0
    %1361 = vmatprep.subr.mxu0 0.0
    %1362 = vmatpush1.msra.mxu0 0.0
    %1363 = vmatprep.subr.mxu0 0.0
    %1364 = vmatpush1.msra.mxu0 0.0
    %1365 = vmatprep.subr.mxu0 0.0
    %1366 = vmatpush1.msra.mxu0 0.0
    %1367 = vmatprep.subr.mxu0 0.0
    %1368 = vmatpush1.msra.mxu0 0.0
    %1369 = vmatprep.subr.mxu0 0.0
    %1370 = vmatpush1.msra.mxu0 0.0
    %1371 = vmatprep.subr.mxu0 0.0
    %1372 = vmatpush1.msra.mxu0 0.0
    %1373 = vmatprep.subr.mxu0 0.0
    %1374 = vmatpush1.msra.mxu0 0.0
    %1375 = vmatprep.subr.mxu0 0.0
    %1376 = vmatpush1.msra.mxu0 0.0
    %1377 = vmatprep.subr.mxu0 0.0
    %1378 = vmatpush1.msra.mxu0 0.0
    %1379 = vmatprep.subr.mxu0 0.0
    %1380 = vmatpush1.msra.mxu0 0.0
    %1381 = vmatprep.subr.mxu0 0.0
    %1382 = vmatpush1.msra.mxu0 0.0
    %1383 = vmatprep.subr.mxu0 0.0
    %1384 = vmatpush1.msra.mxu0 0.0
    %1385 = vmatprep.subr.mxu0 0.0
    %1386 = vmatpush1.msra.mxu0 0.0
    %1387 = vmatprep.subr.mxu0 0.0
    %1388 = vmatpush1.msra.mxu0 0.0
    %1389 = vmatprep.subr.mxu0 0.0
    %1390 = vmatpush1.msra.mxu0 0.0
    %1391 = vmatprep.subr.mxu0 0.0
    %1392 = vmatpush1.msra.mxu0 0.0
    %1393 = vmatprep.mubr.f32.mxu0 0.0
    %1394 = vmatmul.mubr.f32.gmra.mrb[0].mxu0 %v1325
    %v1395 = vpop.f32.mrb[0].mxu0
    %v1396 = vadd.f32 0.0, %v1395
    %v1397 = vpop.f32.mrb[0].mxu0
    %1398 = vdwg.mxu0
    %1399 = vrot.lane.b32.xlu0 %v227, 32
    %v1400 = vpop.permute.xlu0 %1399
    %v1402 = vsel %vm937, %v933, 0
    %v1404 = vsel %vm941, %v1400, 0
    %1406 = vmatprep.subr.mxu0 0.0
    %1407 = vmatpush1.msra.mxu0 %v1404
    %1408 = vmatprep.subr.mxu0 0.0
    %1409 = vmatpush1.msra.mxu0 0.0
    %1410 = vmatprep.subr.mxu0 0.0
    %1411 = vmatpush1.msra.mxu0 0.0
    %1412 = vmatprep.subr.mxu0 0.0
    %1413 = vmatpush1.msra.mxu0 0.0
    %1414 = vmatprep.subr.mxu0 0.0
    %1415 = vmatpush1.msra.mxu0 0.0
    %1416 = vmatprep.subr.mxu0 0.0
    %1417 = vmatpush1.msra.mxu0 0.0
    %1418 = vmatprep.subr.mxu0 0.0
    %1419 = vmatpush1.msra.mxu0 0.0
    %1420 = vmatprep.subr.mxu0 0.0
    %1421 = vmatpush1.msra.mxu0 0.0
    %1422 = vmatprep.subr.mxu0 0.0
    %1423 = vmatpush1.msra.mxu0 0.0
    %1424 = vmatprep.subr.mxu0 0.0
    %1425 = vmatpush1.msra.mxu0 0.0
    %1426 = vmatprep.subr.mxu0 0.0
    %1427 = vmatpush1.msra.mxu0 0.0
    %1428 = vmatprep.subr.mxu0 0.0
    %1429 = vmatpush1.msra.mxu0 0.0
    %1430 = vmatprep.subr.mxu0 0.0
    %1431 = vmatpush1.msra.mxu0 0.0
    %1432 = vmatprep.subr.mxu0 0.0
    %1433 = vmatpush1.msra.mxu0 0.0
    %1434 = vmatprep.subr.mxu0 0.0
    %1435 = vmatpush1.msra.mxu0 0.0
    %1436 = vmatprep.subr.mxu0 0.0
    %1437 = vmatpush1.msra.mxu0 0.0
    %1438 = vmatprep.subr.mxu0 0.0
    %1439 = vmatpush1.msra.mxu0 0.0
    %1440 = vmatprep.subr.mxu0 0.0
    %1441 = vmatpush1.msra.mxu0 0.0
    %1442 = vmatprep.subr.mxu0 0.0
    %1443 = vmatpush1.msra.mxu0 0.0
    %1444 = vmatprep.subr.mxu0 0.0
    %1445 = vmatpush1.msra.mxu0 0.0
    %1446 = vmatprep.subr.mxu0 0.0
    %1447 = vmatpush1.msra.mxu0 0.0
    %1448 = vmatprep.subr.mxu0 0.0
    %1449 = vmatpush1.msra.mxu0 0.0
    %1450 = vmatprep.subr.mxu0 0.0
    %1451 = vmatpush1.msra.mxu0 0.0
    %1452 = vmatprep.subr.mxu0 0.0
    %1453 = vmatpush1.msra.mxu0 0.0
    %1454 = vmatprep.subr.mxu0 0.0
    %1455 = vmatpush1.msra.mxu0 0.0
    %1456 = vmatprep.subr.mxu0 0.0
    %1457 = vmatpush1.msra.mxu0 0.0
    %1458 = vmatprep.subr.mxu0 0.0
    %1459 = vmatpush1.msra.mxu0 0.0
    %1460 = vmatprep.subr.mxu0 0.0
    %1461 = vmatpush1.msra.mxu0 0.0
    %1462 = vmatprep.subr.mxu0 0.0
    %1463 = vmatpush1.msra.mxu0 0.0
    %1464 = vmatprep.subr.mxu0 0.0
    %1465 = vmatpush1.msra.mxu0 0.0
    %1466 = vmatprep.subr.mxu0 0.0
    %1467 = vmatpush1.msra.mxu0 0.0
    %1468 = vmatprep.subr.mxu0 0.0
    %1469 = vmatpush1.msra.mxu0 0.0
    %1470 = vmatprep.mubr.f32.mxu0 0.0
    %1471 = vmatmul.mubr.f32.gmra.mrb[0].mxu0 %v1402
    %v1472 = vpop.f32.mrb[0].mxu0
    %v1473 = vadd.f32 0.0, %v1472
    %v1474 = vpop.f32.mrb[0].mxu0
    %1475 = vdwg.mxu0
    %1476 = vrot.lane.b32.xlu0 %v228, 32
    %v1477 = vpop.permute.xlu0 %1476
    %v1479 = vsel %vm937, %v934, 0
    %v1481 = vsel %vm941, %v1477, 0
    %1483 = vmatprep.subr.mxu0 0.0
    %1484 = vmatpush1.msra.mxu0 %v1481
    %1485 = vmatprep.subr.mxu0 0.0
    %1486 = vmatpush1.msra.mxu0 0.0
    %1487 = vmatprep.subr.mxu0 0.0
    %1488 = vmatpush1.msra.mxu0 0.0
    %1489 = vmatprep.subr.mxu0 0.0
    %1490 = vmatpush1.msra.mxu0 0.0
    %1491 = vmatprep.subr.mxu0 0.0
    %1492 = vmatpush1.msra.mxu0 0.0
    %1493 = vmatprep.subr.mxu0 0.0
    %1494 = vmatpush1.msra.mxu0 0.0
    %1495 = vmatprep.subr.mxu0 0.0
    %1496 = vmatpush1.msra.mxu0 0.0
    %1497 = vmatprep.subr.mxu0 0.0
    %1498 = vmatpush1.msra.mxu0 0.0
    %1499 = vmatprep.subr.mxu0 0.0
    %1500 = vmatpush1.msra.mxu0 0.0
    %1501 = vmatprep.subr.mxu0 0.0
    %1502 = vmatpush1.msra.mxu0 0.0
    %1503 = vmatprep.subr.mxu0 0.0
    %1504 = vmatpush1.msra.mxu0 0.0
    %1505 = vmatprep.subr.mxu0 0.0
    %1506 = vmatpush1.msra.mxu0 0.0
    %1507 = vmatprep.subr.mxu0 0.0
    %1508 = vmatpush1.msra.mxu0 0.0
    %1509 = vmatprep.subr.mxu0 0.0
    %1510 = vmatpush1.msra.mxu0 0.0
    %1511 = vmatprep.subr.mxu0 0.0
    %1512 = vmatpush1.msra.mxu0 0.0
    %1513 = vmatprep.subr.mxu0 0.0
    %1514 = vmatpush1.msra.mxu0 0.0
    %1515 = vmatprep.subr.mxu0 0.0
    %1516 = vmatpush1.msra.mxu0 0.0
    %1517 = vmatprep.subr.mxu0 0.0
    %1518 = vmatpush1.msra.mxu0 0.0
    %1519 = vmatprep.subr.mxu0 0.0
    %1520 = vmatpush1.msra.mxu0 0.0
    %1521 = vmatprep.subr.mxu0 0.0
    %1522 = vmatpush1.msra.mxu0 0.0
    %1523 = vmatprep.subr.mxu0 0.0
    %1524 = vmatpush1.msra.mxu0 0.0
    %1525 = vmatprep.subr.mxu0 0.0
    %1526 = vmatpush1.msra.mxu0 0.0
    %1527 = vmatprep.subr.mxu0 0.0
    %1528 = vmatpush1.msra.mxu0 0.0
    %1529 = vmatprep.subr.mxu0 0.0
    %1530 = vmatpush1.msra.mxu0 0.0
    %1531 = vmatprep.subr.mxu0 0.0
    %1532 = vmatpush1.msra.mxu0 0.0
    %1533 = vmatprep.subr.mxu0 0.0
    %1534 = vmatpush1.msra.mxu0 0.0
    %1535 = vmatprep.subr.mxu0 0.0
    %1536 = vmatpush1.msra.mxu0 0.0
    %1537 = vmatprep.subr.mxu0 0.0
    %1538 = vmatpush1.msra.mxu0 0.0
    %1539 = vmatprep.subr.mxu0 0.0
    %1540 = vmatpush1.msra.mxu0 0.0
    %1541 = vmatprep.subr.mxu0 0.0
    %1542 = vmatpush1.msra.mxu0 0.0
    %1543 = vmatprep.subr.mxu0 0.0
    %1544 = vmatpush1.msra.mxu0 0.0
    %1545 = vmatprep.subr.mxu0 0.0
    %1546 = vmatpush1.msra.mxu0 0.0
    %1547 = vmatprep.mubr.f32.mxu0 0.0
    %1548 = vmatmul.mubr.f32.gmra.mrb[0].mxu0 %v1479
    %v1549 = vpop.f32.mrb[0].mxu0
    %v1550 = vadd.f32 0.0, %v1549
    %v1551 = vpop.f32.mrb[0].mxu0
    %1552 = vdwg.mxu0
    %1553 = vrot.lane.b32.xlu0 %v221, 112
    %v1554 = vpop.permute.xlu0 %1553
    %1555 = vrot.lane.b32.xlu0 %v221, 64
    %v1556 = vpop.permute.xlu0 %1555
    %v1557 = vsel %vm231, %v1554, 0
    %v1559 = vsel %vm231, %v1556, 0
    %1561 = vmatprep.subr.mxu0 0.0
    %1562 = vmatpush1.xpose.msra.mxu0 %v1559
    %1563 = vmatprep.subr.mxu0 0.0
    %1564 = vmatpush1.xpose.msra.mxu0 0.0
    %1565 = vmatprep.subr.mxu0 0.0
    %1566 = vmatpush1.xpose.msra.mxu0 0.0
    %1567 = vmatprep.subr.mxu0 0.0
    %1568 = vmatpush1.xpose.msra.mxu0 0.0
    %1569 = vmatprep.subr.mxu0 0.0
    %1570 = vmatpush1.xpose.msra.mxu0 0.0
    %1571 = vmatprep.subr.mxu0 0.0
    %1572 = vmatpush1.xpose.msra.mxu0 0.0
    %1573 = vmatprep.subr.mxu0 0.0
    %1574 = vmatpush1.xpose.msra.mxu0 0.0
    %1575 = vmatprep.subr.mxu0 0.0
    %1576 = vmatpush1.xpose.msra.mxu0 0.0
    %1577 = vmatprep.subr.mxu0 0.0
    %1578 = vmatpush1.xpose.msra.mxu0 0.0
    %1579 = vmatprep.subr.mxu0 0.0
    %1580 = vmatpush1.xpose.msra.mxu0 0.0
    %1581 = vmatprep.subr.mxu0 0.0
    %1582 = vmatpush1.xpose.msra.mxu0 0.0
    %1583 = vmatprep.subr.mxu0 0.0
    %1584 = vmatpush1.xpose.msra.mxu0 0.0
    %1585 = vmatprep.subr.mxu0 0.0
    %1586 = vmatpush1.xpose.msra.mxu0 0.0
    %1587 = vmatprep.subr.mxu0 0.0
    %1588 = vmatpush1.xpose.msra.mxu0 0.0
    %1589 = vmatprep.subr.mxu0 0.0
    %1590 = vmatpush1.xpose.msra.mxu0 0.0
    %1591 = vmatprep.subr.mxu0 0.0
    %1592 = vmatpush1.xpose.msra.mxu0 0.0
    %1593 = vmatprep.subr.mxu0 0.0
    %1594 = vmatpush1.xpose.msra.mxu0 0.0
    %1595 = vmatprep.subr.mxu0 0.0
    %1596 = vmatpush1.xpose.msra.mxu0 0.0
    %1597 = vmatprep.subr.mxu0 0.0
    %1598 = vmatpush1.xpose.msra.mxu0 0.0
    %1599 = vmatprep.subr.mxu0 0.0
    %1600 = vmatpush1.xpose.msra.mxu0 0.0
    %1601 = vmatprep.subr.mxu0 0.0
    %1602 = vmatpush1.xpose.msra.mxu0 0.0
    %1603 = vmatprep.subr.mxu0 0.0
    %1604 = vmatpush1.xpose.msra.mxu0 0.0
    %1605 = vmatprep.subr.mxu0 0.0
    %1606 = vmatpush1.xpose.msra.mxu0 0.0
    %1607 = vmatprep.subr.mxu0 0.0
    %1608 = vmatpush1.xpose.msra.mxu0 0.0
    %1609 = vmatprep.subr.mxu0 0.0
    %1610 = vmatpush1.xpose.msra.mxu0 0.0
    %1611 = vmatprep.subr.mxu0 0.0
    %1612 = vmatpush1.xpose.msra.mxu0 0.0
    %1613 = vmatprep.subr.mxu0 0.0
    %1614 = vmatpush1.xpose.msra.mxu0 0.0
    %1615 = vmatprep.subr.mxu0 0.0
    %1616 = vmatpush1.xpose.msra.mxu0 0.0
    %1617 = vmatprep.subr.mxu0 0.0
    %1618 = vmatpush1.xpose.msra.mxu0 0.0
    %1619 = vmatprep.subr.mxu0 0.0
    %1620 = vmatpush1.xpose.msra.mxu0 0.0
    %1621 = vmatprep.subr.mxu0 0.0
    %1622 = vmatpush1.xpose.msra.mxu0 0.0
    %1623 = vmatprep.subr.mxu0 0.0
    %1624 = vmatpush1.xpose.msra.mxu0 0.0
    %1625 = vmatprep.mubr.f32.mxu0 0.0
    %1626 = vmatmul.mubr.f32.gmra.mrb[0].mxu0 %v1557
    %v1627 = vpop.f32.mrb[0].mxu0
    %v1628 = vadd.f32 0.0, %v1627
    %v1629 = vpop.f32.mrb[0].mxu0
    %1630 = vdwg.mxu0
    %1631 = vrot.lane.b32.xlu0 %v222, 112
    %v1632 = vpop.permute.xlu0 %1631
    %1633 = vrot.lane.b32.xlu0 %v222, 64
    %v1634 = vpop.permute.xlu0 %1633
    %v1635 = vsel %vm231, %v1632, 0
    %v1637 = vsel %vm231, %v1634, 0
    %1639 = vmatprep.subr.mxu0 0.0
    %1640 = vmatpush1.xpose.msra.mxu0 %v1637
    %1641 = vmatprep.subr.mxu0 0.0
    %1642 = vmatpush1.xpose.msra.mxu0 0.0
    %1643 = vmatprep.subr.mxu0 0.0
    %1644 = vmatpush1.xpose.msra.mxu0 0.0
    %1645 = vmatprep.subr.mxu0 0.0
    %1646 = vmatpush1.xpose.msra.mxu0 0.0
    %1647 = vmatprep.subr.mxu0 0.0
    %1648 = vmatpush1.xpose.msra.mxu0 0.0
    %1649 = vmatprep.subr.mxu0 0.0
    %1650 = vmatpush1.xpose.msra.mxu0 0.0
    %1651 = vmatprep.subr.mxu0 0.0
    %1652 = vmatpush1.xpose.msra.mxu0 0.0
    %1653 = vmatprep.subr.mxu0 0.0
    %1654 = vmatpush1.xpose.msra.mxu0 0.0
    %1655 = vmatprep.subr.mxu0 0.0
    %1656 = vmatpush1.xpose.msra.mxu0 0.0
    %1657 = vmatprep.subr.mxu0 0.0
    %1658 = vmatpush1.xpose.msra.mxu0 0.0
    %1659 = vmatprep.subr.mxu0 0.0
    %1660 = vmatpush1.xpose.msra.mxu0 0.0
    %1661 = vmatprep.subr.mxu0 0.0
    %1662 = vmatpush1.xpose.msra.mxu0 0.0
    %1663 = vmatprep.subr.mxu0 0.0
    %1664 = vmatpush1.xpose.msra.mxu0 0.0
    %1665 = vmatprep.subr.mxu0 0.0
    %1666 = vmatpush1.xpose.msra.mxu0 0.0
    %1667 = vmatprep.subr.mxu0 0.0
    %1668 = vmatpush1.xpose.msra.mxu0 0.0
    %1669 = vmatprep.subr.mxu0 0.0
    %1670 = vmatpush1.xpose.msra.mxu0 0.0
    %1671 = vmatprep.subr.mxu0 0.0
    %1672 = vmatpush1.xpose.msra.mxu0 0.0
    %1673 = vmatprep.subr.mxu0 0.0
    %1674 = vmatpush1.xpose.msra.mxu0 0.0
    %1675 = vmatprep.subr.mxu0 0.0
    %1676 = vmatpush1.xpose.msra.mxu0 0.0
    %1677 = vmatprep.subr.mxu0 0.0
    %1678 = vmatpush1.xpose.msra.mxu0 0.0
    %1679 = vmatprep.subr.mxu0 0.0
    %1680 = vmatpush1.xpose.msra.mxu0 0.0
    %1681 = vmatprep.subr.mxu0 0.0
    %1682 = vmatpush1.xpose.msra.mxu0 0.0
    %1683 = vmatprep.subr.mxu0 0.0
    %1684 = vmatpush1.xpose.msra.mxu0 0.0
    %1685 = vmatprep.subr.mxu0 0.0
    %1686 = vmatpush1.xpose.msra.mxu0 0.0
    %1687 = vmatprep.subr.mxu0 0.0
    %1688 = vmatpush1.xpose.msra.mxu0 0.0
    %1689 = vmatprep.subr.mxu0 0.0
    %1690 = vmatpush1.xpose.msra.mxu0 0.0
    %1691 = vmatprep.subr.mxu0 0.0
    %1692 = vmatpush1.xpose.msra.mxu0 0.0
    %1693 = vmatprep.subr.mxu0 0.0
    %1694 = vmatpush1.xpose.msra.mxu0 0.0
    %1695 = vmatprep.subr.mxu0 0.0
    %1696 = vmatpush1.xpose.msra.mxu0 0.0
    %1697 = vmatprep.subr.mxu0 0.0
    %1698 = vmatpush1.xpose.msra.mxu0 0.0
    %1699 = vmatprep.subr.mxu0 0.0
    %1700 = vmatpush1.xpose.msra.mxu0 0.0
    %1701 = vmatprep.subr.mxu0 0.0
    %1702 = vmatpush1.xpose.msra.mxu0 0.0
    %1703 = vmatprep.mubr.f32.mxu0 0.0
    %1704 = vmatmul.mubr.f32.gmra.mrb[0].mxu0 %v1635
    %v1705 = vpop.f32.mrb[0].mxu0
    %v1706 = vadd.f32 0.0, %v1705
    %v1707 = vpop.f32.mrb[0].mxu0
    %1708 = vdwg.mxu0
    %1709 = vrot.lane.b32.xlu0 %v223, 112
    %v1710 = vpop.permute.xlu0 %1709
    %1711 = vrot.lane.b32.xlu0 %v223, 64
    %v1712 = vpop.permute.xlu0 %1711
    %v1713 = vsel %vm231, %v1710, 0
    %v1715 = vsel %vm231, %v1712, 0
    %1717 = vmatprep.subr.mxu0 0.0
    %1718 = vmatpush1.xpose.msra.mxu0 %v1715
    %1719 = vmatprep.subr.mxu0 0.0
    %1720 = vmatpush1.xpose.msra.mxu0 0.0
    %1721 = vmatprep.subr.mxu0 0.0
    %1722 = vmatpush1.xpose.msra.mxu0 0.0
    %1723 = vmatprep.subr.mxu0 0.0
    %1724 = vmatpush1.xpose.msra.mxu0 0.0
    %1725 = vmatprep.subr.mxu0 0.0
    %1726 = vmatpush1.xpose.msra.mxu0 0.0
    %1727 = vmatprep.subr.mxu0 0.0
    %1728 = vmatpush1.xpose.msra.mxu0 0.0
    %1729 = vmatprep.subr.mxu0 0.0
    %1730 = vmatpush1.xpose.msra.mxu0 0.0
    %1731 = vmatprep.subr.mxu0 0.0
    %1732 = vmatpush1.xpose.msra.mxu0 0.0
    %1733 = vmatprep.subr.mxu0 0.0
    %1734 = vmatpush1.xpose.msra.mxu0 0.0
    %1735 = vmatprep.subr.mxu0 0.0
    %1736 = vmatpush1.xpose.msra.mxu0 0.0
    %1737 = vmatprep.subr.mxu0 0.0
    %1738 = vmatpush1.xpose.msra.mxu0 0.0
    %1739 = vmatprep.subr.mxu0 0.0
    %1740 = vmatpush1.xpose.msra.mxu0 0.0
    %1741 = vmatprep.subr.mxu0 0.0
    %1742 = vmatpush1.xpose.msra.mxu0 0.0
    %1743 = vmatprep.subr.mxu0 0.0
    %1744 = vmatpush1.xpose.msra.mxu0 0.0
    %1745 = vmatprep.subr.mxu0 0.0
    %1746 = vmatpush1.xpose.msra.mxu0 0.0
    %1747 = vmatprep.subr.mxu0 0.0
    %1748 = vmatpush1.xpose.msra.mxu0 0.0
    %1749 = vmatprep.subr.mxu0 0.0
    %1750 = vmatpush1.xpose.msra.mxu0 0.0
    %1751 = vmatprep.subr.mxu0 0.0
    %1752 = vmatpush1.xpose.msra.mxu0 0.0
    %1753 = vmatprep.subr.mxu0 0.0
    %1754 = vmatpush1.xpose.msra.mxu0 0.0
    %1755 = vmatprep.subr.mxu0 0.0
    %1756 = vmatpush1.xpose.msra.mxu0 0.0
    %1757 = vmatprep.subr.mxu0 0.0
    %1758 = vmatpush1.xpose.msra.mxu0 0.0
    %1759 = vmatprep.subr.mxu0 0.0
    %1760 = vmatpush1.xpose.msra.mxu0 0.0
    %1761 = vmatprep.subr.mxu0 0.0
    %1762 = vmatpush1.xpose.msra.mxu0 0.0
    %1763 = vmatprep.subr.mxu0 0.0
    %1764 = vmatpush1.xpose.msra.mxu0 0.0
    %1765 = vmatprep.subr.mxu0 0.0
    %1766 = vmatpush1.xpose.msra.mxu0 0.0
    %1767 = vmatprep.subr.mxu0 0.0
    %1768 = vmatpush1.xpose.msra.mxu0 0.0
    %1769 = vmatprep.subr.mxu0 0.0
    %1770 = vmatpush1.xpose.msra.mxu0 0.0
    %1771 = vmatprep.subr.mxu0 0.0
    %1772 = vmatpush1.xpose.msra.mxu0 0.0
    %1773 = vmatprep.subr.mxu0 0.0
    %1774 = vmatpush1.xpose.msra.mxu0 0.0
    %1775 = vmatprep.subr.mxu0 0.0
    %1776 = vmatpush1.xpose.msra.mxu0 0.0
    %1777 = vmatprep.subr.mxu0 0.0
    %1778 = vmatpush1.xpose.msra.mxu0 0.0
    %1779 = vmatprep.subr.mxu0 0.0
    %1780 = vmatpush1.xpose.msra.mxu0 0.0
    %1781 = vmatprep.mubr.f32.mxu0 0.0
    %1782 = vmatmul.mubr.f32.gmra.mrb[0].mxu0 %v1713
    %v1783 = vpop.f32.mrb[0].mxu0
    %v1784 = vadd.f32 0.0, %v1783
    %v1785 = vpop.f32.mrb[0].mxu0
    %1786 = vdwg.mxu0
    %1787 = vrot.lane.b32.xlu0 %v224, 112
    %v1788 = vpop.permute.xlu0 %1787
    %1789 = vrot.lane.b32.xlu0 %v224, 64
    %v1790 = vpop.permute.xlu0 %1789
    %v1791 = vsel %vm231, %v1788, 0
    %v1793 = vsel %vm231, %v1790, 0
    %1795 = vmatprep.subr.mxu0 0.0
    %1796 = vmatpush1.xpose.msra.mxu0 %v1793
    %1797 = vmatprep.subr.mxu0 0.0
    %1798 = vmatpush1.xpose.msra.mxu0 0.0
    %1799 = vmatprep.subr.mxu0 0.0
    %1800 = vmatpush1.xpose.msra.mxu0 0.0
    %1801 = vmatprep.subr.mxu0 0.0
    %1802 = vmatpush1.xpose.msra.mxu0 0.0
    %1803 = vmatprep.subr.mxu0 0.0
    %1804 = vmatpush1.xpose.msra.mxu0 0.0
    %1805 = vmatprep.subr.mxu0 0.0
    %1806 = vmatpush1.xpose.msra.mxu0 0.0
    %1807 = vmatprep.subr.mxu0 0.0
    %1808 = vmatpush1.xpose.msra.mxu0 0.0
    %1809 = vmatprep.subr.mxu0 0.0
    %1810 = vmatpush1.xpose.msra.mxu0 0.0
    %1811 = vmatprep.subr.mxu0 0.0
    %1812 = vmatpush1.xpose.msra.mxu0 0.0
    %1813 = vmatprep.subr.mxu0 0.0
    %1814 = vmatpush1.xpose.msra.mxu0 0.0
    %1815 = vmatprep.subr.mxu0 0.0
    %1816 = vmatpush1.xpose.msra.mxu0 0.0
    %1817 = vmatprep.subr.mxu0 0.0
    %1818 = vmatpush1.xpose.msra.mxu0 0.0
    %1819 = vmatprep.subr.mxu0 0.0
    %1820 = vmatpush1.xpose.msra.mxu0 0.0
    %1821 = vmatprep.subr.mxu0 0.0
    %1822 = vmatpush1.xpose.msra.mxu0 0.0
    %1823 = vmatprep.subr.mxu0 0.0
    %1824 = vmatpush1.xpose.msra.mxu0 0.0
    %1825 = vmatprep.subr.mxu0 0.0
    %1826 = vmatpush1.xpose.msra.mxu0 0.0
    %1827 = vmatprep.subr.mxu0 0.0
    %1828 = vmatpush1.xpose.msra.mxu0 0.0
    %1829 = vmatprep.subr.mxu0 0.0
    %1830 = vmatpush1.xpose.msra.mxu0 0.0
    %1831 = vmatprep.subr.mxu0 0.0
    %1832 = vmatpush1.xpose.msra.mxu0 0.0
    %1833 = vmatprep.subr.mxu0 0.0
    %1834 = vmatpush1.xpose.msra.mxu0 0.0
    %1835 = vmatprep.subr.mxu0 0.0
    %1836 = vmatpush1.xpose.msra.mxu0 0.0
    %1837 = vmatprep.subr.mxu0 0.0
    %1838 = vmatpush1.xpose.msra.mxu0 0.0
    %1839 = vmatprep.subr.mxu0 0.0
    %1840 = vmatpush1.xpose.msra.mxu0 0.0
    %1841 = vmatprep.subr.mxu0 0.0
    %1842 = vmatpush1.xpose.msra.mxu0 0.0
    %1843 = vmatprep.subr.mxu0 0.0
    %1844 = vmatpush1.xpose.msra.mxu0 0.0
    %1845 = vmatprep.subr.mxu0 0.0
    %1846 = vmatpush1.xpose.msra.mxu0 0.0
    %1847 = vmatprep.subr.mxu0 0.0
    %1848 = vmatpush1.xpose.msra.mxu0 0.0
    %1849 = vmatprep.subr.mxu0 0.0
    %1850 = vmatpush1.xpose.msra.mxu0 0.0
    %1851 = vmatprep.subr.mxu0 0.0
    %1852 = vmatpush1.xpose.msra.mxu0 0.0
    %1853 = vmatprep.subr.mxu0 0.0
    %1854 = vmatpush1.xpose.msra.mxu0 0.0
    %1855 = vmatprep.subr.mxu0 0.0
    %1856 = vmatpush1.xpose.msra.mxu0 0.0
    %1857 = vmatprep.subr.mxu0 0.0
    %1858 = vmatpush1.xpose.msra.mxu0 0.0
    %1859 = vmatprep.mubr.f32.mxu0 0.0
    %1860 = vmatmul.mubr.f32.gmra.mrb[0].mxu0 %v1791
    %v1861 = vpop.f32.mrb[0].mxu0
    %v1862 = vadd.f32 0.0, %v1861
    %v1863 = vpop.f32.mrb[0].mxu0
    %1864 = vdwg.mxu0
    %1865 = vrot.lane.b32.xlu0 %v225, 112
    %v1866 = vpop.permute.xlu0 %1865
    %1867 = vrot.lane.b32.xlu0 %v225, 64
    %v1868 = vpop.permute.xlu0 %1867
    %v1869 = vsel %vm231, %v1866, 0
    %v1871 = vsel %vm231, %v1868, 0
    %1873 = vmatprep.subr.mxu0 0.0
    %1874 = vmatpush1.xpose.msra.mxu0 %v1871
    %1875 = vmatprep.subr.mxu0 0.0
    %1876 = vmatpush1.xpose.msra.mxu0 0.0
    %1877 = vmatprep.subr.mxu0 0.0
    %1878 = vmatpush1.xpose.msra.mxu0 0.0
    %1879 = vmatprep.subr.mxu0 0.0
    %1880 = vmatpush1.xpose.msra.mxu0 0.0
    %1881 = vmatprep.subr.mxu0 0.0
    %1882 = vmatpush1.xpose.msra.mxu0 0.0
    %1883 = vmatprep.subr.mxu0 0.0
    %1884 = vmatpush1.xpose.msra.mxu0 0.0
    %1885 = vmatprep.subr.mxu0 0.0
    %1886 = vmatpush1.xpose.msra.mxu0 0.0
    %1887 = vmatprep.subr.mxu0 0.0
    %1888 = vmatpush1.xpose.msra.mxu0 0.0
    %1889 = vmatprep.subr.mxu0 0.0
    %1890 = vmatpush1.xpose.msra.mxu0 0.0
    %1891 = vmatprep.subr.mxu0 0.0
    %1892 = vmatpush1.xpose.msra.mxu0 0.0
    %1893 = vmatprep.subr.mxu0 0.0
    %1894 = vmatpush1.xpose.msra.mxu0 0.0
    %1895 = vmatprep.subr.mxu0 0.0
    %1896 = vmatpush1.xpose.msra.mxu0 0.0
    %1897 = vmatprep.subr.mxu0 0.0
    %1898 = vmatpush1.xpose.msra.mxu0 0.0
    %1899 = vmatprep.subr.mxu0 0.0
    %1900 = vmatpush1.xpose.msra.mxu0 0.0
    %1901 = vmatprep.subr.mxu0 0.0
    %1902 = vmatpush1.xpose.msra.mxu0 0.0
    %1903 = vmatprep.subr.mxu0 0.0
    %1904 = vmatpush1.xpose.msra.mxu0 0.0
    %1905 = vmatprep.subr.mxu0 0.0
    %1906 = vmatpush1.xpose.msra.mxu0 0.0
    %1907 = vmatprep.subr.mxu0 0.0
    %1908 = vmatpush1.xpose.msra.mxu0 0.0
    %1909 = vmatprep.subr.mxu0 0.0
    %1910 = vmatpush1.xpose.msra.mxu0 0.0
    %1911 = vmatprep.subr.mxu0 0.0
    %1912 = vmatpush1.xpose.msra.mxu0 0.0
    %1913 = vmatprep.subr.mxu0 0.0
    %1914 = vmatpush1.xpose.msra.mxu0 0.0
    %1915 = vmatprep.subr.mxu0 0.0
    %1916 = vmatpush1.xpose.msra.mxu0 0.0
    %1917 = vmatprep.subr.mxu0 0.0
    %1918 = vmatpush1.xpose.msra.mxu0 0.0
    %1919 = vmatprep.subr.mxu0 0.0
    %1920 = vmatpush1.xpose.msra.mxu0 0.0
    %1921 = vmatprep.subr.mxu0 0.0
    %1922 = vmatpush1.xpose.msra.mxu0 0.0
    %1923 = vmatprep.subr.mxu0 0.0
    %1924 = vmatpush1.xpose.msra.mxu0 0.0
    %1925 = vmatprep.subr.mxu0 0.0
    %1926 = vmatpush1.xpose.msra.mxu0 0.0
    %1927 = vmatprep.subr.mxu0 0.0
    %1928 = vmatpush1.xpose.msra.mxu0 0.0
    %1929 = vmatprep.subr.mxu0 0.0
    %1930 = vmatpush1.xpose.msra.mxu0 0.0
    %1931 = vmatprep.subr.mxu0 0.0
    %1932 = vmatpush1.xpose.msra.mxu0 0.0
    %1933 = vmatprep.subr.mxu0 0.0
    %1934 = vmatpush1.xpose.msra.mxu0 0.0
    %1935 = vmatprep.subr.mxu0 0.0
    %1936 = vmatpush1.xpose.msra.mxu0 0.0
    %1937 = vmatprep.mubr.f32.mxu0 0.0
    %1938 = vmatmul.mubr.f32.gmra.mrb[0].mxu0 %v1869
    %v1939 = vpop.f32.mrb[0].mxu0
    %v1940 = vadd.f32 0.0, %v1939
    %v1941 = vpop.f32.mrb[0].mxu0
    %1942 = vdwg.mxu0
    %1943 = vrot.lane.b32.xlu0 %v226, 112
    %v1944 = vpop.permute.xlu0 %1943
    %1945 = vrot.lane.b32.xlu0 %v226, 64
    %v1946 = vpop.permute.xlu0 %1945
    %v1947 = vsel %vm231, %v1944, 0
    %v1949 = vsel %vm231, %v1946, 0
    %1951 = vmatprep.subr.mxu0 0.0
    %1952 = vmatpush1.xpose.msra.mxu0 %v1949
    %1953 = vmatprep.subr.mxu0 0.0
    %1954 = vmatpush1.xpose.msra.mxu0 0.0
    %1955 = vmatprep.subr.mxu0 0.0
    %1956 = vmatpush1.xpose.msra.mxu0 0.0
    %1957 = vmatprep.subr.mxu0 0.0
    %1958 = vmatpush1.xpose.msra.mxu0 0.0
    %1959 = vmatprep.subr.mxu0 0.0
    %1960 = vmatpush1.xpose.msra.mxu0 0.0
    %1961 = vmatprep.subr.mxu0 0.0
    %1962 = vmatpush1.xpose.msra.mxu0 0.0
    %1963 = vmatprep.subr.mxu0 0.0
    %1964 = vmatpush1.xpose.msra.mxu0 0.0
    %1965 = vmatprep.subr.mxu0 0.0
    %1966 = vmatpush1.xpose.msra.mxu0 0.0
    %1967 = vmatprep.subr.mxu0 0.0
    %1968 = vmatpush1.xpose.msra.mxu0 0.0
    %1969 = vmatprep.subr.mxu0 0.0
    %1970 = vmatpush1.xpose.msra.mxu0 0.0
    %1971 = vmatprep.subr.mxu0 0.0
    %1972 = vmatpush1.xpose.msra.mxu0 0.0
    %1973 = vmatprep.subr.mxu0 0.0
    %1974 = vmatpush1.xpose.msra.mxu0 0.0
    %1975 = vmatprep.subr.mxu0 0.0
    %1976 = vmatpush1.xpose.msra.mxu0 0.0
    %1977 = vmatprep.subr.mxu0 0.0
    %1978 = vmatpush1.xpose.msra.mxu0 0.0
    %1979 = vmatprep.subr.mxu0 0.0
    %1980 = vmatpush1.xpose.msra.mxu0 0.0
    %1981 = vmatprep.subr.mxu0 0.0
    %1982 = vmatpush1.xpose.msra.mxu0 0.0
    %1983 = vmatprep.subr.mxu0 0.0
    %1984 = vmatpush1.xpose.msra.mxu0 0.0
    %1985 = vmatprep.subr.mxu0 0.0
    %1986 = vmatpush1.xpose.msra.mxu0 0.0
    %1987 = vmatprep.subr.mxu0 0.0
    %1988 = vmatpush1.xpose.msra.mxu0 0.0
    %1989 = vmatprep.subr.mxu0 0.0
    %1990 = vmatpush1.xpose.msra.mxu0 0.0
    %1991 = vmatprep.subr.mxu0 0.0
    %1992 = vmatpush1.xpose.msra.mxu0 0.0
    %1993 = vmatprep.subr.mxu0 0.0
    %1994 = vmatpush1.xpose.msra.mxu0 0.0
    %1995 = vmatprep.subr.mxu0 0.0
    %1996 = vmatpush1.xpose.msra.mxu0 0.0
    %1997 = vmatprep.subr.mxu0 0.0
    %1998 = vmatpush1.xpose.msra.mxu0 0.0
    %1999 = vmatprep.subr.mxu0 0.0
    %2000 = vmatpush1.xpose.msra.mxu0 0.0
    %2001 = vmatprep.subr.mxu0 0.0
    %2002 = vmatpush1.xpose.msra.mxu0 0.0
    %2003 = vmatprep.subr.mxu0 0.0
    %2004 = vmatpush1.xpose.msra.mxu0 0.0
    %2005 = vmatprep.subr.mxu0 0.0
    %2006 = vmatpush1.xpose.msra.mxu0 0.0
    %2007 = vmatprep.subr.mxu0 0.0
    %2008 = vmatpush1.xpose.msra.mxu0 0.0
    %2009 = vmatprep.subr.mxu0 0.0
    %2010 = vmatpush1.xpose.msra.mxu0 0.0
    %2011 = vmatprep.subr.mxu0 0.0
    %2012 = vmatpush1.xpose.msra.mxu0 0.0
    %2013 = vmatprep.subr.mxu0 0.0
    %2014 = vmatpush1.xpose.msra.mxu0 0.0
    %2015 = vmatprep.mubr.f32.mxu0 0.0
    %2016 = vmatmul.mubr.f32.gmra.mrb[0].mxu0 %v1947
    %v2017 = vpop.f32.mrb[0].mxu0
    %v2018 = vadd.f32 0.0, %v2017
    %v2019 = vpop.f32.mrb[0].mxu0
    %2020 = vdwg.mxu0
    %2021 = vrot.lane.b32.xlu0 %v227, 112
    %v2022 = vpop.permute.xlu0 %2021
    %2023 = vrot.lane.b32.xlu0 %v227, 64
    %v2024 = vpop.permute.xlu0 %2023
    %v2025 = vsel %vm231, %v2022, 0
    %v2027 = vsel %vm231, %v2024, 0
    %2029 = vmatprep.subr.mxu0 0.0
    %2030 = vmatpush1.xpose.msra.mxu0 %v2027
    %2031 = vmatprep.subr.mxu0 0.0
    %2032 = vmatpush1.xpose.msra.mxu0 0.0
    %2033 = vmatprep.subr.mxu0 0.0
    %2034 = vmatpush1.xpose.msra.mxu0 0.0
    %2035 = vmatprep.subr.mxu0 0.0
    %2036 = vmatpush1.xpose.msra.mxu0 0.0
    %2037 = vmatprep.subr.mxu0 0.0
    %2038 = vmatpush1.xpose.msra.mxu0 0.0
    %2039 = vmatprep.subr.mxu0 0.0
    %2040 = vmatpush1.xpose.msra.mxu0 0.0
    %2041 = vmatprep.subr.mxu0 0.0
    %2042 = vmatpush1.xpose.msra.mxu0 0.0
    %2043 = vmatprep.subr.mxu0 0.0
    %2044 = vmatpush1.xpose.msra.mxu0 0.0
    %2045 = vmatprep.subr.mxu0 0.0
    %2046 = vmatpush1.xpose.msra.mxu0 0.0
    %2047 = vmatprep.subr.mxu0 0.0
    %2048 = vmatpush1.xpose.msra.mxu0 0.0
    %2049 = vmatprep.subr.mxu0 0.0
    %2050 = vmatpush1.xpose.msra.mxu0 0.0
    %2051 = vmatprep.subr.mxu0 0.0
    %2052 = vmatpush1.xpose.msra.mxu0 0.0
    %2053 = vmatprep.subr.mxu0 0.0
    %2054 = vmatpush1.xpose.msra.mxu0 0.0
    %2055 = vmatprep.subr.mxu0 0.0
    %2056 = vmatpush1.xpose.msra.mxu0 0.0
    %2057 = vmatprep.subr.mxu0 0.0
    %2058 = vmatpush1.xpose.msra.mxu0 0.0
    %2059 = vmatprep.subr.mxu0 0.0
    %2060 = vmatpush1.xpose.msra.mxu0 0.0
    %2061 = vmatprep.subr.mxu0 0.0
    %2062 = vmatpush1.xpose.msra.mxu0 0.0
    %2063 = vmatprep.subr.mxu0 0.0
    %2064 = vmatpush1.xpose.msra.mxu0 0.0
    %2065 = vmatprep.subr.mxu0 0.0
    %2066 = vmatpush1.xpose.msra.mxu0 0.0
    %2067 = vmatprep.subr.mxu0 0.0
    %2068 = vmatpush1.xpose.msra.mxu0 0.0
    %2069 = vmatprep.subr.mxu0 0.0
    %2070 = vmatpush1.xpose.msra.mxu0 0.0
    %2071 = vmatprep.subr.mxu0 0.0
    %2072 = vmatpush1.xpose.msra.mxu0 0.0
    %2073 = vmatprep.subr.mxu0 0.0
    %2074 = vmatpush1.xpose.msra.mxu0 0.0
    %2075 = vmatprep.subr.mxu0 0.0
    %2076 = vmatpush1.xpose.msra.mxu0 0.0
    %2077 = vmatprep.subr.mxu0 0.0
    %2078 = vmatpush1.xpose.msra.mxu0 0.0
    %2079 = vmatprep.subr.mxu0 0.0
    %2080 = vmatpush1.xpose.msra.mxu0 0.0
    %2081 = vmatprep.subr.mxu0 0.0
    %2082 = vmatpush1.xpose.msra.mxu0 0.0
    %2083 = vmatprep.subr.mxu0 0.0
    %2084 = vmatpush1.xpose.msra.mxu0 0.0
    %2085 = vmatprep.subr.mxu0 0.0
    %2086 = vmatpush1.xpose.msra.mxu0 0.0
    %2087 = vmatprep.subr.mxu0 0.0
    %2088 = vmatpush1.xpose.msra.mxu0 0.0
    %2089 = vmatprep.subr.mxu0 0.0
    %2090 = vmatpush1.xpose.msra.mxu0 0.0
    %2091 = vmatprep.subr.mxu0 0.0
    %2092 = vmatpush1.xpose.msra.mxu0 0.0
    %2093 = vmatprep.mubr.f32.mxu0 0.0
    %2094 = vmatmul.mubr.f32.gmra.mrb[0].mxu0 %v2025
    %v2095 = vpop.f32.mrb[0].mxu0
    %v2096 = vadd.f32 0.0, %v2095
    %v2097 = vpop.f32.mrb[0].mxu0
    %2098 = vdwg.mxu0
    %2099 = vrot.lane.b32.xlu0 %v228, 112
    %v2100 = vpop.permute.xlu0 %2099
    %2101 = vrot.lane.b32.xlu0 %v228, 64
    %v2102 = vpop.permute.xlu0 %2101
    %v2103 = vsel %vm231, %v2100, 0
    %v2105 = vsel %vm231, %v2102, 0
    %2107 = vmatprep.subr.mxu0 0.0
    %2108 = vmatpush1.xpose.msra.mxu0 %v2105
    %2109 = vmatprep.subr.mxu0 0.0
    %2110 = vmatpush1.xpose.msra.mxu0 0.0
    %2111 = vmatprep.subr.mxu0 0.0
    %2112 = vmatpush1.xpose.msra.mxu0 0.0
    %2113 = vmatprep.subr.mxu0 0.0
    %2114 = vmatpush1.xpose.msra.mxu0 0.0
    %2115 = vmatprep.subr.mxu0 0.0
    %2116 = vmatpush1.xpose.msra.mxu0 0.0
    %2117 = vmatprep.subr.mxu0 0.0
    %2118 = vmatpush1.xpose.msra.mxu0 0.0
    %2119 = vmatprep.subr.mxu0 0.0
    %2120 = vmatpush1.xpose.msra.mxu0 0.0
    %2121 = vmatprep.subr.mxu0 0.0
    %2122 = vmatpush1.xpose.msra.mxu0 0.0
    %2123 = vmatprep.subr.mxu0 0.0
    %2124 = vmatpush1.xpose.msra.mxu0 0.0
    %2125 = vmatprep.subr.mxu0 0.0
    %2126 = vmatpush1.xpose.msra.mxu0 0.0
    %2127 = vmatprep.subr.mxu0 0.0
    %2128 = vmatpush1.xpose.msra.mxu0 0.0
    %2129 = vmatprep.subr.mxu0 0.0
    %2130 = vmatpush1.xpose.msra.mxu0 0.0
    %2131 = vmatprep.subr.mxu0 0.0
    %2132 = vmatpush1.xpose.msra.mxu0 0.0
    %2133 = vmatprep.subr.mxu0 0.0
    %2134 = vmatpush1.xpose.msra.mxu0 0.0
    %2135 = vmatprep.subr.mxu0 0.0
    %2136 = vmatpush1.xpose.msra.mxu0 0.0
    %2137 = vmatprep.subr.mxu0 0.0
    %2138 = vmatpush1.xpose.msra.mxu0 0.0
    %2139 = vmatprep.subr.mxu0 0.0
    %2140 = vmatpush1.xpose.msra.mxu0 0.0
    %2141 = vmatprep.subr.mxu0 0.0
    %2142 = vmatpush1.xpose.msra.mxu0 0.0
    %2143 = vmatprep.subr.mxu0 0.0
    %2144 = vmatpush1.xpose.msra.mxu0 0.0
    %2145 = vmatprep.subr.mxu0 0.0
    %2146 = vmatpush1.xpose.msra.mxu0 0.0
    %2147 = vmatprep.subr.mxu0 0.0
    %2148 = vmatpush1.xpose.msra.mxu0 0.0
    %2149 = vmatprep.subr.mxu0 0.0
    %2150 = vmatpush1.xpose.msra.mxu0 0.0
    %2151 = vmatprep.subr.mxu0 0.0
    %2152 = vmatpush1.xpose.msra.mxu0 0.0
    %2153 = vmatprep.subr.mxu0 0.0
    %2154 = vmatpush1.xpose.msra.mxu0 0.0
    %2155 = vmatprep.subr.mxu0 0.0
    %2156 = vmatpush1.xpose.msra.mxu0 0.0
    %2157 = vmatprep.subr.mxu0 0.0
    %2158 = vmatpush1.xpose.msra.mxu0 0.0
    %2159 = vmatprep.subr.mxu0 0.0
    %2160 = vmatpush1.xpose.msra.mxu0 0.0
    %2161 = vmatprep.subr.mxu0 0.0
    %2162 = vmatpush1.xpose.msra.mxu0 0.0
    %2163 = vmatprep.subr.mxu0 0.0
    %2164 = vmatpush1.xpose.msra.mxu0 0.0
    %2165 = vmatprep.subr.mxu0 0.0
    %2166 = vmatpush1.xpose.msra.mxu0 0.0
    %2167 = vmatprep.subr.mxu0 0.0
    %2168 = vmatpush1.xpose.msra.mxu0 0.0
    %2169 = vmatprep.subr.mxu0 0.0
    %2170 = vmatpush1.xpose.msra.mxu0 0.0
    %2171 = vmatprep.mubr.f32.mxu0 0.0
    %2172 = vmatmul.mubr.f32.gmra.mrb[0].mxu0 %v2103
    %v2173 = vpop.f32.mrb[0].mxu0
    %v2174 = vadd.f32 0.0, %v2173
    %v2175 = vpop.f32.mrb[0].mxu0
    %2176 = vdwg.mxu0
    %v2177 = vmul.f32 %v1628, 0.25
    %v2178 = vmul.f32 %v1706, 0.25
    %v2179 = vmul.f32 %v1784, 0.25
    %v2180 = vmul.f32 %v1862, 0.25
    %v2181 = vmul.f32 %v1940, 0.25
    %v2182 = vmul.f32 %v2018, 0.25
    %v2183 = vmul.f32 %v2096, 0.25
    %v2184 = vmul.f32 %v2174, 0.25
    %v2185 = vsel %vm846, %v2177, -inf
    %2186 = vmax.xlane.f32.xlu0 %v2185
    %v2187 = vpop.xlane.xlu0 %2186
    %v2188 = vsel %vm846, %v2178, -inf
    %2189 = vmax.xlane.f32.xlu0 %v2188
    %v2190 = vpop.xlane.xlu0 %2189
    %v2191 = vsel %vm846, %v2179, -inf
    %2192 = vmax.xlane.f32.xlu0 %v2191
    %v2193 = vpop.xlane.xlu0 %2192
    %v2194 = vsel %vm846, %v2180, -inf
    %2195 = vmax.xlane.f32.xlu0 %v2194
    %v2196 = vpop.xlane.xlu0 %2195
    %v2197 = vsel %vm846, %v2181, -inf
    %2198 = vmax.xlane.f32.xlu0 %v2197
    %v2199 = vpop.xlane.xlu0 %2198
    %v2200 = vsel %vm846, %v2182, -inf
    %2201 = vmax.xlane.f32.xlu0 %v2200
    %v2202 = vpop.xlane.xlu0 %2201
    %v2203 = vsel %vm846, %v2183, -inf
    %2204 = vmax.xlane.f32.xlu0 %v2203
    %v2205 = vpop.xlane.xlu0 %2204
    %v2206 = vsel %vm846, %v2184, -inf
    %2207 = vmax.xlane.f32.xlu0 %v2206
    %v2208 = vpop.xlane.xlu0 %2207
    %v2209 = vsub.f32 %v2177, %v2187
    %v2210 = vsub.f32 %v2178, %v2190
    %v2211 = vsub.f32 %v2179, %v2193
    %v2212 = vsub.f32 %v2180, %v2196
    %v2213 = vsub.f32 %v2181, %v2199
    %v2214 = vsub.f32 %v2182, %v2202
    %v2215 = vsub.f32 %v2183, %v2205
    %v2216 = vsub.f32 %v2184, %v2208
    %v2217 = vmul.f32 %v2209, 1.442695
    %v2218 = vpow.pop %v2217
    %v2219 = vmul.f32 %v2210, 1.442695
    %v2220 = vpow.pop %v2219
    %v2221 = vmul.f32 %v2211, 1.442695
    %v2222 = vpow.pop %v2221
    %v2223 = vmul.f32 %v2212, 1.442695
    %v2224 = vpow.pop %v2223
    %v2225 = vmul.f32 %v2213, 1.442695
    %v2226 = vpow.pop %v2225
    %v2227 = vmul.f32 %v2214, 1.442695
    %v2228 = vpow.pop %v2227
    %v2229 = vmul.f32 %v2215, 1.442695
    %v2230 = vpow.pop %v2229
    %v2231 = vmul.f32 %v2216, 1.442695
    %v2232 = vpow.pop %v2231
    %v2233 = vsel %vm846, %v2218, 0.0
    %2234 = vadd.xlane.f32.xlu0 %v2233
    %v2235 = vpop.xlane.xlu0 %2234
    %v2236 = vsel %vm846, %v2220, 0.0
    %2237 = vadd.xlane.f32.xlu0 %v2236
    %v2238 = vpop.xlane.xlu0 %2237
    %v2239 = vsel %vm846, %v2222, 0.0
    %2240 = vadd.xlane.f32.xlu0 %v2239
    %v2241 = vpop.xlane.xlu0 %2240
    %v2242 = vsel %vm846, %v2224, 0.0
    %2243 = vadd.xlane.f32.xlu0 %v2242
    %v2244 = vpop.xlane.xlu0 %2243
    %v2245 = vsel %vm846, %v2226, 0.0
    %2246 = vadd.xlane.f32.xlu0 %v2245
    %v2247 = vpop.xlane.xlu0 %2246
    %v2248 = vsel %vm846, %v2228, 0.0
    %2249 = vadd.xlane.f32.xlu0 %v2248
    %v2250 = vpop.xlane.xlu0 %2249
    %v2251 = vsel %vm846, %v2230, 0.0
    %2252 = vadd.xlane.f32.xlu0 %v2251
    %v2253 = vpop.xlane.xlu0 %2252
    %v2254 = vsel %vm846, %v2232, 0.0
    %2255 = vadd.xlane.f32.xlu0 %v2254
    %v2256 = vpop.xlane.xlu0 %2255
    %v2257 = vrcp.pop %v2235
    %v2258 = vrcp.pop %v2238
    %v2259 = vrcp.pop %v2241
    %v2260 = vrcp.pop %v2244
    %v2261 = vrcp.pop %v2247
    %v2262 = vrcp.pop %v2250
    %v2263 = vrcp.pop %v2253
    %v2264 = vrcp.pop %v2256
    %v2265 = vmul.f32 %v2218, %v2257
    %v2266 = vmul.f32 %v2220, %v2258
    %v2267 = vmul.f32 %v2222, %v2259
    %v2268 = vmul.f32 %v2224, %v2260
    %v2269 = vmul.f32 %v2226, %v2261
    %v2270 = vmul.f32 %v2228, %v2262
    %v2271 = vmul.f32 %v2230, %v2263
    %v2272 = vmul.f32 %v2232, %v2264
    %2273 = vrot.lane.b32.xlu0 %v221, 16
    %v2274 = vpop.permute.xlu0 %2273
    %v2276 = vsel %vm937, %v2265, 0
    %v2278 = vsel %vm941, %v2274, 0
    %2280 = vmatprep.subr.mxu0 0.0
    %2281 = vmatpush1.msra.mxu0 %v2278
    %2282 = vmatprep.subr.mxu0 0.0
    %2283 = vmatpush1.msra.mxu0 0.0
    %2284 = vmatprep.subr.mxu0 0.0
    %2285 = vmatpush1.msra.mxu0 0.0
    %2286 = vmatprep.subr.mxu0 0.0
    %2287 = vmatpush1.msra.mxu0 0.0
    %2288 = vmatprep.subr.mxu0 0.0
    %2289 = vmatpush1.msra.mxu0 0.0
    %2290 = vmatprep.subr.mxu0 0.0
    %2291 = vmatpush1.msra.mxu0 0.0
    %2292 = vmatprep.subr.mxu0 0.0
    %2293 = vmatpush1.msra.mxu0 0.0
    %2294 = vmatprep.subr.mxu0 0.0
    %2295 = vmatpush1.msra.mxu0 0.0
    %2296 = vmatprep.subr.mxu0 0.0
    %2297 = vmatpush1.msra.mxu0 0.0
    %2298 = vmatprep.subr.mxu0 0.0
    %2299 = vmatpush1.msra.mxu0 0.0
    %2300 = vmatprep.subr.mxu0 0.0
    %2301 = vmatpush1.msra.mxu0 0.0
    %2302 = vmatprep.subr.mxu0 0.0
    %2303 = vmatpush1.msra.mxu0 0.0
    %2304 = vmatprep.subr.mxu0 0.0
    %2305 = vmatpush1.msra.mxu0 0.0
    %2306 = vmatprep.subr.mxu0 0.0
    %2307 = vmatpush1.msra.mxu0 0.0
    %2308 = vmatprep.subr.mxu0 0.0
    %2309 = vmatpush1.msra.mxu0 0.0
    %2310 = vmatprep.subr.mxu0 0.0
    %2311 = vmatpush1.msra.mxu0 0.0
    %2312 = vmatprep.subr.mxu0 0.0
    %2313 = vmatpush1.msra.mxu0 0.0
    %2314 = vmatprep.subr.mxu0 0.0
    %2315 = vmatpush1.msra.mxu0 0.0
    %2316 = vmatprep.subr.mxu0 0.0
    %2317 = vmatpush1.msra.mxu0 0.0
    %2318 = vmatprep.subr.mxu0 0.0
    %2319 = vmatpush1.msra.mxu0 0.0
    %2320 = vmatprep.subr.mxu0 0.0
    %2321 = vmatpush1.msra.mxu0 0.0
    %2322 = vmatprep.subr.mxu0 0.0
    %2323 = vmatpush1.msra.mxu0 0.0
    %2324 = vmatprep.subr.mxu0 0.0
    %2325 = vmatpush1.msra.mxu0 0.0
    %2326 = vmatprep.subr.mxu0 0.0
    %2327 = vmatpush1.msra.mxu0 0.0
    %2328 = vmatprep.subr.mxu0 0.0
    %2329 = vmatpush1.msra.mxu0 0.0
    %2330 = vmatprep.subr.mxu0 0.0
    %2331 = vmatpush1.msra.mxu0 0.0
    %2332 = vmatprep.subr.mxu0 0.0
    %2333 = vmatpush1.msra.mxu0 0.0
    %2334 = vmatprep.subr.mxu0 0.0
    %2335 = vmatpush1.msra.mxu0 0.0
    %2336 = vmatprep.subr.mxu0 0.0
    %2337 = vmatpush1.msra.mxu0 0.0
    %2338 = vmatprep.subr.mxu0 0.0
    %2339 = vmatpush1.msra.mxu0 0.0
    %2340 = vmatprep.subr.mxu0 0.0
    %2341 = vmatpush1.msra.mxu0 0.0
    %2342 = vmatprep.subr.mxu0 0.0
    %2343 = vmatpush1.msra.mxu0 0.0
    %2344 = vmatprep.mubr.f32.mxu0 0.0
    %2345 = vmatmul.mubr.f32.gmra.mrb[0].mxu0 %v2276
    %v2346 = vpop.f32.mrb[0].mxu0
    %v2347 = vadd.f32 0.0, %v2346
    %v2348 = vpop.f32.mrb[0].mxu0
    %2349 = vdwg.mxu0
    %2350 = vrot.lane.b32.xlu0 %v222, 16
    %v2351 = vpop.permute.xlu0 %2350
    %v2353 = vsel %vm937, %v2266, 0
    %v2355 = vsel %vm941, %v2351, 0
    %2357 = vmatprep.subr.mxu0 0.0
    %2358 = vmatpush1.msra.mxu0 %v2355
    %2359 = vmatprep.subr.mxu0 0.0
    %2360 = vmatpush1.msra.mxu0 0.0
    %2361 = vmatprep.subr.mxu0 0.0
    %2362 = vmatpush1.msra.mxu0 0.0
    %2363 = vmatprep.subr.mxu0 0.0
    %2364 = vmatpush1.msra.mxu0 0.0
    %2365 = vmatprep.subr.mxu0 0.0
    %2366 = vmatpush1.msra.mxu0 0.0
    %2367 = vmatprep.subr.mxu0 0.0
    %2368 = vmatpush1.msra.mxu0 0.0
    %2369 = vmatprep.subr.mxu0 0.0
    %2370 = vmatpush1.msra.mxu0 0.0
    %2371 = vmatprep.subr.mxu0 0.0
    %2372 = vmatpush1.msra.mxu0 0.0
    %2373 = vmatprep.subr.mxu0 0.0
    %2374 = vmatpush1.msra.mxu0 0.0
    %2375 = vmatprep.subr.mxu0 0.0
    %2376 = vmatpush1.msra.mxu0 0.0
    %2377 = vmatprep.subr.mxu0 0.0
    %2378 = vmatpush1.msra.mxu0 0.0
    %2379 = vmatprep.subr.mxu0 0.0
    %2380 = vmatpush1.msra.mxu0 0.0
    %2381 = vmatprep.subr.mxu0 0.0
    %2382 = vmatpush1.msra.mxu0 0.0
    %2383 = vmatprep.subr.mxu0 0.0
    %2384 = vmatpush1.msra.mxu0 0.0
    %2385 = vmatprep.subr.mxu0 0.0
    %2386 = vmatpush1.msra.mxu0 0.0
    %2387 = vmatprep.subr.mxu0 0.0
    %2388 = vmatpush1.msra.mxu0 0.0
    %2389 = vmatprep.subr.mxu0 0.0
    %2390 = vmatpush1.msra.mxu0 0.0
    %2391 = vmatprep.subr.mxu0 0.0
    %2392 = vmatpush1.msra.mxu0 0.0
    %2393 = vmatprep.subr.mxu0 0.0
    %2394 = vmatpush1.msra.mxu0 0.0
    %2395 = vmatprep.subr.mxu0 0.0
    %2396 = vmatpush1.msra.mxu0 0.0
    %2397 = vmatprep.subr.mxu0 0.0
    %2398 = vmatpush1.msra.mxu0 0.0
    %2399 = vmatprep.subr.mxu0 0.0
    %2400 = vmatpush1.msra.mxu0 0.0
    %2401 = vmatprep.subr.mxu0 0.0
    %2402 = vmatpush1.msra.mxu0 0.0
    %2403 = vmatprep.subr.mxu0 0.0
    %2404 = vmatpush1.msra.mxu0 0.0
    %2405 = vmatprep.subr.mxu0 0.0
    %2406 = vmatpush1.msra.mxu0 0.0
    %2407 = vmatprep.subr.mxu0 0.0
    %2408 = vmatpush1.msra.mxu0 0.0
    %2409 = vmatprep.subr.mxu0 0.0
    %2410 = vmatpush1.msra.mxu0 0.0
    %2411 = vmatprep.subr.mxu0 0.0
    %2412 = vmatpush1.msra.mxu0 0.0
    %2413 = vmatprep.subr.mxu0 0.0
    %2414 = vmatpush1.msra.mxu0 0.0
    %2415 = vmatprep.subr.mxu0 0.0
    %2416 = vmatpush1.msra.mxu0 0.0
    %2417 = vmatprep.subr.mxu0 0.0
    %2418 = vmatpush1.msra.mxu0 0.0
    %2419 = vmatprep.subr.mxu0 0.0
    %2420 = vmatpush1.msra.mxu0 0.0
    %2421 = vmatprep.mubr.f32.mxu0 0.0
    %2422 = vmatmul.mubr.f32.gmra.mrb[0].mxu0 %v2353
    %v2423 = vpop.f32.mrb[0].mxu0
    %v2424 = vadd.f32 0.0, %v2423
    %v2425 = vpop.f32.mrb[0].mxu0
    %2426 = vdwg.mxu0
    %2427 = vrot.lane.b32.xlu0 %v223, 16
    %v2428 = vpop.permute.xlu0 %2427
    %v2430 = vsel %vm937, %v2267, 0
    %v2432 = vsel %vm941, %v2428, 0
    %2434 = vmatprep.subr.mxu0 0.0
    %2435 = vmatpush1.msra.mxu0 %v2432
    %2436 = vmatprep.subr.mxu0 0.0
    %2437 = vmatpush1.msra.mxu0 0.0
    %2438 = vmatprep.subr.mxu0 0.0
    %2439 = vmatpush1.msra.mxu0 0.0
    %2440 = vmatprep.subr.mxu0 0.0
    %2441 = vmatpush1.msra.mxu0 0.0
    %2442 = vmatprep.subr.mxu0 0.0
    %2443 = vmatpush1.msra.mxu0 0.0
    %2444 = vmatprep.subr.mxu0 0.0
    %2445 = vmatpush1.msra.mxu0 0.0
    %2446 = vmatprep.subr.mxu0 0.0
    %2447 = vmatpush1.msra.mxu0 0.0
    %2448 = vmatprep.subr.mxu0 0.0
    %2449 = vmatpush1.msra.mxu0 0.0
    %2450 = vmatprep.subr.mxu0 0.0
    %2451 = vmatpush1.msra.mxu0 0.0
    %2452 = vmatprep.subr.mxu0 0.0
    %2453 = vmatpush1.msra.mxu0 0.0
    %2454 = vmatprep.subr.mxu0 0.0
    %2455 = vmatpush1.msra.mxu0 0.0
    %2456 = vmatprep.subr.mxu0 0.0
    %2457 = vmatpush1.msra.mxu0 0.0
    %2458 = vmatprep.subr.mxu0 0.0
    %2459 = vmatpush1.msra.mxu0 0.0
    %2460 = vmatprep.subr.mxu0 0.0
    %2461 = vmatpush1.msra.mxu0 0.0
    %2462 = vmatprep.subr.mxu0 0.0
    %2463 = vmatpush1.msra.mxu0 0.0
    %2464 = vmatprep.subr.mxu0 0.0
    %2465 = vmatpush1.msra.mxu0 0.0
    %2466 = vmatprep.subr.mxu0 0.0
    %2467 = vmatpush1.msra.mxu0 0.0
    %2468 = vmatprep.subr.mxu0 0.0
    %2469 = vmatpush1.msra.mxu0 0.0
    %2470 = vmatprep.subr.mxu0 0.0
    %2471 = vmatpush1.msra.mxu0 0.0
    %2472 = vmatprep.subr.mxu0 0.0
    %2473 = vmatpush1.msra.mxu0 0.0
    %2474 = vmatprep.subr.mxu0 0.0
    %2475 = vmatpush1.msra.mxu0 0.0
    %2476 = vmatprep.subr.mxu0 0.0
    %2477 = vmatpush1.msra.mxu0 0.0
    %2478 = vmatprep.subr.mxu0 0.0
    %2479 = vmatpush1.msra.mxu0 0.0
    %2480 = vmatprep.subr.mxu0 0.0
    %2481 = vmatpush1.msra.mxu0 0.0
    %2482 = vmatprep.subr.mxu0 0.0
    %2483 = vmatpush1.msra.mxu0 0.0
    %2484 = vmatprep.subr.mxu0 0.0
    %2485 = vmatpush1.msra.mxu0 0.0
    %2486 = vmatprep.subr.mxu0 0.0
    %2487 = vmatpush1.msra.mxu0 0.0
    %2488 = vmatprep.subr.mxu0 0.0
    %2489 = vmatpush1.msra.mxu0 0.0
    %2490 = vmatprep.subr.mxu0 0.0
    %2491 = vmatpush1.msra.mxu0 0.0
    %2492 = vmatprep.subr.mxu0 0.0
    %2493 = vmatpush1.msra.mxu0 0.0
    %2494 = vmatprep.subr.mxu0 0.0
    %2495 = vmatpush1.msra.mxu0 0.0
    %2496 = vmatprep.subr.mxu0 0.0
    %2497 = vmatpush1.msra.mxu0 0.0
    %2498 = vmatprep.mubr.f32.mxu0 0.0
    %2499 = vmatmul.mubr.f32.gmra.mrb[0].mxu0 %v2430
    %v2500 = vpop.f32.mrb[0].mxu0
    %v2501 = vadd.f32 0.0, %v2500
    %v2502 = vpop.f32.mrb[0].mxu0
    %2503 = vdwg.mxu0
    %2504 = vrot.lane.b32.xlu0 %v224, 16
    %v2505 = vpop.permute.xlu0 %2504
    %v2507 = vsel %vm937, %v2268, 0
    %v2509 = vsel %vm941, %v2505, 0
    %2511 = vmatprep.subr.mxu0 0.0
    %2512 = vmatpush1.msra.mxu0 %v2509
    %2513 = vmatprep.subr.mxu0 0.0
    %2514 = vmatpush1.msra.mxu0 0.0
    %2515 = vmatprep.subr.mxu0 0.0
    %2516 = vmatpush1.msra.mxu0 0.0
    %2517 = vmatprep.subr.mxu0 0.0
    %2518 = vmatpush1.msra.mxu0 0.0
    %2519 = vmatprep.subr.mxu0 0.0
    %2520 = vmatpush1.msra.mxu0 0.0
    %2521 = vmatprep.subr.mxu0 0.0
    %2522 = vmatpush1.msra.mxu0 0.0
    %2523 = vmatprep.subr.mxu0 0.0
    %2524 = vmatpush1.msra.mxu0 0.0
    %2525 = vmatprep.subr.mxu0 0.0
    %2526 = vmatpush1.msra.mxu0 0.0
    %2527 = vmatprep.subr.mxu0 0.0
    %2528 = vmatpush1.msra.mxu0 0.0
    %2529 = vmatprep.subr.mxu0 0.0
    %2530 = vmatpush1.msra.mxu0 0.0
    %2531 = vmatprep.subr.mxu0 0.0
    %2532 = vmatpush1.msra.mxu0 0.0
    %2533 = vmatprep.subr.mxu0 0.0
    %2534 = vmatpush1.msra.mxu0 0.0
    %2535 = vmatprep.subr.mxu0 0.0
    %2536 = vmatpush1.msra.mxu0 0.0
    %2537 = vmatprep.subr.mxu0 0.0
    %2538 = vmatpush1.msra.mxu0 0.0
    %2539 = vmatprep.subr.mxu0 0.0
    %2540 = vmatpush1.msra.mxu0 0.0
    %2541 = vmatprep.subr.mxu0 0.0
    %2542 = vmatpush1.msra.mxu0 0.0
    %2543 = vmatprep.subr.mxu0 0.0
    %2544 = vmatpush1.msra.mxu0 0.0
    %2545 = vmatprep.subr.mxu0 0.0
    %2546 = vmatpush1.msra.mxu0 0.0
    %2547 = vmatprep.subr.mxu0 0.0
    %2548 = vmatpush1.msra.mxu0 0.0
    %2549 = vmatprep.subr.mxu0 0.0
    %2550 = vmatpush1.msra.mxu0 0.0
    %2551 = vmatprep.subr.mxu0 0.0
    %2552 = vmatpush1.msra.mxu0 0.0
    %2553 = vmatprep.subr.mxu0 0.0
    %2554 = vmatpush1.msra.mxu0 0.0
    %2555 = vmatprep.subr.mxu0 0.0
    %2556 = vmatpush1.msra.mxu0 0.0
    %2557 = vmatprep.subr.mxu0 0.0
    %2558 = vmatpush1.msra.mxu0 0.0
    %2559 = vmatprep.subr.mxu0 0.0
    %2560 = vmatpush1.msra.mxu0 0.0
    %2561 = vmatprep.subr.mxu0 0.0
    %2562 = vmatpush1.msra.mxu0 0.0
    %2563 = vmatprep.subr.mxu0 0.0
    %2564 = vmatpush1.msra.mxu0 0.0
    %2565 = vmatprep.subr.mxu0 0.0
    %2566 = vmatpush1.msra.mxu0 0.0
    %2567 = vmatprep.subr.mxu0 0.0
    %2568 = vmatpush1.msra.mxu0 0.0
    %2569 = vmatprep.subr.mxu0 0.0
    %2570 = vmatpush1.msra.mxu0 0.0
    %2571 = vmatprep.subr.mxu0 0.0
    %2572 = vmatpush1.msra.mxu0 0.0
    %2573 = vmatprep.subr.mxu0 0.0
    %2574 = vmatpush1.msra.mxu0 0.0
    %2575 = vmatprep.mubr.f32.mxu0 0.0
    %2576 = vmatmul.mubr.f32.gmra.mrb[0].mxu0 %v2507
    %v2577 = vpop.f32.mrb[0].mxu0
    %v2578 = vadd.f32 0.0, %v2577
    %v2579 = vpop.f32.mrb[0].mxu0
    %2580 = vdwg.mxu0
    %2581 = vrot.lane.b32.xlu0 %v225, 16
    %v2582 = vpop.permute.xlu0 %2581
    %v2584 = vsel %vm937, %v2269, 0
    %v2586 = vsel %vm941, %v2582, 0
    %2588 = vmatprep.subr.mxu0 0.0
    %2589 = vmatpush1.msra.mxu0 %v2586
    %2590 = vmatprep.subr.mxu0 0.0
    %2591 = vmatpush1.msra.mxu0 0.0
    %2592 = vmatprep.subr.mxu0 0.0
    %2593 = vmatpush1.msra.mxu0 0.0
    %2594 = vmatprep.subr.mxu0 0.0
    %2595 = vmatpush1.msra.mxu0 0.0
    %2596 = vmatprep.subr.mxu0 0.0
    %2597 = vmatpush1.msra.mxu0 0.0
    %2598 = vmatprep.subr.mxu0 0.0
    %2599 = vmatpush1.msra.mxu0 0.0
    %2600 = vmatprep.subr.mxu0 0.0
    %2601 = vmatpush1.msra.mxu0 0.0
    %2602 = vmatprep.subr.mxu0 0.0
    %2603 = vmatpush1.msra.mxu0 0.0
    %2604 = vmatprep.subr.mxu0 0.0
    %2605 = vmatpush1.msra.mxu0 0.0
    %2606 = vmatprep.subr.mxu0 0.0
    %2607 = vmatpush1.msra.mxu0 0.0
    %2608 = vmatprep.subr.mxu0 0.0
    %2609 = vmatpush1.msra.mxu0 0.0
    %2610 = vmatprep.subr.mxu0 0.0
    %2611 = vmatpush1.msra.mxu0 0.0
    %2612 = vmatprep.subr.mxu0 0.0
    %2613 = vmatpush1.msra.mxu0 0.0
    %2614 = vmatprep.subr.mxu0 0.0
    %2615 = vmatpush1.msra.mxu0 0.0
    %2616 = vmatprep.subr.mxu0 0.0
    %2617 = vmatpush1.msra.mxu0 0.0
    %2618 = vmatprep.subr.mxu0 0.0
    %2619 = vmatpush1.msra.mxu0 0.0
    %2620 = vmatprep.subr.mxu0 0.0
    %2621 = vmatpush1.msra.mxu0 0.0
    %2622 = vmatprep.subr.mxu0 0.0
    %2623 = vmatpush1.msra.mxu0 0.0
    %2624 = vmatprep.subr.mxu0 0.0
    %2625 = vmatpush1.msra.mxu0 0.0
    %2626 = vmatprep.subr.mxu0 0.0
    %2627 = vmatpush1.msra.mxu0 0.0
    %2628 = vmatprep.subr.mxu0 0.0
    %2629 = vmatpush1.msra.mxu0 0.0
    %2630 = vmatprep.subr.mxu0 0.0
    %2631 = vmatpush1.msra.mxu0 0.0
    %2632 = vmatprep.subr.mxu0 0.0
    %2633 = vmatpush1.msra.mxu0 0.0
    %2634 = vmatprep.subr.mxu0 0.0
    %2635 = vmatpush1.msra.mxu0 0.0
    %2636 = vmatprep.subr.mxu0 0.0
    %2637 = vmatpush1.msra.mxu0 0.0
    %2638 = vmatprep.subr.mxu0 0.0
    %2639 = vmatpush1.msra.mxu0 0.0
    %2640 = vmatprep.subr.mxu0 0.0
    %2641 = vmatpush1.msra.mxu0 0.0
    %2642 = vmatprep.subr.mxu0 0.0
    %2643 = vmatpush1.msra.mxu0 0.0
    %2644 = vmatprep.subr.mxu0 0.0
    %2645 = vmatpush1.msra.mxu0 0.0
    %2646 = vmatprep.subr.mxu0 0.0
    %2647 = vmatpush1.msra.mxu0 0.0
    %2648 = vmatprep.subr.mxu0 0.0
    %2649 = vmatpush1.msra.mxu0 0.0
    %2650 = vmatprep.subr.mxu0 0.0
    %2651 = vmatpush1.msra.mxu0 0.0
    %2652 = vmatprep.mubr.f32.mxu0 0.0
    %2653 = vmatmul.mubr.f32.gmra.mrb[0].mxu0 %v2584
    %v2654 = vpop.f32.mrb[0].mxu0
    %v2655 = vadd.f32 0.0, %v2654
    %v2656 = vpop.f32.mrb[0].mxu0
    %2657 = vdwg.mxu0
    %2658 = vrot.lane.b32.xlu0 %v226, 16
    %v2659 = vpop.permute.xlu0 %2658
    %v2661 = vsel %vm937, %v2270, 0
    %v2663 = vsel %vm941, %v2659, 0
    %2665 = vmatprep.subr.mxu0 0.0
    %2666 = vmatpush1.msra.mxu0 %v2663
    %2667 = vmatprep.subr.mxu0 0.0
    %2668 = vmatpush1.msra.mxu0 0.0
    %2669 = vmatprep.subr.mxu0 0.0
    %2670 = vmatpush1.msra.mxu0 0.0
    %2671 = vmatprep.subr.mxu0 0.0
    %2672 = vmatpush1.msra.mxu0 0.0
    %2673 = vmatprep.subr.mxu0 0.0
    %2674 = vmatpush1.msra.mxu0 0.0
    %2675 = vmatprep.subr.mxu0 0.0
    %2676 = vmatpush1.msra.mxu0 0.0
    %2677 = vmatprep.subr.mxu0 0.0
    %2678 = vmatpush1.msra.mxu0 0.0
    %2679 = vmatprep.subr.mxu0 0.0
    %2680 = vmatpush1.msra.mxu0 0.0
    %2681 = vmatprep.subr.mxu0 0.0
    %2682 = vmatpush1.msra.mxu0 0.0
    %2683 = vmatprep.subr.mxu0 0.0
    %2684 = vmatpush1.msra.mxu0 0.0
    %2685 = vmatprep.subr.mxu0 0.0
    %2686 = vmatpush1.msra.mxu0 0.0
    %2687 = vmatprep.subr.mxu0 0.0
    %2688 = vmatpush1.msra.mxu0 0.0
    %2689 = vmatprep.subr.mxu0 0.0
    %2690 = vmatpush1.msra.mxu0 0.0
    %2691 = vmatprep.subr.mxu0 0.0
    %2692 = vmatpush1.msra.mxu0 0.0
    %2693 = vmatprep.subr.mxu0 0.0
    %2694 = vmatpush1.msra.mxu0 0.0
    %2695 = vmatprep.subr.mxu0 0.0
    %2696 = vmatpush1.msra.mxu0 0.0
    %2697 = vmatprep.subr.mxu0 0.0
    %2698 = vmatpush1.msra.mxu0 0.0
    %2699 = vmatprep.subr.mxu0 0.0
    %2700 = vmatpush1.msra.mxu0 0.0
    %2701 = vmatprep.subr.mxu0 0.0
    %2702 = vmatpush1.msra.mxu0 0.0
    %2703 = vmatprep.subr.mxu0 0.0
    %2704 = vmatpush1.msra.mxu0 0.0
    %2705 = vmatprep.subr.mxu0 0.0
    %2706 = vmatpush1.msra.mxu0 0.0
    %2707 = vmatprep.subr.mxu0 0.0
    %2708 = vmatpush1.msra.mxu0 0.0
    %2709 = vmatprep.subr.mxu0 0.0
    %2710 = vmatpush1.msra.mxu0 0.0
    %2711 = vmatprep.subr.mxu0 0.0
    %2712 = vmatpush1.msra.mxu0 0.0
    %2713 = vmatprep.subr.mxu0 0.0
    %2714 = vmatpush1.msra.mxu0 0.0
    %2715 = vmatprep.subr.mxu0 0.0
    %2716 = vmatpush1.msra.mxu0 0.0
    %2717 = vmatprep.subr.mxu0 0.0
    %2718 = vmatpush1.msra.mxu0 0.0
    %2719 = vmatprep.subr.mxu0 0.0
    %2720 = vmatpush1.msra.mxu0 0.0
    %2721 = vmatprep.subr.mxu0 0.0
    %2722 = vmatpush1.msra.mxu0 0.0
    %2723 = vmatprep.subr.mxu0 0.0
    %2724 = vmatpush1.msra.mxu0 0.0
    %2725 = vmatprep.subr.mxu0 0.0
    %2726 = vmatpush1.msra.mxu0 0.0
    %2727 = vmatprep.subr.mxu0 0.0
    %2728 = vmatpush1.msra.mxu0 0.0
    %2729 = vmatprep.mubr.f32.mxu0 0.0
    %2730 = vmatmul.mubr.f32.gmra.mrb[0].mxu0 %v2661
    %v2731 = vpop.f32.mrb[0].mxu0
    %v2732 = vadd.f32 0.0, %v2731
    %v2733 = vpop.f32.mrb[0].mxu0
    %2734 = vdwg.mxu0
    %2735 = vrot.lane.b32.xlu0 %v227, 16
    %v2736 = vpop.permute.xlu0 %2735
    %v2738 = vsel %vm937, %v2271, 0
    %v2740 = vsel %vm941, %v2736, 0
    %2742 = vmatprep.subr.mxu0 0.0
    %2743 = vmatpush1.msra.mxu0 %v2740
    %2744 = vmatprep.subr.mxu0 0.0
    %2745 = vmatpush1.msra.mxu0 0.0
    %2746 = vmatprep.subr.mxu0 0.0
    %2747 = vmatpush1.msra.mxu0 0.0
    %2748 = vmatprep.subr.mxu0 0.0
    %2749 = vmatpush1.msra.mxu0 0.0
    %2750 = vmatprep.subr.mxu0 0.0
    %2751 = vmatpush1.msra.mxu0 0.0
    %2752 = vmatprep.subr.mxu0 0.0
    %2753 = vmatpush1.msra.mxu0 0.0
    %2754 = vmatprep.subr.mxu0 0.0
    %2755 = vmatpush1.msra.mxu0 0.0
    %2756 = vmatprep.subr.mxu0 0.0
    %2757 = vmatpush1.msra.mxu0 0.0
    %2758 = vmatprep.subr.mxu0 0.0
    %2759 = vmatpush1.msra.mxu0 0.0
    %2760 = vmatprep.subr.mxu0 0.0
    %2761 = vmatpush1.msra.mxu0 0.0
    %2762 = vmatprep.subr.mxu0 0.0
    %2763 = vmatpush1.msra.mxu0 0.0
    %2764 = vmatprep.subr.mxu0 0.0
    %2765 = vmatpush1.msra.mxu0 0.0
    %2766 = vmatprep.subr.mxu0 0.0
    %2767 = vmatpush1.msra.mxu0 0.0
    %2768 = vmatprep.subr.mxu0 0.0
    %2769 = vmatpush1.msra.mxu0 0.0
    %2770 = vmatprep.subr.mxu0 0.0
    %2771 = vmatpush1.msra.mxu0 0.0
    %2772 = vmatprep.subr.mxu0 0.0
    %2773 = vmatpush1.msra.mxu0 0.0
    %2774 = vmatprep.subr.mxu0 0.0
    %2775 = vmatpush1.msra.mxu0 0.0
    %2776 = vmatprep.subr.mxu0 0.0
    %2777 = vmatpush1.msra.mxu0 0.0
    %2778 = vmatprep.subr.mxu0 0.0
    %2779 = vmatpush1.msra.mxu0 0.0
    %2780 = vmatprep.subr.mxu0 0.0
    %2781 = vmatpush1.msra.mxu0 0.0
    %2782 = vmatprep.subr.mxu0 0.0
    %2783 = vmatpush1.msra.mxu0 0.0
    %2784 = vmatprep.subr.mxu0 0.0
    %2785 = vmatpush1.msra.mxu0 0.0
    %2786 = vmatprep.subr.mxu0 0.0
    %2787 = vmatpush1.msra.mxu0 0.0
    %2788 = vmatprep.subr.mxu0 0.0
    %2789 = vmatpush1.msra.mxu0 0.0
    %2790 = vmatprep.subr.mxu0 0.0
    %2791 = vmatpush1.msra.mxu0 0.0
    %2792 = vmatprep.subr.mxu0 0.0
    %2793 = vmatpush1.msra.mxu0 0.0
    %2794 = vmatprep.subr.mxu0 0.0
    %2795 = vmatpush1.msra.mxu0 0.0
    %2796 = vmatprep.subr.mxu0 0.0
    %2797 = vmatpush1.msra.mxu0 0.0
    %2798 = vmatprep.subr.mxu0 0.0
    %2799 = vmatpush1.msra.mxu0 0.0
    %2800 = vmatprep.subr.mxu0 0.0
    %2801 = vmatpush1.msra.mxu0 0.0
    %2802 = vmatprep.subr.mxu0 0.0
    %2803 = vmatpush1.msra.mxu0 0.0
    %2804 = vmatprep.subr.mxu0 0.0
    %2805 = vmatpush1.msra.mxu0 0.0
    %2806 = vmatprep.mubr.f32.mxu0 0.0
    %2807 = vmatmul.mubr.f32.gmra.mrb[0].mxu0 %v2738
    %v2808 = vpop.f32.mrb[0].mxu0
    %v2809 = vadd.f32 0.0, %v2808
    %v2810 = vpop.f32.mrb[0].mxu0
    %2811 = vdwg.mxu0
    %2812 = vrot.lane.b32.xlu0 %v228, 16
    %v2813 = vpop.permute.xlu0 %2812
    %v2815 = vsel %vm937, %v2272, 0
    %v2817 = vsel %vm941, %v2813, 0
    %2819 = vmatprep.subr.mxu0 0.0
    %2820 = vmatpush1.msra.mxu0 %v2817
    %2821 = vmatprep.subr.mxu0 0.0
    %2822 = vmatpush1.msra.mxu0 0.0
    %2823 = vmatprep.subr.mxu0 0.0
    %2824 = vmatpush1.msra.mxu0 0.0
    %2825 = vmatprep.subr.mxu0 0.0
    %2826 = vmatpush1.msra.mxu0 0.0
    %2827 = vmatprep.subr.mxu0 0.0
    %2828 = vmatpush1.msra.mxu0 0.0
    %2829 = vmatprep.subr.mxu0 0.0
    %2830 = vmatpush1.msra.mxu0 0.0
    %2831 = vmatprep.subr.mxu0 0.0
    %2832 = vmatpush1.msra.mxu0 0.0
    %2833 = vmatprep.subr.mxu0 0.0
    %2834 = vmatpush1.msra.mxu0 0.0
    %2835 = vmatprep.subr.mxu0 0.0
    %2836 = vmatpush1.msra.mxu0 0.0
    %2837 = vmatprep.subr.mxu0 0.0
    %2838 = vmatpush1.msra.mxu0 0.0
    %2839 = vmatprep.subr.mxu0 0.0
    %2840 = vmatpush1.msra.mxu0 0.0
    %2841 = vmatprep.subr.mxu0 0.0
    %2842 = vmatpush1.msra.mxu0 0.0
    %2843 = vmatprep.subr.mxu0 0.0
    %2844 = vmatpush1.msra.mxu0 0.0
    %2845 = vmatprep.subr.mxu0 0.0
    %2846 = vmatpush1.msra.mxu0 0.0
    %2847 = vmatprep.subr.mxu0 0.0
    %2848 = vmatpush1.msra.mxu0 0.0
    %2849 = vmatprep.subr.mxu0 0.0
    %2850 = vmatpush1.msra.mxu0 0.0
    %2851 = vmatprep.subr.mxu0 0.0
    %2852 = vmatpush1.msra.mxu0 0.0
    %2853 = vmatprep.subr.mxu0 0.0
    %2854 = vmatpush1.msra.mxu0 0.0
    %2855 = vmatprep.subr.mxu0 0.0
    %2856 = vmatpush1.msra.mxu0 0.0
    %2857 = vmatprep.subr.mxu0 0.0
    %2858 = vmatpush1.msra.mxu0 0.0
    %2859 = vmatprep.subr.mxu0 0.0
    %2860 = vmatpush1.msra.mxu0 0.0
    %2861 = vmatprep.subr.mxu0 0.0
    %2862 = vmatpush1.msra.mxu0 0.0
    %2863 = vmatprep.subr.mxu0 0.0
    %2864 = vmatpush1.msra.mxu0 0.0
    %2865 = vmatprep.subr.mxu0 0.0
    %2866 = vmatpush1.msra.mxu0 0.0
    %2867 = vmatprep.subr.mxu0 0.0
    %2868 = vmatpush1.msra.mxu0 0.0
    %2869 = vmatprep.subr.mxu0 0.0
    %2870 = vmatpush1.msra.mxu0 0.0
    %2871 = vmatprep.subr.mxu0 0.0
    %2872 = vmatpush1.msra.mxu0 0.0
    %2873 = vmatprep.subr.mxu0 0.0
    %2874 = vmatpush1.msra.mxu0 0.0
    %2875 = vmatprep.subr.mxu0 0.0
    %2876 = vmatpush1.msra.mxu0 0.0
    %2877 = vmatprep.subr.mxu0 0.0
    %2878 = vmatpush1.msra.mxu0 0.0
    %2879 = vmatprep.subr.mxu0 0.0
    %2880 = vmatpush1.msra.mxu0 0.0
    %2881 = vmatprep.subr.mxu0 0.0
    %2882 = vmatpush1.msra.mxu0 0.0
    %2883 = vmatprep.mubr.f32.mxu0 0.0
    %2884 = vmatmul.mubr.f32.gmra.mrb[0].mxu0 %v2815
    %v2885 = vpop.f32.mrb[0].mxu0
    %v2886 = vadd.f32 0.0, %v2885
    %v2887 = vpop.f32.mrb[0].mxu0
    %2888 = vdwg.mxu0
    %2889 = vrot.lane.b32.xlu0 %v221, 96
    %v2890 = vpop.permute.xlu0 %2889
    %2891 = vrot.lane.b32.xlu0 %v221, 48
    %v2892 = vpop.permute.xlu0 %2891
    %v2893 = vsel %vm231, %v2890, 0
    %v2895 = vsel %vm231, %v2892, 0
    %2897 = vmatprep.subr.mxu0 0.0
    %2898 = vmatpush1.xpose.msra.mxu0 %v2895
    %2899 = vmatprep.subr.mxu0 0.0
    %2900 = vmatpush1.xpose.msra.mxu0 0.0
    %2901 = vmatprep.subr.mxu0 0.0
    %2902 = vmatpush1.xpose.msra.mxu0 0.0
    %2903 = vmatprep.subr.mxu0 0.0
    %2904 = vmatpush1.xpose.msra.mxu0 0.0
    %2905 = vmatprep.subr.mxu0 0.0
    %2906 = vmatpush1.xpose.msra.mxu0 0.0
    %2907 = vmatprep.subr.mxu0 0.0
    %2908 = vmatpush1.xpose.msra.mxu0 0.0
    %2909 = vmatprep.subr.mxu0 0.0
    %2910 = vmatpush1.xpose.msra.mxu0 0.0
    %2911 = vmatprep.subr.mxu0 0.0
    %2912 = vmatpush1.xpose.msra.mxu0 0.0
    %2913 = vmatprep.subr.mxu0 0.0
    %2914 = vmatpush1.xpose.msra.mxu0 0.0
    %2915 = vmatprep.subr.mxu0 0.0
    %2916 = vmatpush1.xpose.msra.mxu0 0.0
    %2917 = vmatprep.subr.mxu0 0.0
    %2918 = vmatpush1.xpose.msra.mxu0 0.0
    %2919 = vmatprep.subr.mxu0 0.0
    %2920 = vmatpush1.xpose.msra.mxu0 0.0
    %2921 = vmatprep.subr.mxu0 0.0
    %2922 = vmatpush1.xpose.msra.mxu0 0.0
    %2923 = vmatprep.subr.mxu0 0.0
    %2924 = vmatpush1.xpose.msra.mxu0 0.0
    %2925 = vmatprep.subr.mxu0 0.0
    %2926 = vmatpush1.xpose.msra.mxu0 0.0
    %2927 = vmatprep.subr.mxu0 0.0
    %2928 = vmatpush1.xpose.msra.mxu0 0.0
    %2929 = vmatprep.subr.mxu0 0.0
    %2930 = vmatpush1.xpose.msra.mxu0 0.0
    %2931 = vmatprep.subr.mxu0 0.0
    %2932 = vmatpush1.xpose.msra.mxu0 0.0
    %2933 = vmatprep.subr.mxu0 0.0
    %2934 = vmatpush1.xpose.msra.mxu0 0.0
    %2935 = vmatprep.subr.mxu0 0.0
    %2936 = vmatpush1.xpose.msra.mxu0 0.0
    %2937 = vmatprep.subr.mxu0 0.0
    %2938 = vmatpush1.xpose.msra.mxu0 0.0
    %2939 = vmatprep.subr.mxu0 0.0
    %2940 = vmatpush1.xpose.msra.mxu0 0.0
    %2941 = vmatprep.subr.mxu0 0.0
    %2942 = vmatpush1.xpose.msra.mxu0 0.0
    %2943 = vmatprep.subr.mxu0 0.0
    %2944 = vmatpush1.xpose.msra.mxu0 0.0
    %2945 = vmatprep.subr.mxu0 0.0
    %2946 = vmatpush1.xpose.msra.mxu0 0.0
    %2947 = vmatprep.subr.mxu0 0.0
    %2948 = vmatpush1.xpose.msra.mxu0 0.0
    %2949 = vmatprep.subr.mxu0 0.0
    %2950 = vmatpush1.xpose.msra.mxu0 0.0
    %2951 = vmatprep.subr.mxu0 0.0
    %2952 = vmatpush1.xpose.msra.mxu0 0.0
    %2953 = vmatprep.subr.mxu0 0.0
    %2954 = vmatpush1.xpose.msra.mxu0 0.0
    %2955 = vmatprep.subr.mxu0 0.0
    %2956 = vmatpush1.xpose.msra.mxu0 0.0
    %2957 = vmatprep.subr.mxu0 0.0
    %2958 = vmatpush1.xpose.msra.mxu0 0.0
    %2959 = vmatprep.subr.mxu0 0.0
    %2960 = vmatpush1.xpose.msra.mxu0 0.0
    %2961 = vmatprep.mubr.f32.mxu0 0.0
    %2962 = vmatmul.mubr.f32.gmra.mrb[0].mxu0 %v2893
    %v2963 = vpop.f32.mrb[0].mxu0
    %v2964 = vadd.f32 0.0, %v2963
    %v2965 = vpop.f32.mrb[0].mxu0
    %2966 = vdwg.mxu0
    %2967 = vrot.lane.b32.xlu0 %v222, 96
    %v2968 = vpop.permute.xlu0 %2967
    %2969 = vrot.lane.b32.xlu0 %v222, 48
    %v2970 = vpop.permute.xlu0 %2969
    %v2971 = vsel %vm231, %v2968, 0
    %v2973 = vsel %vm231, %v2970, 0
    %2975 = vmatprep.subr.mxu0 0.0
    %2976 = vmatpush1.xpose.msra.mxu0 %v2973
    %2977 = vmatprep.subr.mxu0 0.0
    %2978 = vmatpush1.xpose.msra.mxu0 0.0
    %2979 = vmatprep.subr.mxu0 0.0
    %2980 = vmatpush1.xpose.msra.mxu0 0.0
    %2981 = vmatprep.subr.mxu0 0.0
    %2982 = vmatpush1.xpose.msra.mxu0 0.0
    %2983 = vmatprep.subr.mxu0 0.0
    %2984 = vmatpush1.xpose.msra.mxu0 0.0
    %2985 = vmatprep.subr.mxu0 0.0
    %2986 = vmatpush1.xpose.msra.mxu0 0.0
    %2987 = vmatprep.subr.mxu0 0.0
    %2988 = vmatpush1.xpose.msra.mxu0 0.0
    %2989 = vmatprep.subr.mxu0 0.0
    %2990 = vmatpush1.xpose.msra.mxu0 0.0
    %2991 = vmatprep.subr.mxu0 0.0
    %2992 = vmatpush1.xpose.msra.mxu0 0.0
    %2993 = vmatprep.subr.mxu0 0.0
    %2994 = vmatpush1.xpose.msra.mxu0 0.0
    %2995 = vmatprep.subr.mxu0 0.0
    %2996 = vmatpush1.xpose.msra.mxu0 0.0
    %2997 = vmatprep.subr.mxu0 0.0
    %2998 = vmatpush1.xpose.msra.mxu0 0.0
    %2999 = vmatprep.subr.mxu0 0.0
    %3000 = vmatpush1.xpose.msra.mxu0 0.0
    %3001 = vmatprep.subr.mxu0 0.0
    %3002 = vmatpush1.xpose.msra.mxu0 0.0
    %3003 = vmatprep.subr.mxu0 0.0
    %3004 = vmatpush1.xpose.msra.mxu0 0.0
    %3005 = vmatprep.subr.mxu0 0.0
    %3006 = vmatpush1.xpose.msra.mxu0 0.0
    %3007 = vmatprep.subr.mxu0 0.0
    %3008 = vmatpush1.xpose.msra.mxu0 0.0
    %3009 = vmatprep.subr.mxu0 0.0
    %3010 = vmatpush1.xpose.msra.mxu0 0.0
    %3011 = vmatprep.subr.mxu0 0.0
    %3012 = vmatpush1.xpose.msra.mxu0 0.0
    %3013 = vmatprep.subr.mxu0 0.0
    %3014 = vmatpush1.xpose.msra.mxu0 0.0
    %3015 = vmatprep.subr.mxu0 0.0
    %3016 = vmatpush1.xpose.msra.mxu0 0.0
    %3017 = vmatprep.subr.mxu0 0.0
    %3018 = vmatpush1.xpose.msra.mxu0 0.0
    %3019 = vmatprep.subr.mxu0 0.0
    %3020 = vmatpush1.xpose.msra.mxu0 0.0
    %3021 = vmatprep.subr.mxu0 0.0
    %3022 = vmatpush1.xpose.msra.mxu0 0.0
    %3023 = vmatprep.subr.mxu0 0.0
    %3024 = vmatpush1.xpose.msra.mxu0 0.0
    %3025 = vmatprep.subr.mxu0 0.0
    %3026 = vmatpush1.xpose.msra.mxu0 0.0
    %3027 = vmatprep.subr.mxu0 0.0
    %3028 = vmatpush1.xpose.msra.mxu0 0.0
    %3029 = vmatprep.subr.mxu0 0.0
    %3030 = vmatpush1.xpose.msra.mxu0 0.0
    %3031 = vmatprep.subr.mxu0 0.0
    %3032 = vmatpush1.xpose.msra.mxu0 0.0
    %3033 = vmatprep.subr.mxu0 0.0
    %3034 = vmatpush1.xpose.msra.mxu0 0.0
    %3035 = vmatprep.subr.mxu0 0.0
    %3036 = vmatpush1.xpose.msra.mxu0 0.0
    %3037 = vmatprep.subr.mxu0 0.0
    %3038 = vmatpush1.xpose.msra.mxu0 0.0
    %3039 = vmatprep.mubr.f32.mxu0 0.0
    %3040 = vmatmul.mubr.f32.gmra.mrb[0].mxu0 %v2971
    %v3041 = vpop.f32.mrb[0].mxu0
    %v3042 = vadd.f32 0.0, %v3041
    %v3043 = vpop.f32.mrb[0].mxu0
    %3044 = vdwg.mxu0
    %3045 = vrot.lane.b32.xlu0 %v223, 96
    %v3046 = vpop.permute.xlu0 %3045
    %3047 = vrot.lane.b32.xlu0 %v223, 48
    %v3048 = vpop.permute.xlu0 %3047
    %v3049 = vsel %vm231, %v3046, 0
    %v3051 = vsel %vm231, %v3048, 0
    %3053 = vmatprep.subr.mxu0 0.0
    %3054 = vmatpush1.xpose.msra.mxu0 %v3051
    %3055 = vmatprep.subr.mxu0 0.0
    %3056 = vmatpush1.xpose.msra.mxu0 0.0
    %3057 = vmatprep.subr.mxu0 0.0
    %3058 = vmatpush1.xpose.msra.mxu0 0.0
    %3059 = vmatprep.subr.mxu0 0.0
    %3060 = vmatpush1.xpose.msra.mxu0 0.0
    %3061 = vmatprep.subr.mxu0 0.0
    %3062 = vmatpush1.xpose.msra.mxu0 0.0
    %3063 = vmatprep.subr.mxu0 0.0
    %3064 = vmatpush1.xpose.msra.mxu0 0.0
    %3065 = vmatprep.subr.mxu0 0.0
    %3066 = vmatpush1.xpose.msra.mxu0 0.0
    %3067 = vmatprep.subr.mxu0 0.0
    %3068 = vmatpush1.xpose.msra.mxu0 0.0
    %3069 = vmatprep.subr.mxu0 0.0
    %3070 = vmatpush1.xpose.msra.mxu0 0.0
    %3071 = vmatprep.subr.mxu0 0.0
    %3072 = vmatpush1.xpose.msra.mxu0 0.0
    %3073 = vmatprep.subr.mxu0 0.0
    %3074 = vmatpush1.xpose.msra.mxu0 0.0
    %3075 = vmatprep.subr.mxu0 0.0
    %3076 = vmatpush1.xpose.msra.mxu0 0.0
    %3077 = vmatprep.subr.mxu0 0.0
    %3078 = vmatpush1.xpose.msra.mxu0 0.0
    %3079 = vmatprep.subr.mxu0 0.0
    %3080 = vmatpush1.xpose.msra.mxu0 0.0
    %3081 = vmatprep.subr.mxu0 0.0
    %3082 = vmatpush1.xpose.msra.mxu0 0.0
    %3083 = vmatprep.subr.mxu0 0.0
    %3084 = vmatpush1.xpose.msra.mxu0 0.0
    %3085 = vmatprep.subr.mxu0 0.0
    %3086 = vmatpush1.xpose.msra.mxu0 0.0
    %3087 = vmatprep.subr.mxu0 0.0
    %3088 = vmatpush1.xpose.msra.mxu0 0.0
    %3089 = vmatprep.subr.mxu0 0.0
    %3090 = vmatpush1.xpose.msra.mxu0 0.0
    %3091 = vmatprep.subr.mxu0 0.0
    %3092 = vmatpush1.xpose.msra.mxu0 0.0
    %3093 = vmatprep.subr.mxu0 0.0
    %3094 = vmatpush1.xpose.msra.mxu0 0.0
    %3095 = vmatprep.subr.mxu0 0.0
    %3096 = vmatpush1.xpose.msra.mxu0 0.0
    %3097 = vmatprep.subr.mxu0 0.0
    %3098 = vmatpush1.xpose.msra.mxu0 0.0
    %3099 = vmatprep.subr.mxu0 0.0
    %3100 = vmatpush1.xpose.msra.mxu0 0.0
    %3101 = vmatprep.subr.mxu0 0.0
    %3102 = vmatpush1.xpose.msra.mxu0 0.0
    %3103 = vmatprep.subr.mxu0 0.0
    %3104 = vmatpush1.xpose.msra.mxu0 0.0
    %3105 = vmatprep.subr.mxu0 0.0
    %3106 = vmatpush1.xpose.msra.mxu0 0.0
    %3107 = vmatprep.subr.mxu0 0.0
    %3108 = vmatpush1.xpose.msra.mxu0 0.0
    %3109 = vmatprep.subr.mxu0 0.0
    %3110 = vmatpush1.xpose.msra.mxu0 0.0
    %3111 = vmatprep.subr.mxu0 0.0
    %3112 = vmatpush1.xpose.msra.mxu0 0.0
    %3113 = vmatprep.subr.mxu0 0.0
    %3114 = vmatpush1.xpose.msra.mxu0 0.0
    %3115 = vmatprep.subr.mxu0 0.0
    %3116 = vmatpush1.xpose.msra.mxu0 0.0
    %3117 = vmatprep.mubr.f32.mxu0 0.0
    %3118 = vmatmul.mubr.f32.gmra.mrb[0].mxu0 %v3049
    %v3119 = vpop.f32.mrb[0].mxu0
    %v3120 = vadd.f32 0.0, %v3119
    %v3121 = vpop.f32.mrb[0].mxu0
    %3122 = vdwg.mxu0
    %3123 = vrot.lane.b32.xlu0 %v224, 96
    %v3124 = vpop.permute.xlu0 %3123
    %3125 = vrot.lane.b32.xlu0 %v224, 48
    %v3126 = vpop.permute.xlu0 %3125
    %v3127 = vsel %vm231, %v3124, 0
    %v3129 = vsel %vm231, %v3126, 0
    %3131 = vmatprep.subr.mxu0 0.0
    %3132 = vmatpush1.xpose.msra.mxu0 %v3129
    %3133 = vmatprep.subr.mxu0 0.0
    %3134 = vmatpush1.xpose.msra.mxu0 0.0
    %3135 = vmatprep.subr.mxu0 0.0
    %3136 = vmatpush1.xpose.msra.mxu0 0.0
    %3137 = vmatprep.subr.mxu0 0.0
    %3138 = vmatpush1.xpose.msra.mxu0 0.0
    %3139 = vmatprep.subr.mxu0 0.0
    %3140 = vmatpush1.xpose.msra.mxu0 0.0
    %3141 = vmatprep.subr.mxu0 0.0
    %3142 = vmatpush1.xpose.msra.mxu0 0.0
    %3143 = vmatprep.subr.mxu0 0.0
    %3144 = vmatpush1.xpose.msra.mxu0 0.0
    %3145 = vmatprep.subr.mxu0 0.0
    %3146 = vmatpush1.xpose.msra.mxu0 0.0
    %3147 = vmatprep.subr.mxu0 0.0
    %3148 = vmatpush1.xpose.msra.mxu0 0.0
    %3149 = vmatprep.subr.mxu0 0.0
    %3150 = vmatpush1.xpose.msra.mxu0 0.0
    %3151 = vmatprep.subr.mxu0 0.0
    %3152 = vmatpush1.xpose.msra.mxu0 0.0
    %3153 = vmatprep.subr.mxu0 0.0
    %3154 = vmatpush1.xpose.msra.mxu0 0.0
    %3155 = vmatprep.subr.mxu0 0.0
    %3156 = vmatpush1.xpose.msra.mxu0 0.0
    %3157 = vmatprep.subr.mxu0 0.0
    %3158 = vmatpush1.xpose.msra.mxu0 0.0
    %3159 = vmatprep.subr.mxu0 0.0
    %3160 = vmatpush1.xpose.msra.mxu0 0.0
    %3161 = vmatprep.subr.mxu0 0.0
    %3162 = vmatpush1.xpose.msra.mxu0 0.0
    %3163 = vmatprep.subr.mxu0 0.0
    %3164 = vmatpush1.xpose.msra.mxu0 0.0
    %3165 = vmatprep.subr.mxu0 0.0
    %3166 = vmatpush1.xpose.msra.mxu0 0.0
    %3167 = vmatprep.subr.mxu0 0.0
    %3168 = vmatpush1.xpose.msra.mxu0 0.0
    %3169 = vmatprep.subr.mxu0 0.0
    %3170 = vmatpush1.xpose.msra.mxu0 0.0
    %3171 = vmatprep.subr.mxu0 0.0
    %3172 = vmatpush1.xpose.msra.mxu0 0.0
    %3173 = vmatprep.subr.mxu0 0.0
    %3174 = vmatpush1.xpose.msra.mxu0 0.0
    %3175 = vmatprep.subr.mxu0 0.0
    %3176 = vmatpush1.xpose.msra.mxu0 0.0
    %3177 = vmatprep.subr.mxu0 0.0
    %3178 = vmatpush1.xpose.msra.mxu0 0.0
    %3179 = vmatprep.subr.mxu0 0.0
    %3180 = vmatpush1.xpose.msra.mxu0 0.0
    %3181 = vmatprep.subr.mxu0 0.0
    %3182 = vmatpush1.xpose.msra.mxu0 0.0
    %3183 = vmatprep.subr.mxu0 0.0
    %3184 = vmatpush1.xpose.msra.mxu0 0.0
    %3185 = vmatprep.subr.mxu0 0.0
    %3186 = vmatpush1.xpose.msra.mxu0 0.0
    %3187 = vmatprep.subr.mxu0 0.0
    %3188 = vmatpush1.xpose.msra.mxu0 0.0
    %3189 = vmatprep.subr.mxu0 0.0
    %3190 = vmatpush1.xpose.msra.mxu0 0.0
    %3191 = vmatprep.subr.mxu0 0.0
    %3192 = vmatpush1.xpose.msra.mxu0 0.0
    %3193 = vmatprep.subr.mxu0 0.0
    %3194 = vmatpush1.xpose.msra.mxu0 0.0
    %3195 = vmatprep.mubr.f32.mxu0 0.0
    %3196 = vmatmul.mubr.f32.gmra.mrb[0].mxu0 %v3127
    %v3197 = vpop.f32.mrb[0].mxu0
    %v3198 = vadd.f32 0.0, %v3197
    %v3199 = vpop.f32.mrb[0].mxu0
    %3200 = vdwg.mxu0
    %3201 = vrot.lane.b32.xlu0 %v225, 96
    %v3202 = vpop.permute.xlu0 %3201
    %3203 = vrot.lane.b32.xlu0 %v225, 48
    %v3204 = vpop.permute.xlu0 %3203
    %v3205 = vsel %vm231, %v3202, 0
    %v3207 = vsel %vm231, %v3204, 0
    %3209 = vmatprep.subr.mxu0 0.0
    %3210 = vmatpush1.xpose.msra.mxu0 %v3207
    %3211 = vmatprep.subr.mxu0 0.0
    %3212 = vmatpush1.xpose.msra.mxu0 0.0
    %3213 = vmatprep.subr.mxu0 0.0
    %3214 = vmatpush1.xpose.msra.mxu0 0.0
    %3215 = vmatprep.subr.mxu0 0.0
    %3216 = vmatpush1.xpose.msra.mxu0 0.0
    %3217 = vmatprep.subr.mxu0 0.0
    %3218 = vmatpush1.xpose.msra.mxu0 0.0
    %3219 = vmatprep.subr.mxu0 0.0
    %3220 = vmatpush1.xpose.msra.mxu0 0.0
    %3221 = vmatprep.subr.mxu0 0.0
    %3222 = vmatpush1.xpose.msra.mxu0 0.0
    %3223 = vmatprep.subr.mxu0 0.0
    %3224 = vmatpush1.xpose.msra.mxu0 0.0
    %3225 = vmatprep.subr.mxu0 0.0
    %3226 = vmatpush1.xpose.msra.mxu0 0.0
    %3227 = vmatprep.subr.mxu0 0.0
    %3228 = vmatpush1.xpose.msra.mxu0 0.0
    %3229 = vmatprep.subr.mxu0 0.0
    %3230 = vmatpush1.xpose.msra.mxu0 0.0
    %3231 = vmatprep.subr.mxu0 0.0
    %3232 = vmatpush1.xpose.msra.mxu0 0.0
    %3233 = vmatprep.subr.mxu0 0.0
    %3234 = vmatpush1.xpose.msra.mxu0 0.0
    %3235 = vmatprep.subr.mxu0 0.0
    %3236 = vmatpush1.xpose.msra.mxu0 0.0
    %3237 = vmatprep.subr.mxu0 0.0
    %3238 = vmatpush1.xpose.msra.mxu0 0.0
    %3239 = vmatprep.subr.mxu0 0.0
    %3240 = vmatpush1.xpose.msra.mxu0 0.0
    %3241 = vmatprep.subr.mxu0 0.0
    %3242 = vmatpush1.xpose.msra.mxu0 0.0
    %3243 = vmatprep.subr.mxu0 0.0
    %3244 = vmatpush1.xpose.msra.mxu0 0.0
    %3245 = vmatprep.subr.mxu0 0.0
    %3246 = vmatpush1.xpose.msra.mxu0 0.0
    %3247 = vmatprep.subr.mxu0 0.0
    %3248 = vmatpush1.xpose.msra.mxu0 0.0
    %3249 = vmatprep.subr.mxu0 0.0
    %3250 = vmatpush1.xpose.msra.mxu0 0.0
    %3251 = vmatprep.subr.mxu0 0.0
    %3252 = vmatpush1.xpose.msra.mxu0 0.0
    %3253 = vmatprep.subr.mxu0 0.0
    %3254 = vmatpush1.xpose.msra.mxu0 0.0
    %3255 = vmatprep.subr.mxu0 0.0
    %3256 = vmatpush1.xpose.msra.mxu0 0.0
    %3257 = vmatprep.subr.mxu0 0.0
    %3258 = vmatpush1.xpose.msra.mxu0 0.0
    %3259 = vmatprep.subr.mxu0 0.0
    %3260 = vmatpush1.xpose.msra.mxu0 0.0
    %3261 = vmatprep.subr.mxu0 0.0
    %3262 = vmatpush1.xpose.msra.mxu0 0.0
    %3263 = vmatprep.subr.mxu0 0.0
    %3264 = vmatpush1.xpose.msra.mxu0 0.0
    %3265 = vmatprep.subr.mxu0 0.0
    %3266 = vmatpush1.xpose.msra.mxu0 0.0
    %3267 = vmatprep.subr.mxu0 0.0
    %3268 = vmatpush1.xpose.msra.mxu0 0.0
    %3269 = vmatprep.subr.mxu0 0.0
    %3270 = vmatpush1.xpose.msra.mxu0 0.0
    %3271 = vmatprep.subr.mxu0 0.0
    %3272 = vmatpush1.xpose.msra.mxu0 0.0
    %3273 = vmatprep.mubr.f32.mxu0 0.0
    %3274 = vmatmul.mubr.f32.gmra.mrb[0].mxu0 %v3205
    %v3275 = vpop.f32.mrb[0].mxu0
    %v3276 = vadd.f32 0.0, %v3275
    %v3277 = vpop.f32.mrb[0].mxu0
    %3278 = vdwg.mxu0
    %3279 = vrot.lane.b32.xlu0 %v226, 96
    %v3280 = vpop.permute.xlu0 %3279
    %3281 = vrot.lane.b32.xlu0 %v226, 48
    %v3282 = vpop.permute.xlu0 %3281
    %v3283 = vsel %vm231, %v3280, 0
    %v3285 = vsel %vm231, %v3282, 0
    %3287 = vmatprep.subr.mxu0 0.0
    %3288 = vmatpush1.xpose.msra.mxu0 %v3285
    %3289 = vmatprep.subr.mxu0 0.0
    %3290 = vmatpush1.xpose.msra.mxu0 0.0
    %3291 = vmatprep.subr.mxu0 0.0
    %3292 = vmatpush1.xpose.msra.mxu0 0.0
    %3293 = vmatprep.subr.mxu0 0.0
    %3294 = vmatpush1.xpose.msra.mxu0 0.0
    %3295 = vmatprep.subr.mxu0 0.0
    %3296 = vmatpush1.xpose.msra.mxu0 0.0
    %3297 = vmatprep.subr.mxu0 0.0
    %3298 = vmatpush1.xpose.msra.mxu0 0.0
    %3299 = vmatprep.subr.mxu0 0.0
    %3300 = vmatpush1.xpose.msra.mxu0 0.0
    %3301 = vmatprep.subr.mxu0 0.0
    %3302 = vmatpush1.xpose.msra.mxu0 0.0
    %3303 = vmatprep.subr.mxu0 0.0
    %3304 = vmatpush1.xpose.msra.mxu0 0.0
    %3305 = vmatprep.subr.mxu0 0.0
    %3306 = vmatpush1.xpose.msra.mxu0 0.0
    %3307 = vmatprep.subr.mxu0 0.0
    %3308 = vmatpush1.xpose.msra.mxu0 0.0
    %3309 = vmatprep.subr.mxu0 0.0
    %3310 = vmatpush1.xpose.msra.mxu0 0.0
    %3311 = vmatprep.subr.mxu0 0.0
    %3312 = vmatpush1.xpose.msra.mxu0 0.0
    %3313 = vmatprep.subr.mxu0 0.0
    %3314 = vmatpush1.xpose.msra.mxu0 0.0
    %3315 = vmatprep.subr.mxu0 0.0
    %3316 = vmatpush1.xpose.msra.mxu0 0.0
    %3317 = vmatprep.subr.mxu0 0.0
    %3318 = vmatpush1.xpose.msra.mxu0 0.0
    %3319 = vmatprep.subr.mxu0 0.0
    %3320 = vmatpush1.xpose.msra.mxu0 0.0
    %3321 = vmatprep.subr.mxu0 0.0
    %3322 = vmatpush1.xpose.msra.mxu0 0.0
    %3323 = vmatprep.subr.mxu0 0.0
    %3324 = vmatpush1.xpose.msra.mxu0 0.0
    %3325 = vmatprep.subr.mxu0 0.0
    %3326 = vmatpush1.xpose.msra.mxu0 0.0
    %3327 = vmatprep.subr.mxu0 0.0
    %3328 = vmatpush1.xpose.msra.mxu0 0.0
    %3329 = vmatprep.subr.mxu0 0.0
    %3330 = vmatpush1.xpose.msra.mxu0 0.0
    %3331 = vmatprep.subr.mxu0 0.0
    %3332 = vmatpush1.xpose.msra.mxu0 0.0
    %3333 = vmatprep.subr.mxu0 0.0
    %3334 = vmatpush1.xpose.msra.mxu0 0.0
    %3335 = vmatprep.subr.mxu0 0.0
    %3336 = vmatpush1.xpose.msra.mxu0 0.0
    %3337 = vmatprep.subr.mxu0 0.0
    %3338 = vmatpush1.xpose.msra.mxu0 0.0
    %3339 = vmatprep.subr.mxu0 0.0
    %3340 = vmatpush1.xpose.msra.mxu0 0.0
    %3341 = vmatprep.subr.mxu0 0.0
    %3342 = vmatpush1.xpose.msra.mxu0 0.0
    %3343 = vmatprep.subr.mxu0 0.0
    %3344 = vmatpush1.xpose.msra.mxu0 0.0
    %3345 = vmatprep.subr.mxu0 0.0
    %3346 = vmatpush1.xpose.msra.mxu0 0.0
    %3347 = vmatprep.subr.mxu0 0.0
    %3348 = vmatpush1.xpose.msra.mxu0 0.0
    %3349 = vmatprep.subr.mxu0 0.0
    %3350 = vmatpush1.xpose.msra.mxu0 0.0
    %3351 = vmatprep.mubr.f32.mxu0 0.0
    %3352 = vmatmul.mubr.f32.gmra.mrb[0].mxu0 %v3283
    %v3353 = vpop.f32.mrb[0].mxu0
    %v3354 = vadd.f32 0.0, %v3353
    %v3355 = vpop.f32.mrb[0].mxu0
    %3356 = vdwg.mxu0
    %3357 = vrot.lane.b32.xlu0 %v227, 96
    %v3358 = vpop.permute.xlu0 %3357
    %3359 = vrot.lane.b32.xlu0 %v227, 48
    %v3360 = vpop.permute.xlu0 %3359
    %v3361 = vsel %vm231, %v3358, 0
    %v3363 = vsel %vm231, %v3360, 0
    %3365 = vmatprep.subr.mxu0 0.0
    %3366 = vmatpush1.xpose.msra.mxu0 %v3363
    %3367 = vmatprep.subr.mxu0 0.0
    %3368 = vmatpush1.xpose.msra.mxu0 0.0
    %3369 = vmatprep.subr.mxu0 0.0
    %3370 = vmatpush1.xpose.msra.mxu0 0.0
    %3371 = vmatprep.subr.mxu0 0.0
    %3372 = vmatpush1.xpose.msra.mxu0 0.0
    %3373 = vmatprep.subr.mxu0 0.0
    %3374 = vmatpush1.xpose.msra.mxu0 0.0
    %3375 = vmatprep.subr.mxu0 0.0
    %3376 = vmatpush1.xpose.msra.mxu0 0.0
    %3377 = vmatprep.subr.mxu0 0.0
    %3378 = vmatpush1.xpose.msra.mxu0 0.0
    %3379 = vmatprep.subr.mxu0 0.0
    %3380 = vmatpush1.xpose.msra.mxu0 0.0
    %3381 = vmatprep.subr.mxu0 0.0
    %3382 = vmatpush1.xpose.msra.mxu0 0.0
    %3383 = vmatprep.subr.mxu0 0.0
    %3384 = vmatpush1.xpose.msra.mxu0 0.0
    %3385 = vmatprep.subr.mxu0 0.0
    %3386 = vmatpush1.xpose.msra.mxu0 0.0
    %3387 = vmatprep.subr.mxu0 0.0
    %3388 = vmatpush1.xpose.msra.mxu0 0.0
    %3389 = vmatprep.subr.mxu0 0.0
    %3390 = vmatpush1.xpose.msra.mxu0 0.0
    %3391 = vmatprep.subr.mxu0 0.0
    %3392 = vmatpush1.xpose.msra.mxu0 0.0
    %3393 = vmatprep.subr.mxu0 0.0
    %3394 = vmatpush1.xpose.msra.mxu0 0.0
    %3395 = vmatprep.subr.mxu0 0.0
    %3396 = vmatpush1.xpose.msra.mxu0 0.0
    %3397 = vmatprep.subr.mxu0 0.0
    %3398 = vmatpush1.xpose.msra.mxu0 0.0
    %3399 = vmatprep.subr.mxu0 0.0
    %3400 = vmatpush1.xpose.msra.mxu0 0.0
    %3401 = vmatprep.subr.mxu0 0.0
    %3402 = vmatpush1.xpose.msra.mxu0 0.0
    %3403 = vmatprep.subr.mxu0 0.0
    %3404 = vmatpush1.xpose.msra.mxu0 0.0
    %3405 = vmatprep.subr.mxu0 0.0
    %3406 = vmatpush1.xpose.msra.mxu0 0.0
    %3407 = vmatprep.subr.mxu0 0.0
    %3408 = vmatpush1.xpose.msra.mxu0 0.0
    %3409 = vmatprep.subr.mxu0 0.0
    %3410 = vmatpush1.xpose.msra.mxu0 0.0
    %3411 = vmatprep.subr.mxu0 0.0
    %3412 = vmatpush1.xpose.msra.mxu0 0.0
    %3413 = vmatprep.subr.mxu0 0.0
    %3414 = vmatpush1.xpose.msra.mxu0 0.0
    %3415 = vmatprep.subr.mxu0 0.0
    %3416 = vmatpush1.xpose.msra.mxu0 0.0
    %3417 = vmatprep.subr.mxu0 0.0
    %3418 = vmatpush1.xpose.msra.mxu0 0.0
    %3419 = vmatprep.subr.mxu0 0.0
    %3420 = vmatpush1.xpose.msra.mxu0 0.0
    %3421 = vmatprep.subr.mxu0 0.0
    %3422 = vmatpush1.xpose.msra.mxu0 0.0
    %3423 = vmatprep.subr.mxu0 0.0
    %3424 = vmatpush1.xpose.msra.mxu0 0.0
    %3425 = vmatprep.subr.mxu0 0.0
    %3426 = vmatpush1.xpose.msra.mxu0 0.0
    %3427 = vmatprep.subr.mxu0 0.0
    %3428 = vmatpush1.xpose.msra.mxu0 0.0
    %3429 = vmatprep.mubr.f32.mxu0 0.0
    %3430 = vmatmul.mubr.f32.gmra.mrb[0].mxu0 %v3361
    %v3431 = vpop.f32.mrb[0].mxu0
    %v3432 = vadd.f32 0.0, %v3431
    %v3433 = vpop.f32.mrb[0].mxu0
    %3434 = vdwg.mxu0
    %3435 = vrot.lane.b32.xlu0 %v228, 96
    %v3436 = vpop.permute.xlu0 %3435
    %3437 = vrot.lane.b32.xlu0 %v228, 48
    %v3438 = vpop.permute.xlu0 %3437
    %v3439 = vsel %vm231, %v3436, 0
    %v3441 = vsel %vm231, %v3438, 0
    %3443 = vmatprep.subr.mxu0 0.0
    %3444 = vmatpush1.xpose.msra.mxu0 %v3441
    %3445 = vmatprep.subr.mxu0 0.0
    %3446 = vmatpush1.xpose.msra.mxu0 0.0
    %3447 = vmatprep.subr.mxu0 0.0
    %3448 = vmatpush1.xpose.msra.mxu0 0.0
    %3449 = vmatprep.subr.mxu0 0.0
    %3450 = vmatpush1.xpose.msra.mxu0 0.0
    %3451 = vmatprep.subr.mxu0 0.0
    %3452 = vmatpush1.xpose.msra.mxu0 0.0
    %3453 = vmatprep.subr.mxu0 0.0
    %3454 = vmatpush1.xpose.msra.mxu0 0.0
    %3455 = vmatprep.subr.mxu0 0.0
    %3456 = vmatpush1.xpose.msra.mxu0 0.0
    %3457 = vmatprep.subr.mxu0 0.0
    %3458 = vmatpush1.xpose.msra.mxu0 0.0
    %3459 = vmatprep.subr.mxu0 0.0
    %3460 = vmatpush1.xpose.msra.mxu0 0.0
    %3461 = vmatprep.subr.mxu0 0.0
    %3462 = vmatpush1.xpose.msra.mxu0 0.0
    %3463 = vmatprep.subr.mxu0 0.0
    %3464 = vmatpush1.xpose.msra.mxu0 0.0
    %3465 = vmatprep.subr.mxu0 0.0
    %3466 = vmatpush1.xpose.msra.mxu0 0.0
    %3467 = vmatprep.subr.mxu0 0.0
    %3468 = vmatpush1.xpose.msra.mxu0 0.0
    %3469 = vmatprep.subr.mxu0 0.0
    %3470 = vmatpush1.xpose.msra.mxu0 0.0
    %3471 = vmatprep.subr.mxu0 0.0
    %3472 = vmatpush1.xpose.msra.mxu0 0.0
    %3473 = vmatprep.subr.mxu0 0.0
    %3474 = vmatpush1.xpose.msra.mxu0 0.0
    %3475 = vmatprep.subr.mxu0 0.0
    %3476 = vmatpush1.xpose.msra.mxu0 0.0
    %3477 = vmatprep.subr.mxu0 0.0
    %3478 = vmatpush1.xpose.msra.mxu0 0.0
    %3479 = vmatprep.subr.mxu0 0.0
    %3480 = vmatpush1.xpose.msra.mxu0 0.0
    %3481 = vmatprep.subr.mxu0 0.0
    %3482 = vmatpush1.xpose.msra.mxu0 0.0
    %3483 = vmatprep.subr.mxu0 0.0
    %3484 = vmatpush1.xpose.msra.mxu0 0.0
    %3485 = vmatprep.subr.mxu0 0.0
    %3486 = vmatpush1.xpose.msra.mxu0 0.0
    %3487 = vmatprep.subr.mxu0 0.0
    %3488 = vmatpush1.xpose.msra.mxu0 0.0
    %3489 = vmatprep.subr.mxu0 0.0
    %3490 = vmatpush1.xpose.msra.mxu0 0.0
    %3491 = vmatprep.subr.mxu0 0.0
    %3492 = vmatpush1.xpose.msra.mxu0 0.0
    %3493 = vmatprep.subr.mxu0 0.0
    %3494 = vmatpush1.xpose.msra.mxu0 0.0
    %3495 = vmatprep.subr.mxu0 0.0
    %3496 = vmatpush1.xpose.msra.mxu0 0.0
    %3497 = vmatprep.subr.mxu0 0.0
    %3498 = vmatpush1.xpose.msra.mxu0 0.0
    %3499 = vmatprep.subr.mxu0 0.0
    %3500 = vmatpush1.xpose.msra.mxu0 0.0
    %3501 = vmatprep.subr.mxu0 0.0
    %3502 = vmatpush1.xpose.msra.mxu0 0.0
    %3503 = vmatprep.subr.mxu0 0.0
    %3504 = vmatpush1.xpose.msra.mxu0 0.0
    %3505 = vmatprep.subr.mxu0 0.0
    %3506 = vmatpush1.xpose.msra.mxu0 0.0
    %3507 = vmatprep.mubr.f32.mxu0 0.0
    %3508 = vmatmul.mubr.f32.gmra.mrb[0].mxu0 %v3439
    %v3509 = vpop.f32.mrb[0].mxu0
    %v3510 = vadd.f32 0.0, %v3509
    %v3511 = vpop.f32.mrb[0].mxu0
    %3512 = vdwg.mxu0
    %v3513 = vmul.f32 %v2964, 0.25
    %v3514 = vmul.f32 %v3042, 0.25
    %v3515 = vmul.f32 %v3120, 0.25
    %v3516 = vmul.f32 %v3198, 0.25
    %v3517 = vmul.f32 %v3276, 0.25
    %v3518 = vmul.f32 %v3354, 0.25
    %v3519 = vmul.f32 %v3432, 0.25
    %v3520 = vmul.f32 %v3510, 0.25
    %v3521 = vsel %vm846, %v3513, -inf
    %3522 = vmax.xlane.f32.xlu0 %v3521
    %v3523 = vpop.xlane.xlu0 %3522
    %v3524 = vsel %vm846, %v3514, -inf
    %3525 = vmax.xlane.f32.xlu0 %v3524
    %v3526 = vpop.xlane.xlu0 %3525
    %v3527 = vsel %vm846, %v3515, -inf
    %3528 = vmax.xlane.f32.xlu0 %v3527
    %v3529 = vpop.xlane.xlu0 %3528
    %v3530 = vsel %vm846, %v3516, -inf
    %3531 = vmax.xlane.f32.xlu0 %v3530
    %v3532 = vpop.xlane.xlu0 %3531
    %v3533 = vsel %vm846, %v3517, -inf
    %3534 = vmax.xlane.f32.xlu0 %v3533
    %v3535 = vpop.xlane.xlu0 %3534
    %v3536 = vsel %vm846, %v3518, -inf
    %3537 = vmax.xlane.f32.xlu0 %v3536
    %v3538 = vpop.xlane.xlu0 %3537
    %v3539 = vsel %vm846, %v3519, -inf
    %3540 = vmax.xlane.f32.xlu0 %v3539
    %v3541 = vpop.xlane.xlu0 %3540
    %v3542 = vsel %vm846, %v3520, -inf
    %3543 = vmax.xlane.f32.xlu0 %v3542
    %v3544 = vpop.xlane.xlu0 %3543
    %v3545 = vsub.f32 %v3513, %v3523
    %v3546 = vsub.f32 %v3514, %v3526
    %v3547 = vsub.f32 %v3515, %v3529
    %v3548 = vsub.f32 %v3516, %v3532
    %v3549 = vsub.f32 %v3517, %v3535
    %v3550 = vsub.f32 %v3518, %v3538
    %v3551 = vsub.f32 %v3519, %v3541
    %v3552 = vsub.f32 %v3520, %v3544
    %v3553 = vmul.f32 %v3545, 1.442695
    %v3554 = vpow.pop %v3553
    %v3555 = vmul.f32 %v3546, 1.442695
    %v3556 = vpow.pop %v3555
    %v3557 = vmul.f32 %v3547, 1.442695
    %v3558 = vpow.pop %v3557
    %v3559 = vmul.f32 %v3548, 1.442695
    %v3560 = vpow.pop %v3559
    %v3561 = vmul.f32 %v3549, 1.442695
    %v3562 = vpow.pop %v3561
    %v3563 = vmul.f32 %v3550, 1.442695
    %v3564 = vpow.pop %v3563
    %v3565 = vmul.f32 %v3551, 1.442695
    %v3566 = vpow.pop %v3565
    %v3567 = vmul.f32 %v3552, 1.442695
    %v3568 = vpow.pop %v3567
    %v3569 = vsel %vm846, %v3554, 0.0
    %3570 = vadd.xlane.f32.xlu0 %v3569
    %v3571 = vpop.xlane.xlu0 %3570
    %v3572 = vsel %vm846, %v3556, 0.0
    %3573 = vadd.xlane.f32.xlu0 %v3572
    %v3574 = vpop.xlane.xlu0 %3573
    %v3575 = vsel %vm846, %v3558, 0.0
    %3576 = vadd.xlane.f32.xlu0 %v3575
    %v3577 = vpop.xlane.xlu0 %3576
    %v3578 = vsel %vm846, %v3560, 0.0
    %3579 = vadd.xlane.f32.xlu0 %v3578
    %v3580 = vpop.xlane.xlu0 %3579
    %v3581 = vsel %vm846, %v3562, 0.0
    %3582 = vadd.xlane.f32.xlu0 %v3581
    %v3583 = vpop.xlane.xlu0 %3582
    %v3584 = vsel %vm846, %v3564, 0.0
    %3585 = vadd.xlane.f32.xlu0 %v3584
    %v3586 = vpop.xlane.xlu0 %3585
    %v3587 = vsel %vm846, %v3566, 0.0
    %3588 = vadd.xlane.f32.xlu0 %v3587
    %v3589 = vpop.xlane.xlu0 %3588
    %v3590 = vsel %vm846, %v3568, 0.0
    %3591 = vadd.xlane.f32.xlu0 %v3590
    %v3592 = vpop.xlane.xlu0 %3591
    %v3593 = vrcp.pop %v3571
    %v3594 = vrcp.pop %v3574
    %v3595 = vrcp.pop %v3577
    %v3596 = vrcp.pop %v3580
    %v3597 = vrcp.pop %v3583
    %v3598 = vrcp.pop %v3586
    %v3599 = vrcp.pop %v3589
    %v3600 = vrcp.pop %v3592
    %v3601 = vmul.f32 %v3554, %v3593
    %v3602 = vmul.f32 %v3556, %v3594
    %v3603 = vmul.f32 %v3558, %v3595
    %v3604 = vmul.f32 %v3560, %v3596
    %v3605 = vmul.f32 %v3562, %v3597
    %v3606 = vmul.f32 %v3564, %v3598
    %v3607 = vmul.f32 %v3566, %v3599
    %v3608 = vmul.f32 %v3568, %v3600
    %v3609 = vrot.slane %v221, 4
    %v3611 = vsel %vm937, %v3601, 0
    %v3613 = vsel %vm941, %v3609, 0
    %3615 = vmatprep.subr.mxu0 0.0
    %3616 = vmatpush1.msra.mxu0 %v3613
    %3617 = vmatprep.subr.mxu0 0.0
    %3618 = vmatpush1.msra.mxu0 0.0
    %3619 = vmatprep.subr.mxu0 0.0
    %3620 = vmatpush1.msra.mxu0 0.0
    %3621 = vmatprep.subr.mxu0 0.0
    %3622 = vmatpush1.msra.mxu0 0.0
    %3623 = vmatprep.subr.mxu0 0.0
    %3624 = vmatpush1.msra.mxu0 0.0
    %3625 = vmatprep.subr.mxu0 0.0
    %3626 = vmatpush1.msra.mxu0 0.0
    %3627 = vmatprep.subr.mxu0 0.0
    %3628 = vmatpush1.msra.mxu0 0.0
    %3629 = vmatprep.subr.mxu0 0.0
    %3630 = vmatpush1.msra.mxu0 0.0
    %3631 = vmatprep.subr.mxu0 0.0
    %3632 = vmatpush1.msra.mxu0 0.0
    %3633 = vmatprep.subr.mxu0 0.0
    %3634 = vmatpush1.msra.mxu0 0.0
    %3635 = vmatprep.subr.mxu0 0.0
    %3636 = vmatpush1.msra.mxu0 0.0
    %3637 = vmatprep.subr.mxu0 0.0
    %3638 = vmatpush1.msra.mxu0 0.0
    %3639 = vmatprep.subr.mxu0 0.0
    %3640 = vmatpush1.msra.mxu0 0.0
    %3641 = vmatprep.subr.mxu0 0.0
    %3642 = vmatpush1.msra.mxu0 0.0
    %3643 = vmatprep.subr.mxu0 0.0
    %3644 = vmatpush1.msra.mxu0 0.0
    %3645 = vmatprep.subr.mxu0 0.0
    %3646 = vmatpush1.msra.mxu0 0.0
    %3647 = vmatprep.subr.mxu0 0.0
    %3648 = vmatpush1.msra.mxu0 0.0
    %3649 = vmatprep.subr.mxu0 0.0
    %3650 = vmatpush1.msra.mxu0 0.0
    %3651 = vmatprep.subr.mxu0 0.0
    %3652 = vmatpush1.msra.mxu0 0.0
    %3653 = vmatprep.subr.mxu0 0.0
    %3654 = vmatpush1.msra.mxu0 0.0
    %3655 = vmatprep.subr.mxu0 0.0
    %3656 = vmatpush1.msra.mxu0 0.0
    %3657 = vmatprep.subr.mxu0 0.0
    %3658 = vmatpush1.msra.mxu0 0.0
    %3659 = vmatprep.subr.mxu0 0.0
    %3660 = vmatpush1.msra.mxu0 0.0
    %3661 = vmatprep.subr.mxu0 0.0
    %3662 = vmatpush1.msra.mxu0 0.0
    %3663 = vmatprep.subr.mxu0 0.0
    %3664 = vmatpush1.msra.mxu0 0.0
    %3665 = vmatprep.subr.mxu0 0.0
    %3666 = vmatpush1.msra.mxu0 0.0
    %3667 = vmatprep.subr.mxu0 0.0
    %3668 = vmatpush1.msra.mxu0 0.0
    %3669 = vmatprep.subr.mxu0 0.0
    %3670 = vmatpush1.msra.mxu0 0.0
    %3671 = vmatprep.subr.mxu0 0.0
    %3672 = vmatpush1.msra.mxu0 0.0
    %3673 = vmatprep.subr.mxu0 0.0
    %3674 = vmatpush1.msra.mxu0 0.0
    %3675 = vmatprep.subr.mxu0 0.0
    %3676 = vmatpush1.msra.mxu0 0.0
    %3677 = vmatprep.subr.mxu0 0.0
    %3678 = vmatpush1.msra.mxu0 0.0
    %3679 = vmatprep.mubr.f32.mxu0 0.0
    %3680 = vmatmul.mubr.f32.gmra.mrb[0].mxu0 %v3611
    %v3681 = vpop.f32.mrb[0].mxu0
    %v3682 = vadd.f32 0.0, %v3681
    %v3683 = vpop.f32.mrb[0].mxu0
    %3684 = vdwg.mxu0
    %v3685 = vrot.slane %v222, 4
    %v3687 = vsel %vm937, %v3602, 0
    %v3689 = vsel %vm941, %v3685, 0
    %3691 = vmatprep.subr.mxu0 0.0
    %3692 = vmatpush1.msra.mxu0 %v3689
    %3693 = vmatprep.subr.mxu0 0.0
    %3694 = vmatpush1.msra.mxu0 0.0
    %3695 = vmatprep.subr.mxu0 0.0
    %3696 = vmatpush1.msra.mxu0 0.0
    %3697 = vmatprep.subr.mxu0 0.0
    %3698 = vmatpush1.msra.mxu0 0.0
    %3699 = vmatprep.subr.mxu0 0.0
    %3700 = vmatpush1.msra.mxu0 0.0
    %3701 = vmatprep.subr.mxu0 0.0
    %3702 = vmatpush1.msra.mxu0 0.0
    %3703 = vmatprep.subr.mxu0 0.0
    %3704 = vmatpush1.msra.mxu0 0.0
    %3705 = vmatprep.subr.mxu0 0.0
    %3706 = vmatpush1.msra.mxu0 0.0
    %3707 = vmatprep.subr.mxu0 0.0
    %3708 = vmatpush1.msra.mxu0 0.0
    %3709 = vmatprep.subr.mxu0 0.0
    %3710 = vmatpush1.msra.mxu0 0.0
    %3711 = vmatprep.subr.mxu0 0.0
    %3712 = vmatpush1.msra.mxu0 0.0
    %3713 = vmatprep.subr.mxu0 0.0
    %3714 = vmatpush1.msra.mxu0 0.0
    %3715 = vmatprep.subr.mxu0 0.0
    %3716 = vmatpush1.msra.mxu0 0.0
    %3717 = vmatprep.subr.mxu0 0.0
    %3718 = vmatpush1.msra.mxu0 0.0
    %3719 = vmatprep.subr.mxu0 0.0
    %3720 = vmatpush1.msra.mxu0 0.0
    %3721 = vmatprep.subr.mxu0 0.0
    %3722 = vmatpush1.msra.mxu0 0.0
    %3723 = vmatprep.subr.mxu0 0.0
    %3724 = vmatpush1.msra.mxu0 0.0
    %3725 = vmatprep.subr.mxu0 0.0
    %3726 = vmatpush1.msra.mxu0 0.0
    %3727 = vmatprep.subr.mxu0 0.0
    %3728 = vmatpush1.msra.mxu0 0.0
    %3729 = vmatprep.subr.mxu0 0.0
    %3730 = vmatpush1.msra.mxu0 0.0
    %3731 = vmatprep.subr.mxu0 0.0
    %3732 = vmatpush1.msra.mxu0 0.0
    %3733 = vmatprep.subr.mxu0 0.0
    %3734 = vmatpush1.msra.mxu0 0.0
    %3735 = vmatprep.subr.mxu0 0.0
    %3736 = vmatpush1.msra.mxu0 0.0
    %3737 = vmatprep.subr.mxu0 0.0
    %3738 = vmatpush1.msra.mxu0 0.0
    %3739 = vmatprep.subr.mxu0 0.0
    %3740 = vmatpush1.msra.mxu0 0.0
    %3741 = vmatprep.subr.mxu0 0.0
    %3742 = vmatpush1.msra.mxu0 0.0
    %3743 = vmatprep.subr.mxu0 0.0
    %3744 = vmatpush1.msra.mxu0 0.0
    %3745 = vmatprep.subr.mxu0 0.0
    %3746 = vmatpush1.msra.mxu0 0.0
    %3747 = vmatprep.subr.mxu0 0.0
    %3748 = vmatpush1.msra.mxu0 0.0
    %3749 = vmatprep.subr.mxu0 0.0
    %3750 = vmatpush1.msra.mxu0 0.0
    %3751 = vmatprep.subr.mxu0 0.0
    %3752 = vmatpush1.msra.mxu0 0.0
    %3753 = vmatprep.subr.mxu0 0.0
    %3754 = vmatpush1.msra.mxu0 0.0
    %3755 = vmatprep.mubr.f32.mxu0 0.0
    %3756 = vmatmul.mubr.f32.gmra.mrb[0].mxu0 %v3687
    %v3757 = vpop.f32.mrb[0].mxu0
    %v3758 = vadd.f32 0.0, %v3757
    %v3759 = vpop.f32.mrb[0].mxu0
    %3760 = vdwg.mxu0
    %v3761 = vrot.slane %v223, 4
    %v3763 = vsel %vm937, %v3603, 0
    %v3765 = vsel %vm941, %v3761, 0
    %3767 = vmatprep.subr.mxu0 0.0
    %3768 = vmatpush1.msra.mxu0 %v3765
    %3769 = vmatprep.subr.mxu0 0.0
    %3770 = vmatpush1.msra.mxu0 0.0
    %3771 = vmatprep.subr.mxu0 0.0
    %3772 = vmatpush1.msra.mxu0 0.0
    %3773 = vmatprep.subr.mxu0 0.0
    %3774 = vmatpush1.msra.mxu0 0.0
    %3775 = vmatprep.subr.mxu0 0.0
    %3776 = vmatpush1.msra.mxu0 0.0
    %3777 = vmatprep.subr.mxu0 0.0
    %3778 = vmatpush1.msra.mxu0 0.0
    %3779 = vmatprep.subr.mxu0 0.0
    %3780 = vmatpush1.msra.mxu0 0.0
    %3781 = vmatprep.subr.mxu0 0.0
    %3782 = vmatpush1.msra.mxu0 0.0
    %3783 = vmatprep.subr.mxu0 0.0
    %3784 = vmatpush1.msra.mxu0 0.0
    %3785 = vmatprep.subr.mxu0 0.0
    %3786 = vmatpush1.msra.mxu0 0.0
    %3787 = vmatprep.subr.mxu0 0.0
    %3788 = vmatpush1.msra.mxu0 0.0
    %3789 = vmatprep.subr.mxu0 0.0
    %3790 = vmatpush1.msra.mxu0 0.0
    %3791 = vmatprep.subr.mxu0 0.0
    %3792 = vmatpush1.msra.mxu0 0.0
    %3793 = vmatprep.subr.mxu0 0.0
    %3794 = vmatpush1.msra.mxu0 0.0
    %3795 = vmatprep.subr.mxu0 0.0
    %3796 = vmatpush1.msra.mxu0 0.0
    %3797 = vmatprep.subr.mxu0 0.0
    %3798 = vmatpush1.msra.mxu0 0.0
    %3799 = vmatprep.subr.mxu0 0.0
    %3800 = vmatpush1.msra.mxu0 0.0
    %3801 = vmatprep.subr.mxu0 0.0
    %3802 = vmatpush1.msra.mxu0 0.0
    %3803 = vmatprep.subr.mxu0 0.0
    %3804 = vmatpush1.msra.mxu0 0.0
    %3805 = vmatprep.subr.mxu0 0.0
    %3806 = vmatpush1.msra.mxu0 0.0
    %3807 = vmatprep.subr.mxu0 0.0
    %3808 = vmatpush1.msra.mxu0 0.0
    %3809 = vmatprep.subr.mxu0 0.0
    %3810 = vmatpush1.msra.mxu0 0.0
    %3811 = vmatprep.subr.mxu0 0.0
    %3812 = vmatpush1.msra.mxu0 0.0
    %3813 = vmatprep.subr.mxu0 0.0
    %3814 = vmatpush1.msra.mxu0 0.0
    %3815 = vmatprep.subr.mxu0 0.0
    %3816 = vmatpush1.msra.mxu0 0.0
    %3817 = vmatprep.subr.mxu0 0.0
    %3818 = vmatpush1.msra.mxu0 0.0
    %3819 = vmatprep.subr.mxu0 0.0
    %3820 = vmatpush1.msra.mxu0 0.0
    %3821 = vmatprep.subr.mxu0 0.0
    %3822 = vmatpush1.msra.mxu0 0.0
    %3823 = vmatprep.subr.mxu0 0.0
    %3824 = vmatpush1.msra.mxu0 0.0
    %3825 = vmatprep.subr.mxu0 0.0
    %3826 = vmatpush1.msra.mxu0 0.0
    %3827 = vmatprep.subr.mxu0 0.0
    %3828 = vmatpush1.msra.mxu0 0.0
    %3829 = vmatprep.subr.mxu0 0.0
    %3830 = vmatpush1.msra.mxu0 0.0
    %3831 = vmatprep.mubr.f32.mxu0 0.0
    %3832 = vmatmul.mubr.f32.gmra.mrb[0].mxu0 %v3763
    %v3833 = vpop.f32.mrb[0].mxu0
    %v3834 = vadd.f32 0.0, %v3833
    %v3835 = vpop.f32.mrb[0].mxu0
    %3836 = vdwg.mxu0
    %v3837 = vrot.slane %v224, 4
    %v3839 = vsel %vm937, %v3604, 0
    %v3841 = vsel %vm941, %v3837, 0
    %3843 = vmatprep.subr.mxu0 0.0
    %3844 = vmatpush1.msra.mxu0 %v3841
    %3845 = vmatprep.subr.mxu0 0.0
    %3846 = vmatpush1.msra.mxu0 0.0
    %3847 = vmatprep.subr.mxu0 0.0
    %3848 = vmatpush1.msra.mxu0 0.0
    %3849 = vmatprep.subr.mxu0 0.0
    %3850 = vmatpush1.msra.mxu0 0.0
    %3851 = vmatprep.subr.mxu0 0.0
    %3852 = vmatpush1.msra.mxu0 0.0
    %3853 = vmatprep.subr.mxu0 0.0
    %3854 = vmatpush1.msra.mxu0 0.0
    %3855 = vmatprep.subr.mxu0 0.0
    %3856 = vmatpush1.msra.mxu0 0.0
    %3857 = vmatprep.subr.mxu0 0.0
    %3858 = vmatpush1.msra.mxu0 0.0
    %3859 = vmatprep.subr.mxu0 0.0
    %3860 = vmatpush1.msra.mxu0 0.0
    %3861 = vmatprep.subr.mxu0 0.0
    %3862 = vmatpush1.msra.mxu0 0.0
    %3863 = vmatprep.subr.mxu0 0.0
    %3864 = vmatpush1.msra.mxu0 0.0
    %3865 = vmatprep.subr.mxu0 0.0
    %3866 = vmatpush1.msra.mxu0 0.0
    %3867 = vmatprep.subr.mxu0 0.0
    %3868 = vmatpush1.msra.mxu0 0.0
    %3869 = vmatprep.subr.mxu0 0.0
    %3870 = vmatpush1.msra.mxu0 0.0
    %3871 = vmatprep.subr.mxu0 0.0
    %3872 = vmatpush1.msra.mxu0 0.0
    %3873 = vmatprep.subr.mxu0 0.0
    %3874 = vmatpush1.msra.mxu0 0.0
    %3875 = vmatprep.subr.mxu0 0.0
    %3876 = vmatpush1.msra.mxu0 0.0
    %3877 = vmatprep.subr.mxu0 0.0
    %3878 = vmatpush1.msra.mxu0 0.0
    %3879 = vmatprep.subr.mxu0 0.0
    %3880 = vmatpush1.msra.mxu0 0.0
    %3881 = vmatprep.subr.mxu0 0.0
    %3882 = vmatpush1.msra.mxu0 0.0
    %3883 = vmatprep.subr.mxu0 0.0
    %3884 = vmatpush1.msra.mxu0 0.0
    %3885 = vmatprep.subr.mxu0 0.0
    %3886 = vmatpush1.msra.mxu0 0.0
    %3887 = vmatprep.subr.mxu0 0.0
    %3888 = vmatpush1.msra.mxu0 0.0
    %3889 = vmatprep.subr.mxu0 0.0
    %3890 = vmatpush1.msra.mxu0 0.0
    %3891 = vmatprep.subr.mxu0 0.0
    %3892 = vmatpush1.msra.mxu0 0.0
    %3893 = vmatprep.subr.mxu0 0.0
    %3894 = vmatpush1.msra.mxu0 0.0
    %3895 = vmatprep.subr.mxu0 0.0
    %3896 = vmatpush1.msra.mxu0 0.0
    %3897 = vmatprep.subr.mxu0 0.0
    %3898 = vmatpush1.msra.mxu0 0.0
    %3899 = vmatprep.subr.mxu0 0.0
    %3900 = vmatpush1.msra.mxu0 0.0
    %3901 = vmatprep.subr.mxu0 0.0
    %3902 = vmatpush1.msra.mxu0 0.0
    %3903 = vmatprep.subr.mxu0 0.0
    %3904 = vmatpush1.msra.mxu0 0.0
    %3905 = vmatprep.subr.mxu0 0.0
    %3906 = vmatpush1.msra.mxu0 0.0
    %3907 = vmatprep.mubr.f32.mxu0 0.0
    %3908 = vmatmul.mubr.f32.gmra.mrb[0].mxu0 %v3839
    %v3909 = vpop.f32.mrb[0].mxu0
    %v3910 = vadd.f32 0.0, %v3909
    %v3911 = vpop.f32.mrb[0].mxu0
    %3912 = vdwg.mxu0
    %v3913 = vrot.slane %v225, 4
    %v3915 = vsel %vm937, %v3605, 0
    %v3917 = vsel %vm941, %v3913, 0
    %3919 = vmatprep.subr.mxu0 0.0
    %3920 = vmatpush1.msra.mxu0 %v3917
    %3921 = vmatprep.subr.mxu0 0.0
    %3922 = vmatpush1.msra.mxu0 0.0
    %3923 = vmatprep.subr.mxu0 0.0
    %3924 = vmatpush1.msra.mxu0 0.0
    %3925 = vmatprep.subr.mxu0 0.0
    %3926 = vmatpush1.msra.mxu0 0.0
    %3927 = vmatprep.subr.mxu0 0.0
    %3928 = vmatpush1.msra.mxu0 0.0
    %3929 = vmatprep.subr.mxu0 0.0
    %3930 = vmatpush1.msra.mxu0 0.0
    %3931 = vmatprep.subr.mxu0 0.0
    %3932 = vmatpush1.msra.mxu0 0.0
    %3933 = vmatprep.subr.mxu0 0.0
    %3934 = vmatpush1.msra.mxu0 0.0
    %3935 = vmatprep.subr.mxu0 0.0
    %3936 = vmatpush1.msra.mxu0 0.0
    %3937 = vmatprep.subr.mxu0 0.0
    %3938 = vmatpush1.msra.mxu0 0.0
    %3939 = vmatprep.subr.mxu0 0.0
    %3940 = vmatpush1.msra.mxu0 0.0
    %3941 = vmatprep.subr.mxu0 0.0
    %3942 = vmatpush1.msra.mxu0 0.0
    %3943 = vmatprep.subr.mxu0 0.0
    %3944 = vmatpush1.msra.mxu0 0.0
    %3945 = vmatprep.subr.mxu0 0.0
    %3946 = vmatpush1.msra.mxu0 0.0
    %3947 = vmatprep.subr.mxu0 0.0
    %3948 = vmatpush1.msra.mxu0 0.0
    %3949 = vmatprep.subr.mxu0 0.0
    %3950 = vmatpush1.msra.mxu0 0.0
    %3951 = vmatprep.subr.mxu0 0.0
    %3952 = vmatpush1.msra.mxu0 0.0
    %3953 = vmatprep.subr.mxu0 0.0
    %3954 = vmatpush1.msra.mxu0 0.0
    %3955 = vmatprep.subr.mxu0 0.0
    %3956 = vmatpush1.msra.mxu0 0.0
    %3957 = vmatprep.subr.mxu0 0.0
    %3958 = vmatpush1.msra.mxu0 0.0
    %3959 = vmatprep.subr.mxu0 0.0
    %3960 = vmatpush1.msra.mxu0 0.0
    %3961 = vmatprep.subr.mxu0 0.0
    %3962 = vmatpush1.msra.mxu0 0.0
    %3963 = vmatprep.subr.mxu0 0.0
    %3964 = vmatpush1.msra.mxu0 0.0
    %3965 = vmatprep.subr.mxu0 0.0
    %3966 = vmatpush1.msra.mxu0 0.0
    %3967 = vmatprep.subr.mxu0 0.0
    %3968 = vmatpush1.msra.mxu0 0.0
    %3969 = vmatprep.subr.mxu0 0.0
    %3970 = vmatpush1.msra.mxu0 0.0
    %3971 = vmatprep.subr.mxu0 0.0
    %3972 = vmatpush1.msra.mxu0 0.0
    %3973 = vmatprep.subr.mxu0 0.0
    %3974 = vmatpush1.msra.mxu0 0.0
    %3975 = vmatprep.subr.mxu0 0.0
    %3976 = vmatpush1.msra.mxu0 0.0
    %3977 = vmatprep.subr.mxu0 0.0
    %3978 = vmatpush1.msra.mxu0 0.0
    %3979 = vmatprep.subr.mxu0 0.0
    %3980 = vmatpush1.msra.mxu0 0.0
    %3981 = vmatprep.subr.mxu0 0.0
    %3982 = vmatpush1.msra.mxu0 0.0
    %3983 = vmatprep.mubr.f32.mxu0 0.0
    %3984 = vmatmul.mubr.f32.gmra.mrb[0].mxu0 %v3915
    %v3985 = vpop.f32.mrb[0].mxu0
    %v3986 = vadd.f32 0.0, %v3985
    %v3987 = vpop.f32.mrb[0].mxu0
    %3988 = vdwg.mxu0
    %v3989 = vrot.slane %v226, 4
    %v3991 = vsel %vm937, %v3606, 0
    %v3993 = vsel %vm941, %v3989, 0
    %3995 = vmatprep.subr.mxu0 0.0
    %3996 = vmatpush1.msra.mxu0 %v3993
    %3997 = vmatprep.subr.mxu0 0.0
    %3998 = vmatpush1.msra.mxu0 0.0
    %3999 = vmatprep.subr.mxu0 0.0
    %4000 = vmatpush1.msra.mxu0 0.0
    %4001 = vmatprep.subr.mxu0 0.0
    %4002 = vmatpush1.msra.mxu0 0.0
    %4003 = vmatprep.subr.mxu0 0.0
    %4004 = vmatpush1.msra.mxu0 0.0
    %4005 = vmatprep.subr.mxu0 0.0
    %4006 = vmatpush1.msra.mxu0 0.0
    %4007 = vmatprep.subr.mxu0 0.0
    %4008 = vmatpush1.msra.mxu0 0.0
    %4009 = vmatprep.subr.mxu0 0.0
    %4010 = vmatpush1.msra.mxu0 0.0
    %4011 = vmatprep.subr.mxu0 0.0
    %4012 = vmatpush1.msra.mxu0 0.0
    %4013 = vmatprep.subr.mxu0 0.0
    %4014 = vmatpush1.msra.mxu0 0.0
    %4015 = vmatprep.subr.mxu0 0.0
    %4016 = vmatpush1.msra.mxu0 0.0
    %4017 = vmatprep.subr.mxu0 0.0
    %4018 = vmatpush1.msra.mxu0 0.0
    %4019 = vmatprep.subr.mxu0 0.0
    %4020 = vmatpush1.msra.mxu0 0.0
    %4021 = vmatprep.subr.mxu0 0.0
    %4022 = vmatpush1.msra.mxu0 0.0
    %4023 = vmatprep.subr.mxu0 0.0
    %4024 = vmatpush1.msra.mxu0 0.0
    %4025 = vmatprep.subr.mxu0 0.0
    %4026 = vmatpush1.msra.mxu0 0.0
    %4027 = vmatprep.subr.mxu0 0.0
    %4028 = vmatpush1.msra.mxu0 0.0
    %4029 = vmatprep.subr.mxu0 0.0
    %4030 = vmatpush1.msra.mxu0 0.0
    %4031 = vmatprep.subr.mxu0 0.0
    %4032 = vmatpush1.msra.mxu0 0.0
    %4033 = vmatprep.subr.mxu0 0.0
    %4034 = vmatpush1.msra.mxu0 0.0
    %4035 = vmatprep.subr.mxu0 0.0
    %4036 = vmatpush1.msra.mxu0 0.0
    %4037 = vmatprep.subr.mxu0 0.0
    %4038 = vmatpush1.msra.mxu0 0.0
    %4039 = vmatprep.subr.mxu0 0.0
    %4040 = vmatpush1.msra.mxu0 0.0
    %4041 = vmatprep.subr.mxu0 0.0
    %4042 = vmatpush1.msra.mxu0 0.0
    %4043 = vmatprep.subr.mxu0 0.0
    %4044 = vmatpush1.msra.mxu0 0.0
    %4045 = vmatprep.subr.mxu0 0.0
    %4046 = vmatpush1.msra.mxu0 0.0
    %4047 = vmatprep.subr.mxu0 0.0
    %4048 = vmatpush1.msra.mxu0 0.0
    %4049 = vmatprep.subr.mxu0 0.0
    %4050 = vmatpush1.msra.mxu0 0.0
    %4051 = vmatprep.subr.mxu0 0.0
    %4052 = vmatpush1.msra.mxu0 0.0
    %4053 = vmatprep.subr.mxu0 0.0
    %4054 = vmatpush1.msra.mxu0 0.0
    %4055 = vmatprep.subr.mxu0 0.0
    %4056 = vmatpush1.msra.mxu0 0.0
    %4057 = vmatprep.subr.mxu0 0.0
    %4058 = vmatpush1.msra.mxu0 0.0
    %4059 = vmatprep.mubr.f32.mxu0 0.0
    %4060 = vmatmul.mubr.f32.gmra.mrb[0].mxu0 %v3991
    %v4061 = vpop.f32.mrb[0].mxu0
    %v4062 = vadd.f32 0.0, %v4061
    %v4063 = vpop.f32.mrb[0].mxu0
    %4064 = vdwg.mxu0
    %v4065 = vrot.slane %v227, 4
    %v4067 = vsel %vm937, %v3607, 0
    %v4069 = vsel %vm941, %v4065, 0
    %4071 = vmatprep.subr.mxu0 0.0
    %4072 = vmatpush1.msra.mxu0 %v4069
    %4073 = vmatprep.subr.mxu0 0.0
    %4074 = vmatpush1.msra.mxu0 0.0
    %4075 = vmatprep.subr.mxu0 0.0
    %4076 = vmatpush1.msra.mxu0 0.0
    %4077 = vmatprep.subr.mxu0 0.0
    %4078 = vmatpush1.msra.mxu0 0.0
    %4079 = vmatprep.subr.mxu0 0.0
    %4080 = vmatpush1.msra.mxu0 0.0
    %4081 = vmatprep.subr.mxu0 0.0
    %4082 = vmatpush1.msra.mxu0 0.0
    %4083 = vmatprep.subr.mxu0 0.0
    %4084 = vmatpush1.msra.mxu0 0.0
    %4085 = vmatprep.subr.mxu0 0.0
    %4086 = vmatpush1.msra.mxu0 0.0
    %4087 = vmatprep.subr.mxu0 0.0
    %4088 = vmatpush1.msra.mxu0 0.0
    %4089 = vmatprep.subr.mxu0 0.0
    %4090 = vmatpush1.msra.mxu0 0.0
    %4091 = vmatprep.subr.mxu0 0.0
    %4092 = vmatpush1.msra.mxu0 0.0
    %4093 = vmatprep.subr.mxu0 0.0
    %4094 = vmatpush1.msra.mxu0 0.0
    %4095 = vmatprep.subr.mxu0 0.0
    %4096 = vmatpush1.msra.mxu0 0.0
    %4097 = vmatprep.subr.mxu0 0.0
    %4098 = vmatpush1.msra.mxu0 0.0
    %4099 = vmatprep.subr.mxu0 0.0
    %4100 = vmatpush1.msra.mxu0 0.0
    %4101 = vmatprep.subr.mxu0 0.0
    %4102 = vmatpush1.msra.mxu0 0.0
    %4103 = vmatprep.subr.mxu0 0.0
    %4104 = vmatpush1.msra.mxu0 0.0
    %4105 = vmatprep.subr.mxu0 0.0
    %4106 = vmatpush1.msra.mxu0 0.0
    %4107 = vmatprep.subr.mxu0 0.0
    %4108 = vmatpush1.msra.mxu0 0.0
    %4109 = vmatprep.subr.mxu0 0.0
    %4110 = vmatpush1.msra.mxu0 0.0
    %4111 = vmatprep.subr.mxu0 0.0
    %4112 = vmatpush1.msra.mxu0 0.0
    %4113 = vmatprep.subr.mxu0 0.0
    %4114 = vmatpush1.msra.mxu0 0.0
    %4115 = vmatprep.subr.mxu0 0.0
    %4116 = vmatpush1.msra.mxu0 0.0
    %4117 = vmatprep.subr.mxu0 0.0
    %4118 = vmatpush1.msra.mxu0 0.0
    %4119 = vmatprep.subr.mxu0 0.0
    %4120 = vmatpush1.msra.mxu0 0.0
    %4121 = vmatprep.subr.mxu0 0.0
    %4122 = vmatpush1.msra.mxu0 0.0
    %4123 = vmatprep.subr.mxu0 0.0
    %4124 = vmatpush1.msra.mxu0 0.0
    %4125 = vmatprep.subr.mxu0 0.0
    %4126 = vmatpush1.msra.mxu0 0.0
    %4127 = vmatprep.subr.mxu0 0.0
    %4128 = vmatpush1.msra.mxu0 0.0
    %4129 = vmatprep.subr.mxu0 0.0
    %4130 = vmatpush1.msra.mxu0 0.0
    %4131 = vmatprep.subr.mxu0 0.0
    %4132 = vmatpush1.msra.mxu0 0.0
    %4133 = vmatprep.subr.mxu0 0.0
    %4134 = vmatpush1.msra.mxu0 0.0
    %4135 = vmatprep.mubr.f32.mxu0 0.0
    %4136 = vmatmul.mubr.f32.gmra.mrb[0].mxu0 %v4067
    %v4137 = vpop.f32.mrb[0].mxu0
    %v4138 = vadd.f32 0.0, %v4137
    %v4139 = vpop.f32.mrb[0].mxu0
    %4140 = vdwg.mxu0
    %v4141 = vrot.slane %v228, 4
    %v4143 = vsel %vm937, %v3608, 0
    %v4145 = vsel %vm941, %v4141, 0
    %4147 = vmatprep.subr.mxu0 0.0
    %4148 = vmatpush1.msra.mxu0 %v4145
    %4149 = vmatprep.subr.mxu0 0.0
    %4150 = vmatpush1.msra.mxu0 0.0
    %4151 = vmatprep.subr.mxu0 0.0
    %4152 = vmatpush1.msra.mxu0 0.0
    %4153 = vmatprep.subr.mxu0 0.0
    %4154 = vmatpush1.msra.mxu0 0.0
    %4155 = vmatprep.subr.mxu0 0.0
    %4156 = vmatpush1.msra.mxu0 0.0
    %4157 = vmatprep.subr.mxu0 0.0
    %4158 = vmatpush1.msra.mxu0 0.0
    %4159 = vmatprep.subr.mxu0 0.0
    %4160 = vmatpush1.msra.mxu0 0.0
    %4161 = vmatprep.subr.mxu0 0.0
    %4162 = vmatpush1.msra.mxu0 0.0
    %4163 = vmatprep.subr.mxu0 0.0
    %4164 = vmatpush1.msra.mxu0 0.0
    %4165 = vmatprep.subr.mxu0 0.0
    %4166 = vmatpush1.msra.mxu0 0.0
    %4167 = vmatprep.subr.mxu0 0.0
    %4168 = vmatpush1.msra.mxu0 0.0
    %4169 = vmatprep.subr.mxu0 0.0
    %4170 = vmatpush1.msra.mxu0 0.0
    %4171 = vmatprep.subr.mxu0 0.0
    %4172 = vmatpush1.msra.mxu0 0.0
    %4173 = vmatprep.subr.mxu0 0.0
    %4174 = vmatpush1.msra.mxu0 0.0
    %4175 = vmatprep.subr.mxu0 0.0
    %4176 = vmatpush1.msra.mxu0 0.0
    %4177 = vmatprep.subr.mxu0 0.0
    %4178 = vmatpush1.msra.mxu0 0.0
    %4179 = vmatprep.subr.mxu0 0.0
    %4180 = vmatpush1.msra.mxu0 0.0
    %4181 = vmatprep.subr.mxu0 0.0
    %4182 = vmatpush1.msra.mxu0 0.0
    %4183 = vmatprep.subr.mxu0 0.0
    %4184 = vmatpush1.msra.mxu0 0.0
    %4185 = vmatprep.subr.mxu0 0.0
    %4186 = vmatpush1.msra.mxu0 0.0
    %4187 = vmatprep.subr.mxu0 0.0
    %4188 = vmatpush1.msra.mxu0 0.0
    %4189 = vmatprep.subr.mxu0 0.0
    %4190 = vmatpush1.msra.mxu0 0.0
    %4191 = vmatprep.subr.mxu0 0.0
    %4192 = vmatpush1.msra.mxu0 0.0
    %4193 = vmatprep.subr.mxu0 0.0
    %4194 = vmatpush1.msra.mxu0 0.0
    %4195 = vmatprep.subr.mxu0 0.0
    %4196 = vmatpush1.msra.mxu0 0.0
    %4197 = vmatprep.subr.mxu0 0.0
    %4198 = vmatpush1.msra.mxu0 0.0
    %4199 = vmatprep.subr.mxu0 0.0
    %4200 = vmatpush1.msra.mxu0 0.0
    %4201 = vmatprep.subr.mxu0 0.0
    %4202 = vmatpush1.msra.mxu0 0.0
    %4203 = vmatprep.subr.mxu0 0.0
    %4204 = vmatpush1.msra.mxu0 0.0
    %4205 = vmatprep.subr.mxu0 0.0
    %4206 = vmatpush1.msra.mxu0 0.0
    %4207 = vmatprep.subr.mxu0 0.0
    %4208 = vmatpush1.msra.mxu0 0.0
    %4209 = vmatprep.subr.mxu0 0.0
    %4210 = vmatpush1.msra.mxu0 0.0
    %4211 = vmatprep.mubr.f32.mxu0 0.0
    %4212 = vmatmul.mubr.f32.gmra.mrb[0].mxu0 %v4143
    %v4213 = vpop.f32.mrb[0].mxu0
    %v4214 = vadd.f32 0.0, %v4213
    %v4215 = vpop.f32.mrb[0].mxu0
    %4216 = vdwg.mxu0
    %4225 = vrot.lane.b32.xlu0 %v2347, 16
    %v4226 = vpop.permute.xlu0 %4225
    %4227 = vrot.lane.b32.xlu0 %v2424, 16
    %v4228 = vpop.permute.xlu0 %4227
    %4229 = vrot.lane.b32.xlu0 %v2501, 16
    %v4230 = vpop.permute.xlu0 %4229
    %4231 = vrot.lane.b32.xlu0 %v2578, 16
    %v4232 = vpop.permute.xlu0 %4231
    %4233 = vrot.lane.b32.xlu0 %v2655, 16
    %v4234 = vpop.permute.xlu0 %4233
    %4235 = vrot.lane.b32.xlu0 %v2732, 16
    %v4236 = vpop.permute.xlu0 %4235
    %4237 = vrot.lane.b32.xlu0 %v2809, 16
    %v4238 = vpop.permute.xlu0 %4237
    %4239 = vrot.lane.b32.xlu0 %v2886, 16
    %v4240 = vpop.permute.xlu0 %4239
    %4257 = vrot.lane.b32.xlu0 %v3682, 32
    %v4258 = vpop.permute.xlu0 %4257
    %4259 = vrot.lane.b32.xlu0 %v3758, 32
    %v4260 = vpop.permute.xlu0 %4259
    %4261 = vrot.lane.b32.xlu0 %v3834, 32
    %v4262 = vpop.permute.xlu0 %4261
    %4263 = vrot.lane.b32.xlu0 %v3910, 32
    %v4264 = vpop.permute.xlu0 %4263
    %4265 = vrot.lane.b32.xlu0 %v3986, 32
    %v4266 = vpop.permute.xlu0 %4265
    %4267 = vrot.lane.b32.xlu0 %v4062, 32
    %v4268 = vpop.permute.xlu0 %4267
    %4269 = vrot.lane.b32.xlu0 %v4138, 32
    %v4270 = vpop.permute.xlu0 %4269
    %4271 = vrot.lane.b32.xlu0 %v4214, 32
    %v4272 = vpop.permute.xlu0 %4271
    %v4281 = vsel %vm231, %v1011, %v4226
    %v4282 = vsel %vm231, %v1088, %v4228
    %v4283 = vsel %vm231, %v1165, %v4230
    %v4284 = vsel %vm231, %v1242, %v4232
    %v4285 = vsel %vm231, %v1319, %v4234
    %v4286 = vsel %vm231, %v1396, %v4236
    %v4287 = vsel %vm231, %v1473, %v4238
    %v4288 = vsel %vm231, %v1550, %v4240
    %vm4289 = vcmask 261120
    %v4290 = vsel %vm4289, %v4281, %v4258
    %v4291 = vsel %vm4289, %v4282, %v4260
    %v4292 = vsel %vm4289, %v4283, %v4262
    %v4293 = vsel %vm4289, %v4284, %v4264
    %v4294 = vsel %vm4289, %v4285, %v4266
    %v4295 = vsel %vm4289, %v4286, %v4268
    %v4296 = vsel %vm4289, %v4287, %v4270
    %v4297 = vsel %vm4289, %v4288, %v4272
    %v4298 = vld [vmem:[#allocation7] sm:$0xff]
    %v4299 = vld [vmem:[#allocation7 + $0x8] sm:$0xff]
    %v4300 = vld [vmem:[#allocation7 + $0x10] sm:$0xff]
    %v4301 = vld [vmem:[#allocation7 + $0x18] sm:$0xff]
    %v4302 = vld [vmem:[#allocation7 + $0x20] sm:$0xff]
    %v4303 = vld [vmem:[#allocation7 + $0x28] sm:$0xff]
    %v4304 = vlaneseq
    %v4305 = vshrl.u32 %v4304, 7
    %v4306 = vsub.s32 0, %v4305
    %v4307 = vrot.slane %v86, %v4306
    %v4316 = vcombine.low %v4290, %v4291
    %v4317 = vcombine.low %v4292, %v4293
    %v4318 = vcombine.low %v4294, %v4295
    %v4319 = vcombine.low %v4296, %v4297
    %v4320 = vsel %vm111, %v4316, 0
    %v4322 = vsel %vm111, %v4317, 0
    %v4324 = vsel %vm111, %v4318, 0
    %v4326 = vsel %vm111, %v4319, 0
    %4328 = vmatprep.subr.mxu0 0.0
    %4329 = vmatpush1.msra.mxu0 %v4298
    %4330 = vmatprep.subr.mxu0 0.0
    %4331 = vmatpush1.msra.mxu0 %v4299
    %4332 = vmatprep.subr.mxu0 0.0
    %4333 = vmatpush1.msra.mxu0 %v4300
    %4334 = vmatprep.subr.mxu0 0.0
    %4335 = vmatpush1.msra.mxu0 %v4301
    %4336 = vmatprep.subr.mxu0 0.0
    %4337 = vmatpush1.msra.mxu0 %v4302
    %4338 = vmatprep.subr.mxu0 0.0
    %4339 = vmatpush1.msra.mxu0 %v4303
    %4340 = vmatprep.subr.mxu0 0.0
    %4341 = vmatpush1.msra.mxu0 0.0
    %4342 = vmatprep.subr.mxu0 0.0
    %4343 = vmatpush1.msra.mxu0 0.0
    %4344 = vmatprep.subr.mxu0 0.0
    %4345 = vmatpush1.msra.mxu0 0.0
    %4346 = vmatprep.subr.mxu0 0.0
    %4347 = vmatpush1.msra.mxu0 0.0
    %4348 = vmatprep.subr.mxu0 0.0
    %4349 = vmatpush1.msra.mxu0 0.0
    %4350 = vmatprep.subr.mxu0 0.0
    %4351 = vmatpush1.msra.mxu0 0.0
    %4352 = vmatprep.subr.mxu0 0.0
    %4353 = vmatpush1.msra.mxu0 0.0
    %4354 = vmatprep.subr.mxu0 0.0
    %4355 = vmatpush1.msra.mxu0 0.0
    %4356 = vmatprep.subr.mxu0 0.0
    %4357 = vmatpush1.msra.mxu0 0.0
    %4358 = vmatprep.subr.mxu0 0.0
    %4359 = vmatpush1.msra.mxu0 0.0
    %4360 = vmatprep.subr.mxu0 0.0
    %4361 = vmatpush1.msra.mxu0 0.0
    %4362 = vmatprep.subr.mxu0 0.0
    %4363 = vmatpush1.msra.mxu0 0.0
    %4364 = vmatprep.subr.mxu0 0.0
    %4365 = vmatpush1.msra.mxu0 0.0
    %4366 = vmatprep.subr.mxu0 0.0
    %4367 = vmatpush1.msra.mxu0 0.0
    %4368 = vmatprep.subr.mxu0 0.0
    %4369 = vmatpush1.msra.mxu0 0.0
    %4370 = vmatprep.subr.mxu0 0.0
    %4371 = vmatpush1.msra.mxu0 0.0
    %4372 = vmatprep.subr.mxu0 0.0
    %4373 = vmatpush1.msra.mxu0 0.0
    %4374 = vmatprep.subr.mxu0 0.0
    %4375 = vmatpush1.msra.mxu0 0.0
    %4376 = vmatprep.subr.mxu0 0.0
    %4377 = vmatpush1.msra.mxu0 0.0
    %4378 = vmatprep.subr.mxu0 0.0
    %4379 = vmatpush1.msra.mxu0 0.0
    %4380 = vmatprep.subr.mxu0 0.0
    %4381 = vmatpush1.msra.mxu0 0.0
    %4382 = vmatprep.subr.mxu0 0.0
    %4383 = vmatpush1.msra.mxu0 0.0
    %4384 = vmatprep.subr.mxu0 0.0
    %4385 = vmatpush1.msra.mxu0 0.0
    %4386 = vmatprep.subr.mxu0 0.0
    %4387 = vmatpush1.msra.mxu0 0.0
    %4388 = vmatprep.subr.mxu0 0.0
    %4389 = vmatpush1.msra.mxu0 0.0
    %4390 = vmatprep.subr.mxu0 0.0
    %4391 = vmatpush1.msra.mxu0 0.0
    %4392 = vmatprep.mubr.f32.mxu0 0.0
    %4393 = vmatmul.mubr.f32.gmra.mrb[0].mxu0 %v4320
    %v4394 = vpop.f32.mrb[0].mxu0
    %v4395 = vadd.f32 %v4307, %v4394
    %v4396 = vpop.f32.mrb[0].mxu0
    %4397 = vmatprep.mubr.f32.mxu0 0.0
    %4398 = vmatmul.mubr.f32.gmra.mrb[0].mxu0 %v4322
    %v4399 = vpop.f32.mrb[0].mxu0
    %v4400 = vadd.f32 %v4307, %v4399
    %v4401 = vpop.f32.mrb[0].mxu0
    %4402 = vmatprep.mubr.f32.mxu0 0.0
    %4403 = vmatmul.mubr.f32.gmra.mrb[0].mxu0 %v4324
    %v4404 = vpop.f32.mrb[0].mxu0
    %v4405 = vadd.f32 %v4307, %v4404
    %v4406 = vpop.f32.mrb[0].mxu0
    %4407 = vmatprep.mubr.f32.mxu0 0.0
    %4408 = vmatmul.mubr.f32.gmra.mrb[0].mxu0 %v4326
    %v4409 = vpop.f32.mrb[0].mxu0
    %v4410 = vadd.f32 %v4307, %v4409
    %v4411 = vpop.f32.mrb[0].mxu0
    %4412 = vdwg.mxu0
    %v4413 = vadd.f32 %v82, %v4395
    %v4414 = vadd.f32 %v83, %v4400
    %v4415 = vadd.f32 %v84, %v4405
    %v4416 = vadd.f32 %v85, %v4410
    %v4417 = vsel %vm111, %v4413, 0.0
    %4418 = vadd.xlane.f32.xlu0 %v4417
    %v4419 = vpop.xlane.xlu0 %4418
    %v4420 = vsel %vm111, %v4414, 0.0
    %4421 = vadd.xlane.f32.xlu0 %v4420
    %v4422 = vpop.xlane.xlu0 %4421
    %v4423 = vsel %vm111, %v4415, 0.0
    %4424 = vadd.xlane.f32.xlu0 %v4423
    %v4425 = vpop.xlane.xlu0 %4424
    %v4426 = vsel %vm111, %v4416, 0.0
    %4427 = vadd.xlane.f32.xlu0 %v4426
    %v4428 = vpop.xlane.xlu0 %4427
    %v4429 = vrcp.pop 48.0
    %v4430 = vmul.f32 %v4419, %v4429
    %v4431 = vmul.f32 %v4422, %v4429
    %v4432 = vmul.f32 %v4425, %v4429
    %v4433 = vmul.f32 %v4428, %v4429
    %v4434 = vsub.f32 %v4413, %v4430
    %v4435 = vsub.f32 %v4414, %v4431
    %v4436 = vsub.f32 %v4415, %v4432
    %v4437 = vsub.f32 %v4416, %v4433
    %v4438 = vmul.f32 %v4434, %v4434
    %v4439 = vmul.f32 %v4435, %v4435
    %v4440 = vmul.f32 %v4436, %v4436
    %v4441 = vmul.f32 %v4437, %v4437
    %v4442 = vsel %vm111, %v4438, 0.0
    %4443 = vadd.xlane.f32.xlu0 %v4442
    %v4444 = vpop.xlane.xlu0 %4443
    %v4445 = vsel %vm111, %v4439, 0.0
    %4446 = vadd.xlane.f32.xlu0 %v4445
    %v4447 = vpop.xlane.xlu0 %4446
    %v4448 = vsel %vm111, %v4440, 0.0
    %4449 = vadd.xlane.f32.xlu0 %v4448
    %v4450 = vpop.xlane.xlu0 %4449
    %v4451 = vsel %vm111, %v4441, 0.0
    %4452 = vadd.xlane.f32.xlu0 %v4451
    %v4453 = vpop.xlane.xlu0 %4452
    %v4454 = vmul.f32 %v4444, %v4429
    %v4455 = vmul.f32 %v4447, %v4429
    %v4456 = vmul.f32 %v4450, %v4429
    %v4457 = vmul.f32 %v4453, %v4429
    %v4458 = vadd.f32 %v4454, 1e-05
    %v4459 = vadd.f32 %v4455, 1e-05
    %v4460 = vadd.f32 %v4456, 1e-05
    %v4461 = vadd.f32 %v4457, 1e-05
    %v4462 = vrsqrt.pop %v4458
    %v4463 = vrsqrt.pop %v4459
    %v4464 = vrsqrt.pop %v4460
    %v4465 = vrsqrt.pop %v4461
    %v4466 = vmul.f32 %v4434, %v4462
    %v4467 = vmul.f32 %v4435, %v4463
    %v4468 = vmul.f32 %v4436, %v4464
    %v4469 = vmul.f32 %v4437, %v4465
    %v4470 = vlaneseq
    %v4471 = vshrl.u32 %v4470, 7
    %v4472 = vsub.s32 1, %v4471
    %v4473 = vrot.slane %v86, %v4472
    %v4474 = vmul.f32 %v4466, %v4473
    %v4475 = vmul.f32 %v4467, %v4473
    %v4476 = vmul.f32 %v4468, %v4473
    %v4477 = vmul.f32 %v4469, %v4473
    %v4478 = vlaneseq
    %v4479 = vshrl.u32 %v4478, 7
    %v4480 = vsub.s32 2, %v4479
    %v4481 = vrot.slane %v86, %v4480
    %v4482 = vadd.f32 %v4474, %v4481
    %v4483 = vadd.f32 %v4475, %v4481
    %v4484 = vadd.f32 %v4476, %v4481
    %v4485 = vadd.f32 %v4477, %v4481
    %s4486 = scalar_lea.vmem [#allocation7], 48
    %v4487 = vld [vmem:[%s4486] sm:$0xff]
    %v4488 = vld [vmem:[%s4486 + $0x8] sm:$0xff]
    %v4489 = vld [vmem:[%s4486 + $0x10] sm:$0xff]
    %v4490 = vld [vmem:[%s4486 + $0x18] sm:$0xff]
    %v4491 = vld [vmem:[%s4486 + $0x20] sm:$0xff]
    %v4492 = vld [vmem:[%s4486 + $0x28] sm:$0xff]
    %v4493 = vlaneseq
    %v4494 = vshrl.u32 %v4493, 7
    %v4495 = vsub.s32 5, %v4494
    %v4496 = vrot.slane %v86, %v4495
    %v4498 = vsel %vm111, %v4482, 0
    %v4501 = vsel %vm111, %v4483, 0
    %v4504 = vsel %vm111, %v4484, 0
    %v4507 = vsel %vm111, %v4485, 0
    %4509 = vmatprep.subr.mxu0 0.0
    %4510 = vmatpush1.msra.mxu0 %v4487
    %4511 = vmatprep.subr.mxu0 0.0
    %4512 = vmatpush1.msra.mxu0 %v4488
    %4513 = vmatprep.subr.mxu0 0.0
    %4514 = vmatpush1.msra.mxu0 %v4489
    %4515 = vmatprep.subr.mxu0 0.0
    %4516 = vmatpush1.msra.mxu0 %v4490
    %4517 = vmatprep.subr.mxu0 0.0
    %4518 = vmatpush1.msra.mxu0 %v4491
    %4519 = vmatprep.subr.mxu0 0.0
    %4520 = vmatpush1.msra.mxu0 %v4492
    %4521 = vmatprep.subr.mxu0 0.0
    %4522 = vmatpush1.msra.mxu0 0.0
    %4523 = vmatprep.subr.mxu0 0.0
    %4524 = vmatpush1.msra.mxu0 0.0
    %4525 = vmatprep.subr.mxu0 0.0
    %4526 = vmatpush1.msra.mxu0 0.0
    %4527 = vmatprep.subr.mxu0 0.0
    %4528 = vmatpush1.msra.mxu0 0.0
    %4529 = vmatprep.subr.mxu0 0.0
    %4530 = vmatpush1.msra.mxu0 0.0
    %4531 = vmatprep.subr.mxu0 0.0
    %4532 = vmatpush1.msra.mxu0 0.0
    %4533 = vmatprep.subr.mxu0 0.0
    %4534 = vmatpush1.msra.mxu0 0.0
    %4535 = vmatprep.subr.mxu0 0.0
    %4536 = vmatpush1.msra.mxu0 0.0
    %4537 = vmatprep.subr.mxu0 0.0
    %4538 = vmatpush1.msra.mxu0 0.0
    %4539 = vmatprep.subr.mxu0 0.0
    %4540 = vmatpush1.msra.mxu0 0.0
    %4541 = vmatprep.subr.mxu0 0.0
    %4542 = vmatpush1.msra.mxu0 0.0
    %4543 = vmatprep.subr.mxu0 0.0
    %4544 = vmatpush1.msra.mxu0 0.0
    %4545 = vmatprep.subr.mxu0 0.0
    %4546 = vmatpush1.msra.mxu0 0.0
    %4547 = vmatprep.subr.mxu0 0.0
    %4548 = vmatpush1.msra.mxu0 0.0
    %4549 = vmatprep.subr.mxu0 0.0
    %4550 = vmatpush1.msra.mxu0 0.0
    %4551 = vmatprep.subr.mxu0 0.0
    %4552 = vmatpush1.msra.mxu0 0.0
    %4553 = vmatprep.subr.mxu0 0.0
    %4554 = vmatpush1.msra.mxu0 0.0
    %4555 = vmatprep.subr.mxu0 0.0
    %4556 = vmatpush1.msra.mxu0 0.0
    %4557 = vmatprep.subr.mxu0 0.0
    %4558 = vmatpush1.msra.mxu0 0.0
    %4559 = vmatprep.subr.mxu0 0.0
    %4560 = vmatpush1.msra.mxu0 0.0
    %4561 = vmatprep.subr.mxu0 0.0
    %4562 = vmatpush1.msra.mxu0 0.0
    %4563 = vmatprep.subr.mxu0 0.0
    %4564 = vmatpush1.msra.mxu0 0.0
    %4565 = vmatprep.subr.mxu0 0.0
    %4566 = vmatpush1.msra.mxu0 0.0
    %4567 = vmatprep.subr.mxu0 0.0
    %4568 = vmatpush1.msra.mxu0 0.0
    %4569 = vmatprep.subr.mxu0 0.0
    %4570 = vmatpush1.msra.mxu0 0.0
    %4571 = vmatprep.subr.mxu0 0.0
    %4572 = vmatpush1.msra.mxu0 0.0
    %4573 = vmatprep.mubr.f32.mxu0 0.0
    %4574 = vmatmul.mubr.f32.gmra.mrb[0].mxu0 %v4498
    %v4575 = vpop.f32.mrb[0].mxu0
    %v4576 = vadd.f32 %v4496, %v4575
    %v4577 = vpop.f32.mrb[0].mxu0
    %4578 = vmatprep.mubr.f32.mxu0 0.0
    %4579 = vmatmul.mubr.f32.gmra.mrb[0].mxu0 %v4501
    %v4580 = vpop.f32.mrb[0].mxu0
    %v4581 = vadd.f32 %v4496, %v4580
    %v4582 = vpop.f32.mrb[0].mxu0
    %4583 = vmatprep.mubr.f32.mxu0 0.0
    %4584 = vmatmul.mubr.f32.gmra.mrb[0].mxu0 %v4504
    %v4585 = vpop.f32.mrb[0].mxu0
    %v4586 = vadd.f32 %v4496, %v4585
    %v4587 = vpop.f32.mrb[0].mxu0
    %4588 = vmatprep.mubr.f32.mxu0 0.0
    %4589 = vmatmul.mubr.f32.gmra.mrb[0].mxu0 %v4507
    %v4590 = vpop.f32.mrb[0].mxu0
    %v4591 = vadd.f32 %v4496, %v4590
    %v4592 = vpop.f32.mrb[0].mxu0
    %4593 = vdwg.mxu0
    %v4594 = vmax.f32 %v4576, 0.0
    %v4595 = vmax.f32 %v4581, 0.0
    %v4596 = vmax.f32 %v4586, 0.0
    %v4597 = vmax.f32 %v4591, 0.0
    %s4598 = scalar_lea.vmem [#allocation7], 96
    %v4599 = vld [vmem:[%s4598] sm:$0xff]
    %v4600 = vld [vmem:[%s4598 + $0x8] sm:$0xff]
    %v4601 = vld [vmem:[%s4598 + $0x10] sm:$0xff]
    %v4602 = vld [vmem:[%s4598 + $0x18] sm:$0xff]
    %v4603 = vld [vmem:[%s4598 + $0x20] sm:$0xff]
    %v4604 = vld [vmem:[%s4598 + $0x28] sm:$0xff]
    %v4605 = vlaneseq
    %v4606 = vshrl.u32 %v4605, 7
    %v4607 = vsub.s32 6, %v4606
    %v4608 = vrot.slane %v86, %v4607
    %v4610 = vsel %vm111, %v4594, 0
    %v4613 = vsel %vm111, %v4595, 0
    %v4616 = vsel %vm111, %v4596, 0
    %v4619 = vsel %vm111, %v4597, 0
    %4621 = vmatprep.subr.mxu0 0.0
    %4622 = vmatpush1.msra.mxu0 %v4599
    %4623 = vmatprep.subr.mxu0 0.0
    %4624 = vmatpush1.msra.mxu0 %v4600
    %4625 = vmatprep.subr.mxu0 0.0
    %4626 = vmatpush1.msra.mxu0 %v4601
    %4627 = vmatprep.subr.mxu0 0.0
    %4628 = vmatpush1.msra.mxu0 %v4602
    %4629 = vmatprep.subr.mxu0 0.0
    %4630 = vmatpush1.msra.mxu0 %v4603
    %4631 = vmatprep.subr.mxu0 0.0
    %4632 = vmatpush1.msra.mxu0 %v4604
    %4633 = vmatprep.subr.mxu0 0.0
    %4634 = vmatpush1.msra.mxu0 0.0
    %4635 = vmatprep.subr.mxu0 0.0
    %4636 = vmatpush1.msra.mxu0 0.0
    %4637 = vmatprep.subr.mxu0 0.0
    %4638 = vmatpush1.msra.mxu0 0.0
    %4639 = vmatprep.subr.mxu0 0.0
    %4640 = vmatpush1.msra.mxu0 0.0
    %4641 = vmatprep.subr.mxu0 0.0
    %4642 = vmatpush1.msra.mxu0 0.0
    %4643 = vmatprep.subr.mxu0 0.0
    %4644 = vmatpush1.msra.mxu0 0.0
    %4645 = vmatprep.subr.mxu0 0.0
    %4646 = vmatpush1.msra.mxu0 0.0
    %4647 = vmatprep.subr.mxu0 0.0
    %4648 = vmatpush1.msra.mxu0 0.0
    %4649 = vmatprep.subr.mxu0 0.0
    %4650 = vmatpush1.msra.mxu0 0.0
    %4651 = vmatprep.subr.mxu0 0.0
    %4652 = vmatpush1.msra.mxu0 0.0
    %4653 = vmatprep.subr.mxu0 0.0
    %4654 = vmatpush1.msra.mxu0 0.0
    %4655 = vmatprep.subr.mxu0 0.0
    %4656 = vmatpush1.msra.mxu0 0.0
    %4657 = vmatprep.subr.mxu0 0.0
    %4658 = vmatpush1.msra.mxu0 0.0
    %4659 = vmatprep.subr.mxu0 0.0
    %4660 = vmatpush1.msra.mxu0 0.0
    %4661 = vmatprep.subr.mxu0 0.0
    %4662 = vmatpush1.msra.mxu0 0.0
    %4663 = vmatprep.subr.mxu0 0.0
    %4664 = vmatpush1.msra.mxu0 0.0
    %4665 = vmatprep.subr.mxu0 0.0
    %4666 = vmatpush1.msra.mxu0 0.0
    %4667 = vmatprep.subr.mxu0 0.0
    %4668 = vmatpush1.msra.mxu0 0.0
    %4669 = vmatprep.subr.mxu0 0.0
    %4670 = vmatpush1.msra.mxu0 0.0
    %4671 = vmatprep.subr.mxu0 0.0
    %4672 = vmatpush1.msra.mxu0 0.0
    %4673 = vmatprep.subr.mxu0 0.0
    %4674 = vmatpush1.msra.mxu0 0.0
    %4675 = vmatprep.subr.mxu0 0.0
    %4676 = vmatpush1.msra.mxu0 0.0
    %4677 = vmatprep.subr.mxu0 0.0
    %4678 = vmatpush1.msra.mxu0 0.0
    %4679 = vmatprep.subr.mxu0 0.0
    %4680 = vmatpush1.msra.mxu0 0.0
    %4681 = vmatprep.subr.mxu0 0.0
    %4682 = vmatpush1.msra.mxu0 0.0
    %4683 = vmatprep.subr.mxu0 0.0
    %4684 = vmatpush1.msra.mxu0 0.0
    %4685 = vmatprep.mubr.f32.mxu0 0.0
    %4686 = vmatmul.mubr.f32.gmra.mrb[0].mxu0 %v4610
    %v4687 = vpop.f32.mrb[0].mxu0
    %v4688 = vadd.f32 %v4608, %v4687
    %v4689 = vpop.f32.mrb[0].mxu0
    %4690 = vmatprep.mubr.f32.mxu0 0.0
    %4691 = vmatmul.mubr.f32.gmra.mrb[0].mxu0 %v4613
    %v4692 = vpop.f32.mrb[0].mxu0
    %v4693 = vadd.f32 %v4608, %v4692
    %v4694 = vpop.f32.mrb[0].mxu0
    %4695 = vmatprep.mubr.f32.mxu0 0.0
    %4696 = vmatmul.mubr.f32.gmra.mrb[0].mxu0 %v4616
    %v4697 = vpop.f32.mrb[0].mxu0
    %v4698 = vadd.f32 %v4608, %v4697
    %v4699 = vpop.f32.mrb[0].mxu0
    %4700 = vmatprep.mubr.f32.mxu0 0.0
    %4701 = vmatmul.mubr.f32.gmra.mrb[0].mxu0 %v4619
    %v4702 = vpop.f32.mrb[0].mxu0
    %v4703 = vadd.f32 %v4608, %v4702
    %v4704 = vpop.f32.mrb[0].mxu0
    %4705 = vdwg.mxu0
    %v4706 = vadd.f32 %v4482, %v4688
    %v4707 = vadd.f32 %v4483, %v4693
    %v4708 = vadd.f32 %v4484, %v4698
    %v4709 = vadd.f32 %v4485, %v4703
    %v4710 = vsel %vm111, %v4706, 0.0
    %4711 = vadd.xlane.f32.xlu0 %v4710
    %v4712 = vpop.xlane.xlu0 %4711
    %v4713 = vsel %vm111, %v4707, 0.0
    %4714 = vadd.xlane.f32.xlu0 %v4713
    %v4715 = vpop.xlane.xlu0 %4714
    %v4716 = vsel %vm111, %v4708, 0.0
    %4717 = vadd.xlane.f32.xlu0 %v4716
    %v4718 = vpop.xlane.xlu0 %4717
    %v4719 = vsel %vm111, %v4709, 0.0
    %4720 = vadd.xlane.f32.xlu0 %v4719
    %v4721 = vpop.xlane.xlu0 %4720
    %v4722 = vmul.f32 %v4712, %v4429
    %v4723 = vmul.f32 %v4715, %v4429
    %v4724 = vmul.f32 %v4718, %v4429
    %v4725 = vmul.f32 %v4721, %v4429
    %v4726 = vsub.f32 %v4706, %v4722
    %v4727 = vsub.f32 %v4707, %v4723
    %v4728 = vsub.f32 %v4708, %v4724
    %v4729 = vsub.f32 %v4709, %v4725
    %v4730 = vmul.f32 %v4726, %v4726
    %v4731 = vmul.f32 %v4727, %v4727
    %v4732 = vmul.f32 %v4728, %v4728
    %v4733 = vmul.f32 %v4729, %v4729
    %v4734 = vsel %vm111, %v4730, 0.0
    %4735 = vadd.xlane.f32.xlu0 %v4734
    %v4736 = vpop.xlane.xlu0 %4735
    %v4737 = vsel %vm111, %v4731, 0.0
    %4738 = vadd.xlane.f32.xlu0 %v4737
    %v4739 = vpop.xlane.xlu0 %4738
    %v4740 = vsel %vm111, %v4732, 0.0
    %4741 = vadd.xlane.f32.xlu0 %v4740
    %v4742 = vpop.xlane.xlu0 %4741
    %v4743 = vsel %vm111, %v4733, 0.0
    %4744 = vadd.xlane.f32.xlu0 %v4743
    %v4745 = vpop.xlane.xlu0 %4744
    %v4746 = vmul.f32 %v4736, %v4429
    %v4747 = vmul.f32 %v4739, %v4429
    %v4748 = vmul.f32 %v4742, %v4429
    %v4749 = vmul.f32 %v4745, %v4429
    %v4750 = vadd.f32 %v4746, 1e-05
    %v4751 = vadd.f32 %v4747, 1e-05
    %v4752 = vadd.f32 %v4748, 1e-05
    %v4753 = vadd.f32 %v4749, 1e-05
    %v4754 = vrsqrt.pop %v4750
    %v4755 = vrsqrt.pop %v4751
    %v4756 = vrsqrt.pop %v4752
    %v4757 = vrsqrt.pop %v4753
    %v4758 = vmul.f32 %v4726, %v4754
    %v4759 = vmul.f32 %v4727, %v4755
    %v4760 = vmul.f32 %v4728, %v4756
    %v4761 = vmul.f32 %v4729, %v4757
    %v4762 = vlaneseq
    %v4763 = vshrl.u32 %v4762, 7
    %v4764 = vsub.s32 3, %v4763
    %v4765 = vrot.slane %v86, %v4764
    %v4766 = vmul.f32 %v4758, %v4765
    %v4767 = vmul.f32 %v4759, %v4765
    %v4768 = vmul.f32 %v4760, %v4765
    %v4769 = vmul.f32 %v4761, %v4765
    %v4770 = vlaneseq
    %v4771 = vshrl.u32 %v4770, 7
    %v4772 = vsub.s32 4, %v4771
    %v4773 = vrot.slane %v86, %v4772
    %v4774 = vadd.f32 %v4766, %v4773
    %v4775 = vadd.f32 %v4767, %v4773
    %v4776 = vadd.f32 %v4768, %v4773
    %v4777 = vadd.f32 %v4769, %v4773
    %v4782 = vcombine.high %v4774, %v4774
    %v4783 = vcombine.high %v4775, %v4775
    %v4784 = vcombine.high %v4776, %v4776
    %v4785 = vcombine.high %v4777, %v4777
    %s4786 = scalar_lea.vmem [#allocation7], 144
    %v4787 = vld [vmem:[%s4786] sm:$0xff]
    %v4788 = vld [vmem:[%s4786 + $0x8] sm:$0xff]
    %v4789 = vld [vmem:[%s4786 + $0x10] sm:$0xff]
    %v4790 = vld [vmem:[%s4786 + $0x18] sm:$0xff]
    %v4791 = vld [vmem:[%s4786 + $0x20] sm:$0xff]
    %v4792 = vld [vmem:[%s4786 + $0x28] sm:$0xff]
    %s4793 = scalar_lea.vmem [#allocation7], 192
    %v4794 = vld [vmem:[%s4793] sm:$0xff]
    %v4795 = vld [vmem:[%s4793 + $0x8] sm:$0xff]
    %v4796 = vld [vmem:[%s4793 + $0x10] sm:$0xff]
    %v4797 = vld [vmem:[%s4793 + $0x18] sm:$0xff]
    %v4798 = vld [vmem:[%s4793 + $0x20] sm:$0xff]
    %v4799 = vld [vmem:[%s4793 + $0x28] sm:$0xff]
    %v4800 = vlaneseq
    %v4801 = vshrl.u32 %v4800, 7
    %v4802 = vsub.s32 1, %v4801
    %v4803 = vrot.slane %v4774, %v4802
    %v4804 = vlaneseq
    %v4805 = vshrl.u32 %v4804, 7
    %v4806 = vsub.s32 1, %v4805
    %v4807 = vrot.slane %v4782, %v4806
    %v4808 = vlaneseq
    %v4809 = vshrl.u32 %v4808, 7
    %v4810 = vsub.s32 1, %v4809
    %v4811 = vrot.slane %v4775, %v4810
    %v4812 = vlaneseq
    %v4813 = vshrl.u32 %v4812, 7
    %v4814 = vsub.s32 1, %v4813
    %v4815 = vrot.slane %v4783, %v4814
    %v4816 = vlaneseq
    %v4817 = vshrl.u32 %v4816, 7
    %v4818 = vsub.s32 1, %v4817
    %v4819 = vrot.slane %v4776, %v4818
    %v4820 = vlaneseq
    %v4821 = vshrl.u32 %v4820, 7
    %v4822 = vsub.s32 1, %v4821
    %v4823 = vrot.slane %v4784, %v4822
    %v4824 = vlaneseq
    %v4825 = vshrl.u32 %v4824, 7
    %v4826 = vsub.s32 1, %v4825
    %v4827 = vrot.slane %v4777, %v4826
    %v4828 = vlaneseq
    %v4829 = vshrl.u32 %v4828, 7
    %v4830 = vsub.s32 1, %v4829
    %v4831 = vrot.slane %v4785, %v4830
    %vm4832 = vcmask 1041409
    %v4833 = vsel %vm4832, %v4807, %v4803
    %vm4834 = vcmask 1042434
    %v4835 = vsel %vm4834, %v4811, %v4833
    %vm4836 = vcmask 1043459
    %v4837 = vsel %vm4836, %v4815, %v4835
    %vm4838 = vcmask 1044484
    %v4839 = vsel %vm4838, %v4819, %v4837
    %vm4840 = vcmask 1045509
    %v4841 = vsel %vm4840, %v4823, %v4839
    %vm4842 = vcmask 1046534
    %v4843 = vsel %vm4842, %v4827, %v4841
    %vm4844 = vcmask 1047559
    %v4845 = vsel %vm4844, %v4831, %v4843
    %v4846 = vsel %vm111, %v4845, 0
    %4848 = vmatprep.subr.mxu0 0.0
    %4849 = vmatpush1.msra.mxu0 %v4794
    %4850 = vmatprep.subr.mxu0 0.0
    %4851 = vmatpush1.msra.mxu0 %v4795
    %4852 = vmatprep.subr.mxu0 0.0
    %4853 = vmatpush1.msra.mxu0 %v4796
    %4854 = vmatprep.subr.mxu0 0.0
    %4855 = vmatpush1.msra.mxu0 %v4797
    %4856 = vmatprep.subr.mxu0 0.0
    %4857 = vmatpush1.msra.mxu0 %v4798
    %4858 = vmatprep.subr.mxu0 0.0
    %4859 = vmatpush1.msra.mxu0 %v4799
    %4860 = vmatprep.subr.mxu0 0.0
    %4861 = vmatpush1.msra.mxu0 0.0
    %4862 = vmatprep.subr.mxu0 0.0
    %4863 = vmatpush1.msra.mxu0 0.0
    %4864 = vmatprep.subr.mxu0 0.0
    %4865 = vmatpush1.msra.mxu0 0.0
    %4866 = vmatprep.subr.mxu0 0.0
    %4867 = vmatpush1.msra.mxu0 0.0
    %4868 = vmatprep.subr.mxu0 0.0
    %4869 = vmatpush1.msra.mxu0 0.0
    %4870 = vmatprep.subr.mxu0 0.0
    %4871 = vmatpush1.msra.mxu0 0.0
    %4872 = vmatprep.subr.mxu0 0.0
    %4873 = vmatpush1.msra.mxu0 0.0
    %4874 = vmatprep.subr.mxu0 0.0
    %4875 = vmatpush1.msra.mxu0 0.0
    %4876 = vmatprep.subr.mxu0 0.0
    %4877 = vmatpush1.msra.mxu0 0.0
    %4878 = vmatprep.subr.mxu0 0.0
    %4879 = vmatpush1.msra.mxu0 0.0
    %4880 = vmatprep.subr.mxu0 0.0
    %4881 = vmatpush1.msra.mxu0 0.0
    %4882 = vmatprep.subr.mxu0 0.0
    %4883 = vmatpush1.msra.mxu0 0.0
    %4884 = vmatprep.subr.mxu0 0.0
    %4885 = vmatpush1.msra.mxu0 0.0
    %4886 = vmatprep.subr.mxu0 0.0
    %4887 = vmatpush1.msra.mxu0 0.0
    %4888 = vmatprep.subr.mxu0 0.0
    %4889 = vmatpush1.msra.mxu0 0.0
    %4890 = vmatprep.subr.mxu0 0.0
    %4891 = vmatpush1.msra.mxu0 0.0
    %4892 = vmatprep.subr.mxu0 0.0
    %4893 = vmatpush1.msra.mxu0 0.0
    %4894 = vmatprep.subr.mxu0 0.0
    %4895 = vmatpush1.msra.mxu0 0.0
    %4896 = vmatprep.subr.mxu0 0.0
    %4897 = vmatpush1.msra.mxu0 0.0
    %4898 = vmatprep.subr.mxu0 0.0
    %4899 = vmatpush1.msra.mxu0 0.0
    %4900 = vmatprep.subr.mxu0 0.0
    %4901 = vmatpush1.msra.mxu0 0.0
    %4902 = vmatprep.subr.mxu0 0.0
    %4903 = vmatpush1.msra.mxu0 0.0
    %4904 = vmatprep.subr.mxu0 0.0
    %4905 = vmatpush1.msra.mxu0 0.0
    %4906 = vmatprep.subr.mxu0 0.0
    %4907 = vmatpush1.msra.mxu0 0.0
    %4908 = vmatprep.subr.mxu0 0.0
    %4909 = vmatpush1.msra.mxu0 0.0
    %4910 = vmatprep.subr.mxu0 0.0
    %4911 = vmatpush1.msra.mxu0 0.0
    %4912 = vmatprep.mubr.f32.mxu0 0.0
    %4913 = vmatmul.mubr.f32.gmra.mrb[0].mxu0 %v4846
    %v4914 = vpop.f32.mrb[0].mxu0
    %v4915 = vadd.f32 0.0, %v4914
    %v4916 = vpop.f32.mrb[0].mxu0
    %4917 = vdwg.mxu0
    %v4918 = vlaneseq
    %v4919 = vshrl.u32 %v4918, 7
    %v4920 = vsub.s32 0, %v4919
    %v4921 = vrot.slane %v4774, %v4920
    %v4922 = vlaneseq
    %v4923 = vshrl.u32 %v4922, 7
    %v4924 = vsub.s32 0, %v4923
    %v4925 = vrot.slane %v4782, %v4924
    %v4926 = vlaneseq
    %v4927 = vshrl.u32 %v4926, 7
    %v4928 = vsub.s32 0, %v4927
    %v4929 = vrot.slane %v4775, %v4928
    %v4930 = vlaneseq
    %v4931 = vshrl.u32 %v4930, 7
    %v4932 = vsub.s32 0, %v4931
    %v4933 = vrot.slane %v4783, %v4932
    %v4934 = vlaneseq
    %v4935 = vshrl.u32 %v4934, 7
    %v4936 = vsub.s32 0, %v4935
    %v4937 = vrot.slane %v4776, %v4936
    %v4938 = vlaneseq
    %v4939 = vshrl.u32 %v4938, 7
    %v4940 = vsub.s32 0, %v4939
    %v4941 = vrot.slane %v4784, %v4940
    %v4942 = vlaneseq
    %v4943 = vshrl.u32 %v4942, 7
    %v4944 = vsub.s32 0, %v4943
    %v4945 = vrot.slane %v4777, %v4944
    %v4946 = vlaneseq
    %v4947 = vshrl.u32 %v4946, 7
    %v4948 = vsub.s32 0, %v4947
    %v4949 = vrot.slane %v4785, %v4948
    %v4950 = vsel %vm4832, %v4925, %v4921
    %v4951 = vsel %vm4834, %v4929, %v4950
    %v4952 = vsel %vm4836, %v4933, %v4951
    %v4953 = vsel %vm4838, %v4937, %v4952
    %v4954 = vsel %vm4840, %v4941, %v4953
    %v4955 = vsel %vm4842, %v4945, %v4954
    %v4956 = vsel %vm4844, %v4949, %v4955
    %v4957 = vsel %vm111, %v4956, 0
    %4959 = vmatprep.subr.mxu0 0.0
    %4960 = vmatpush1.msra.mxu0 %v4787
    %4961 = vmatprep.subr.mxu0 0.0
    %4962 = vmatpush1.msra.mxu0 %v4788
    %4963 = vmatprep.subr.mxu0 0.0
    %4964 = vmatpush1.msra.mxu0 %v4789
    %4965 = vmatprep.subr.mxu0 0.0
    %4966 = vmatpush1.msra.mxu0 %v4790
    %4967 = vmatprep.subr.mxu0 0.0
    %4968 = vmatpush1.msra.mxu0 %v4791
    %4969 = vmatprep.subr.mxu0 0.0
    %4970 = vmatpush1.msra.mxu0 %v4792
    %4971 = vmatprep.subr.mxu0 0.0
    %4972 = vmatpush1.msra.mxu0 0.0
    %4973 = vmatprep.subr.mxu0 0.0
    %4974 = vmatpush1.msra.mxu0 0.0
    %4975 = vmatprep.subr.mxu0 0.0
    %4976 = vmatpush1.msra.mxu0 0.0
    %4977 = vmatprep.subr.mxu0 0.0
    %4978 = vmatpush1.msra.mxu0 0.0
    %4979 = vmatprep.subr.mxu0 0.0
    %4980 = vmatpush1.msra.mxu0 0.0
    %4981 = vmatprep.subr.mxu0 0.0
    %4982 = vmatpush1.msra.mxu0 0.0
    %4983 = vmatprep.subr.mxu0 0.0
    %4984 = vmatpush1.msra.mxu0 0.0
    %4985 = vmatprep.subr.mxu0 0.0
    %4986 = vmatpush1.msra.mxu0 0.0
    %4987 = vmatprep.subr.mxu0 0.0
    %4988 = vmatpush1.msra.mxu0 0.0
    %4989 = vmatprep.subr.mxu0 0.0
    %4990 = vmatpush1.msra.mxu0 0.0
    %4991 = vmatprep.subr.mxu0 0.0
    %4992 = vmatpush1.msra.mxu0 0.0
    %4993 = vmatprep.subr.mxu0 0.0
    %4994 = vmatpush1.msra.mxu0 0.0
    %4995 = vmatprep.subr.mxu0 0.0
    %4996 = vmatpush1.msra.mxu0 0.0
    %4997 = vmatprep.subr.mxu0 0.0
    %4998 = vmatpush1.msra.mxu0 0.0
    %4999 = vmatprep.subr.mxu0 0.0
    %5000 = vmatpush1.msra.mxu0 0.0
    %5001 = vmatprep.subr.mxu0 0.0
    %5002 = vmatpush1.msra.mxu0 0.0
    %5003 = vmatprep.subr.mxu0 0.0
    %5004 = vmatpush1.msra.mxu0 0.0
    %5005 = vmatprep.subr.mxu0 0.0
    %5006 = vmatpush1.msra.mxu0 0.0
    %5007 = vmatprep.subr.mxu0 0.0
    %5008 = vmatpush1.msra.mxu0 0.0
    %5009 = vmatprep.subr.mxu0 0.0
    %5010 = vmatpush1.msra.mxu0 0.0
    %5011 = vmatprep.subr.mxu0 0.0
    %5012 = vmatpush1.msra.mxu0 0.0
    %5013 = vmatprep.subr.mxu0 0.0
    %5014 = vmatpush1.msra.mxu0 0.0
    %5015 = vmatprep.subr.mxu0 0.0
    %5016 = vmatpush1.msra.mxu0 0.0
    %5017 = vmatprep.subr.mxu0 0.0
    %5018 = vmatpush1.msra.mxu0 0.0
    %5019 = vmatprep.subr.mxu0 0.0
    %5020 = vmatpush1.msra.mxu0 0.0
    %5021 = vmatprep.subr.mxu0 0.0
    %5022 = vmatpush1.msra.mxu0 0.0
    %5023 = vmatprep.mubr.f32.mxu0 0.0
    %5024 = vmatmul.mubr.f32.gmra.mrb[0].mxu0 %v4957
    %v5025 = vpop.f32.mrb[0].mxu0
    %v5026 = vadd.f32 %v4915, %v5025
    %v5027 = vpop.f32.mrb[0].mxu0
    %5028 = vdwg.mxu0
    %s5029 = scalar_lea.vmem [#allocation7], 240
    %v5030 = vld [vmem:[%s5029] sm:$0xff]
    %v5031 = vld [vmem:[%s5029 + $0x8] sm:$0xff]
    %v5032 = vld [vmem:[%s5029 + $0x10] sm:$0xff]
    %v5033 = vld [vmem:[%s5029 + $0x18] sm:$0xff]
    %v5034 = vld [vmem:[%s5029 + $0x20] sm:$0xff]
    %v5035 = vld [vmem:[%s5029 + $0x28] sm:$0xff]
    %v5036 = vlaneseq
    %v5037 = vshrl.u32 %v5036, 7
    %v5038 = vsub.s32 2, %v5037
    %v5039 = vrot.slane %v4774, %v5038
    %v5040 = vlaneseq
    %v5041 = vshrl.u32 %v5040, 7
    %v5042 = vsub.s32 2, %v5041
    %v5043 = vrot.slane %v4782, %v5042
    %v5044 = vlaneseq
    %v5045 = vshrl.u32 %v5044, 7
    %v5046 = vsub.s32 2, %v5045
    %v5047 = vrot.slane %v4775, %v5046
    %v5048 = vlaneseq
    %v5049 = vshrl.u32 %v5048, 7
    %v5050 = vsub.s32 2, %v5049
    %v5051 = vrot.slane %v4783, %v5050
    %v5052 = vlaneseq
    %v5053 = vshrl.u32 %v5052, 7
    %v5054 = vsub.s32 2, %v5053
    %v5055 = vrot.slane %v4776, %v5054
    %v5056 = vlaneseq
    %v5057 = vshrl.u32 %v5056, 7
    %v5058 = vsub.s32 2, %v5057
    %v5059 = vrot.slane %v4784, %v5058
    %v5060 = vlaneseq
    %v5061 = vshrl.u32 %v5060, 7
    %v5062 = vsub.s32 2, %v5061
    %v5063 = vrot.slane %v4777, %v5062
    %v5064 = vlaneseq
    %v5065 = vshrl.u32 %v5064, 7
    %v5066 = vsub.s32 2, %v5065
    %v5067 = vrot.slane %v4785, %v5066
    %v5068 = vsel %vm4832, %v5043, %v5039
    %v5069 = vsel %vm4834, %v5047, %v5068
    %v5070 = vsel %vm4836, %v5051, %v5069
    %v5071 = vsel %vm4838, %v5055, %v5070
    %v5072 = vsel %vm4840, %v5059, %v5071
    %v5073 = vsel %vm4842, %v5063, %v5072
    %v5074 = vsel %vm4844, %v5067, %v5073
    %v5075 = vsel %vm111, %v5074, 0
    %5077 = vmatprep.subr.mxu0 0.0
    %5078 = vmatpush1.msra.mxu0 %v5030
    %5079 = vmatprep.subr.mxu0 0.0
    %5080 = vmatpush1.msra.mxu0 %v5031
    %5081 = vmatprep.subr.mxu0 0.0
    %5082 = vmatpush1.msra.mxu0 %v5032
    %5083 = vmatprep.subr.mxu0 0.0
    %5084 = vmatpush1.msra.mxu0 %v5033
    %5085 = vmatprep.subr.mxu0 0.0
    %5086 = vmatpush1.msra.mxu0 %v5034
    %5087 = vmatprep.subr.mxu0 0.0
    %5088 = vmatpush1.msra.mxu0 %v5035
    %5089 = vmatprep.subr.mxu0 0.0
    %5090 = vmatpush1.msra.mxu0 0.0
    %5091 = vmatprep.subr.mxu0 0.0
    %5092 = vmatpush1.msra.mxu0 0.0
    %5093 = vmatprep.subr.mxu0 0.0
    %5094 = vmatpush1.msra.mxu0 0.0
    %5095 = vmatprep.subr.mxu0 0.0
    %5096 = vmatpush1.msra.mxu0 0.0
    %5097 = vmatprep.subr.mxu0 0.0
    %5098 = vmatpush1.msra.mxu0 0.0
    %5099 = vmatprep.subr.mxu0 0.0
    %5100 = vmatpush1.msra.mxu0 0.0
    %5101 = vmatprep.subr.mxu0 0.0
    %5102 = vmatpush1.msra.mxu0 0.0
    %5103 = vmatprep.subr.mxu0 0.0
    %5104 = vmatpush1.msra.mxu0 0.0
    %5105 = vmatprep.subr.mxu0 0.0
    %5106 = vmatpush1.msra.mxu0 0.0
    %5107 = vmatprep.subr.mxu0 0.0
    %5108 = vmatpush1.msra.mxu0 0.0
    %5109 = vmatprep.subr.mxu0 0.0
    %5110 = vmatpush1.msra.mxu0 0.0
    %5111 = vmatprep.subr.mxu0 0.0
    %5112 = vmatpush1.msra.mxu0 0.0
    %5113 = vmatprep.subr.mxu0 0.0
    %5114 = vmatpush1.msra.mxu0 0.0
    %5115 = vmatprep.subr.mxu0 0.0
    %5116 = vmatpush1.msra.mxu0 0.0
    %5117 = vmatprep.subr.mxu0 0.0
    %5118 = vmatpush1.msra.mxu0 0.0
    %5119 = vmatprep.subr.mxu0 0.0
    %5120 = vmatpush1.msra.mxu0 0.0
    %5121 = vmatprep.subr.mxu0 0.0
    %5122 = vmatpush1.msra.mxu0 0.0
    %5123 = vmatprep.subr.mxu0 0.0
    %5124 = vmatpush1.msra.mxu0 0.0
    %5125 = vmatprep.subr.mxu0 0.0
    %5126 = vmatpush1.msra.mxu0 0.0
    %5127 = vmatprep.subr.mxu0 0.0
    %5128 = vmatpush1.msra.mxu0 0.0
    %5129 = vmatprep.subr.mxu0 0.0
    %5130 = vmatpush1.msra.mxu0 0.0
    %5131 = vmatprep.subr.mxu0 0.0
    %5132 = vmatpush1.msra.mxu0 0.0
    %5133 = vmatprep.subr.mxu0 0.0
    %5134 = vmatpush1.msra.mxu0 0.0
    %5135 = vmatprep.subr.mxu0 0.0
    %5136 = vmatpush1.msra.mxu0 0.0
    %5137 = vmatprep.subr.mxu0 0.0
    %5138 = vmatpush1.msra.mxu0 0.0
    %5139 = vmatprep.subr.mxu0 0.0
    %5140 = vmatpush1.msra.mxu0 0.0
    %5141 = vmatprep.mubr.f32.mxu0 0.0
    %5142 = vmatmul.mubr.f32.gmra.mrb[0].mxu0 %v5075
    %v5143 = vpop.f32.mrb[0].mxu0
    %v5144 = vadd.f32 0.0, %v5143
    %v5145 = vpop.f32.mrb[0].mxu0
    %5146 = vdwg.mxu0
    %v5147 = vadd.f32 %v5026, %v5144
    %s5148 = scalar_lea.vmem [#allocation7], 288
    %v5149 = vld [vmem:[%s5148] sm:$0xff]
    %v5150 = vld [vmem:[%s5148 + $0x8] sm:$0xff]
    %v5151 = vld [vmem:[%s5148 + $0x10] sm:$0xff]
    %v5152 = vld [vmem:[%s5148 + $0x18] sm:$0xff]
    %v5153 = vld [vmem:[%s5148 + $0x20] sm:$0xff]
    %v5154 = vld [vmem:[%s5148 + $0x28] sm:$0xff]
    %v5155 = vlaneseq
    %v5156 = vshrl.u32 %v5155, 7
    %v5157 = vsub.s32 3, %v5156
    %v5158 = vrot.slane %v4774, %v5157
    %v5159 = vlaneseq
    %v5160 = vshrl.u32 %v5159, 7
    %v5161 = vsub.s32 3, %v5160
    %v5162 = vrot.slane %v4782, %v5161
    %v5163 = vlaneseq
    %v5164 = vshrl.u32 %v5163, 7
    %v5165 = vsub.s32 3, %v5164
    %v5166 = vrot.slane %v4775, %v5165
    %v5167 = vlaneseq
    %v5168 = vshrl.u32 %v5167, 7
    %v5169 = vsub.s32 3, %v5168
    %v5170 = vrot.slane %v4783, %v5169
    %v5171 = vlaneseq
    %v5172 = vshrl.u32 %v5171, 7
    %v5173 = vsub.s32 3, %v5172
    %v5174 = vrot.slane %v4776, %v5173
    %v5175 = vlaneseq
    %v5176 = vshrl.u32 %v5175, 7
    %v5177 = vsub.s32 3, %v5176
    %v5178 = vrot.slane %v4784, %v5177
    %v5179 = vlaneseq
    %v5180 = vshrl.u32 %v5179, 7
    %v5181 = vsub.s32 3, %v5180
    %v5182 = vrot.slane %v4777, %v5181
    %v5183 = vlaneseq
    %v5184 = vshrl.u32 %v5183, 7
    %v5185 = vsub.s32 3, %v5184
    %v5186 = vrot.slane %v4785, %v5185
    %v5187 = vsel %vm4832, %v5162, %v5158
    %v5188 = vsel %vm4834, %v5166, %v5187
    %v5189 = vsel %vm4836, %v5170, %v5188
    %v5190 = vsel %vm4838, %v5174, %v5189
    %v5191 = vsel %vm4840, %v5178, %v5190
    %v5192 = vsel %vm4842, %v5182, %v5191
    %v5193 = vsel %vm4844, %v5186, %v5192
    %v5194 = vsel %vm111, %v5193, 0
    %5196 = vmatprep.subr.mxu0 0.0
    %5197 = vmatpush1.msra.mxu0 %v5149
    %5198 = vmatprep.subr.mxu0 0.0
    %5199 = vmatpush1.msra.mxu0 %v5150
    %5200 = vmatprep.subr.mxu0 0.0
    %5201 = vmatpush1.msra.mxu0 %v5151
    %5202 = vmatprep.subr.mxu0 0.0
    %5203 = vmatpush1.msra.mxu0 %v5152
    %5204 = vmatprep.subr.mxu0 0.0
    %5205 = vmatpush1.msra.mxu0 %v5153
    %5206 = vmatprep.subr.mxu0 0.0
    %5207 = vmatpush1.msra.mxu0 %v5154
    %5208 = vmatprep.subr.mxu0 0.0
    %5209 = vmatpush1.msra.mxu0 0.0
    %5210 = vmatprep.subr.mxu0 0.0
    %5211 = vmatpush1.msra.mxu0 0.0
    %5212 = vmatprep.subr.mxu0 0.0
    %5213 = vmatpush1.msra.mxu0 0.0
    %5214 = vmatprep.subr.mxu0 0.0
    %5215 = vmatpush1.msra.mxu0 0.0
    %5216 = vmatprep.subr.mxu0 0.0
    %5217 = vmatpush1.msra.mxu0 0.0
    %5218 = vmatprep.subr.mxu0 0.0
    %5219 = vmatpush1.msra.mxu0 0.0
    %5220 = vmatprep.subr.mxu0 0.0
    %5221 = vmatpush1.msra.mxu0 0.0
    %5222 = vmatprep.subr.mxu0 0.0
    %5223 = vmatpush1.msra.mxu0 0.0
    %5224 = vmatprep.subr.mxu0 0.0
    %5225 = vmatpush1.msra.mxu0 0.0
    %5226 = vmatprep.subr.mxu0 0.0
    %5227 = vmatpush1.msra.mxu0 0.0
    %5228 = vmatprep.subr.mxu0 0.0
    %5229 = vmatpush1.msra.mxu0 0.0
    %5230 = vmatprep.subr.mxu0 0.0
    %5231 = vmatpush1.msra.mxu0 0.0
    %5232 = vmatprep.subr.mxu0 0.0
    %5233 = vmatpush1.msra.mxu0 0.0
    %5234 = vmatprep.subr.mxu0 0.0
    %5235 = vmatpush1.msra.mxu0 0.0
    %5236 = vmatprep.subr.mxu0 0.0
    %5237 = vmatpush1.msra.mxu0 0.0
    %5238 = vmatprep.subr.mxu0 0.0
    %5239 = vmatpush1.msra.mxu0 0.0
    %5240 = vmatprep.subr.mxu0 0.0
    %5241 = vmatpush1.msra.mxu0 0.0
    %5242 = vmatprep.subr.mxu0 0.0
    %5243 = vmatpush1.msra.mxu0 0.0
    %5244 = vmatprep.subr.mxu0 0.0
    %5245 = vmatpush1.msra.mxu0 0.0
    %5246 = vmatprep.subr.mxu0 0.0
    %5247 = vmatpush1.msra.mxu0 0.0
    %5248 = vmatprep.subr.mxu0 0.0
    %5249 = vmatpush1.msra.mxu0 0.0
    %5250 = vmatprep.subr.mxu0 0.0
    %5251 = vmatpush1.msra.mxu0 0.0
    %5252 = vmatprep.subr.mxu0 0.0
    %5253 = vmatpush1.msra.mxu0 0.0
    %5254 = vmatprep.subr.mxu0 0.0
    %5255 = vmatpush1.msra.mxu0 0.0
    %5256 = vmatprep.subr.mxu0 0.0
    %5257 = vmatpush1.msra.mxu0 0.0
    %5258 = vmatprep.subr.mxu0 0.0
    %5259 = vmatpush1.msra.mxu0 0.0
    %5260 = vmatprep.mubr.f32.mxu0 0.0
    %5261 = vmatmul.mubr.f32.gmra.mrb[0].mxu0 %v5194
    %v5262 = vpop.f32.mrb[0].mxu0
    %v5263 = vadd.f32 0.0, %v5262
    %v5264 = vpop.f32.mrb[0].mxu0
    %5265 = vdwg.mxu0
    %v5266 = vadd.f32 %v5147, %v5263
    %v5267 = vlaneseq
    %v5268 = vshrl.u32 %v5267, 7
    %v5269 = vsub.s32 7, %v5268
    %v5270 = vrot.slane %v86, %v5269
    %v5271 = vadd.f32 %v5266, %v5270
    %v5272 = vmax.f32 %v5271, 0.0
    %v5273 = vld [vmem:[#allocation8] sm:$0xff]
    %v5274 = vld [vmem:[#allocation8 + $0x8] sm:$0xff]
    %v5275 = vld [vmem:[#allocation8 + $0x10] sm:$0xff]
    %v5276 = vld [vmem:[#allocation8 + $0x18] sm:$0xff]
    %v5277 = vld [vmem:[#allocation8 + $0x20] sm:$0xff]
    %v5278 = vld [vmem:[#allocation8 + $0x28] sm:$0xff]
    %v5279 = vld [vmem:[%s6] sm:$0x1]
    %v5281 = vlaneseq
    %v5282 = vshrl.u32 %v5281, 7
    %v5283 = vsub.s32 0, %v5282
    %v5284 = vrot.slane %v5279, %v5283
    %v5287 = vsel %vm111, %v5272, 0
    %5289 = vmatprep.subr.mxu0 0.0
    %5290 = vmatpush1.msra.mxu0 %v5273
    %5291 = vmatprep.subr.mxu0 0.0
    %5292 = vmatpush1.msra.mxu0 %v5274
    %5293 = vmatprep.subr.mxu0 0.0
    %5294 = vmatpush1.msra.mxu0 %v5275
    %5295 = vmatprep.subr.mxu0 0.0
    %5296 = vmatpush1.msra.mxu0 %v5276
    %5297 = vmatprep.subr.mxu0 0.0
    %5298 = vmatpush1.msra.mxu0 %v5277
    %5299 = vmatprep.subr.mxu0 0.0
    %5300 = vmatpush1.msra.mxu0 %v5278
    %5301 = vmatprep.subr.mxu0 0.0
    %5302 = vmatpush1.msra.mxu0 0.0
    %5303 = vmatprep.subr.mxu0 0.0
    %5304 = vmatpush1.msra.mxu0 0.0
    %5305 = vmatprep.subr.mxu0 0.0
    %5306 = vmatpush1.msra.mxu0 0.0
    %5307 = vmatprep.subr.mxu0 0.0
    %5308 = vmatpush1.msra.mxu0 0.0
    %5309 = vmatprep.subr.mxu0 0.0
    %5310 = vmatpush1.msra.mxu0 0.0
    %5311 = vmatprep.subr.mxu0 0.0
    %5312 = vmatpush1.msra.mxu0 0.0
    %5313 = vmatprep.subr.mxu0 0.0
    %5314 = vmatpush1.msra.mxu0 0.0
    %5315 = vmatprep.subr.mxu0 0.0
    %5316 = vmatpush1.msra.mxu0 0.0
    %5317 = vmatprep.subr.mxu0 0.0
    %5318 = vmatpush1.msra.mxu0 0.0
    %5319 = vmatprep.subr.mxu0 0.0
    %5320 = vmatpush1.msra.mxu0 0.0
    %5321 = vmatprep.subr.mxu0 0.0
    %5322 = vmatpush1.msra.mxu0 0.0
    %5323 = vmatprep.subr.mxu0 0.0
    %5324 = vmatpush1.msra.mxu0 0.0
    %5325 = vmatprep.subr.mxu0 0.0
    %5326 = vmatpush1.msra.mxu0 0.0
    %5327 = vmatprep.subr.mxu0 0.0
    %5328 = vmatpush1.msra.mxu0 0.0
    %5329 = vmatprep.subr.mxu0 0.0
    %5330 = vmatpush1.msra.mxu0 0.0
    %5331 = vmatprep.subr.mxu0 0.0
    %5332 = vmatpush1.msra.mxu0 0.0
    %5333 = vmatprep.subr.mxu0 0.0
    %5334 = vmatpush1.msra.mxu0 0.0
    %5335 = vmatprep.subr.mxu0 0.0
    %5336 = vmatpush1.msra.mxu0 0.0
    %5337 = vmatprep.subr.mxu0 0.0
    %5338 = vmatpush1.msra.mxu0 0.0
    %5339 = vmatprep.subr.mxu0 0.0
    %5340 = vmatpush1.msra.mxu0 0.0
    %5341 = vmatprep.subr.mxu0 0.0
    %5342 = vmatpush1.msra.mxu0 0.0
    %5343 = vmatprep.subr.mxu0 0.0
    %5344 = vmatpush1.msra.mxu0 0.0
    %5345 = vmatprep.subr.mxu0 0.0
    %5346 = vmatpush1.msra.mxu0 0.0
    %5347 = vmatprep.subr.mxu0 0.0
    %5348 = vmatpush1.msra.mxu0 0.0
    %5349 = vmatprep.subr.mxu0 0.0
    %5350 = vmatpush1.msra.mxu0 0.0
    %5351 = vmatprep.subr.mxu0 0.0
    %5352 = vmatpush1.msra.mxu0 0.0
    %5353 = vmatprep.mubr.f32.mxu0 0.0
    %5354 = vmatmul.mubr.f32.gmra.mrb[0].mxu0 %v5287
    %v5355 = vpop.f32.mrb[0].mxu0
    %v5356 = vadd.f32 %v5284, %v5355
    %v5357 = vpop.f32.mrb[0].mxu0
    %5358 = vdwg.mxu0
    %v5359 = vxor.u32 %v5356, 2147483648
    %v5360 = vmul.f32 %v5359, 1.442695
    %v5361 = vpow.pop %v5360
    %v5362 = vadd.f32 %v5361, 1.0
    %v5363 = vrcp.pop %v5362
    %v5364 = vmul.f32 1.0, %v5363
    %5365 = vst [vmem:[#allocation10] sm:$0xff] %v5364
    // Predicated region
    $region46: #{tpu_custom_call.1} parent=1 // pred_check
      _
    $region47: #{tpu_custom_call.1} parent=1 // pred_check_branch
      %5367 = sbr.rel (0) target = $region49
    $region48: #{tpu_custom_call.1} parent=1 // pred_region
      %s5369 = ssub.s32 128, 128
      %5370 = vsyncadd [#allocation4], %s5369
      %s5372 = sshll.u32 [#allocation10], 4
      %s5373 = int_to_ptr.vmem [resolvable:$true] %s5372
      %5375 = dma.vmem_to_hbm [thread:$0]  %s5373, 128, %s7, [#allocation4]
    $region49: #{tpu_custom_call.1} parent=1 // pred_fallthru
      _
    // Predicated region
    $region50: #{tpu_custom_call.1} parent=1 // pred_check
      _
    $region51: #{tpu_custom_call.1} parent=1 // pred_check_branch
      %5377 = sbr.rel (0) target = $region53
    $region52: #{tpu_custom_call.1} parent=1 // pred_region
      %5378 = dma.done [#allocation4], 128
    $region53: #{tpu_custom_call.1} parent=1 // pred_fallthru
      _
    %5379 = vsyncpa [#allocation3], 1
    %5380 = vsyncpa [#allocation6], 1
    %5381 = vsyncpa [#allocation9], 1
    %5382 = vsyncpa [#allocation4], 1

</llo_original>
